<compile_context>
chip_gen: v7x
topology: tpu7x:2x2x1
jax: 0.10.0
libtpu: 0.0.40
codegen_flags: <defaults>
</compile_context>

<pallas_src>
import numpy as np
import jax
import jax.numpy as jnp
from jax.experimental import pallas as pl
from jax.experimental.pallas import tpu as pltpu


# ----------------------------------------------------------------------------
# Host-side weight folding (runs once; pure numpy on PyTorch-layout weights)
# ----------------------------------------------------------------------------
def build_operands(params, H, W):
    """Fold ConvTranspose2d(2,2,s=2), crop+concat and both 3x3 convs into
    row-GEMM matrices for the fused (W*C)-lane layout."""
    up_w = np.asarray(params["up_w"], np.float32)   # (Cin, Cup, 2, 2)  torch layout
    up_b = np.asarray(params["up_b"], np.float32)   # (Cup,)
    w1 = np.asarray(params["c1_w"], np.float32)     # (C1, Ccat, 3, 3)  OIHW
    b1 = np.asarray(params["c1_b"], np.float32)
    w2 = np.asarray(params["c2_w"], np.float32)     # (C2, C1, 3, 3)    OIHW
    b2 = np.asarray(params["c2_b"], np.float32)

    Cin, Cup = up_w.shape[0], up_w.shape[1]
    C1, Ccat = w1.shape[0], w1.shape[1]
    C2 = w2.shape[0]
    Cskip = Ccat - Cup
    Wf = 2 * W
    W1o, W2o = Wf - 2, Wf - 4

    w1h = w1.transpose(2, 3, 1, 0)   # (3, 3, Ccat, C1)  HWIO
    w2h = w2.transpose(2, 3, 1, 0)   # (3, 3, C1, C2)

    def band(wk, win, wout):
        # wk: (3, Ci, Co) -> banded (win*Ci, wout*Co) matrix: one conv row-step
        ci, co = wk.shape[1], wk.shape[2]
        m = np.zeros((win, ci, wout, co), np.float32)
        for kw in range(3):
            for q in range(wout):
                m[q + kw, :, q, :] = wk[kw]
        return m.reshape(win * ci, wout * co)

    def upmat(kh):
        # (W*Cin, Wf*Cup): one x_current row -> one upsampled row of parity kh
        u = np.zeros((W, Cin, Wf, Cup), np.float32)
        for j in range(W):
            for kw in range(2):
                u[j, :, 2 * j + kw, :] = up_w[:, :, kh, kw]
        return u.reshape(W * Cin, Wf * Cup)

    U0, U1 = upmat(0), upmat(1)
    M1u = [band(w1h[kh, :, :Cup, :], Wf, W1o) for kh in range(3)]   # up channels
    M1s = [band(w1h[kh, :, Cup:, :], Wf, W1o) for kh in range(3)]   # skip channels
    M2 = [band(w2h[kh], W1o, W2o) for kh in range(3)]

    # Fold the transposed conv (incl. its H-parity interleave) into conv1.
    A0 = U0 @ M1u[0] + U1 @ M1u[1]      # even conv1 rows, x row m
    B0 = U0 @ M1u[2]                    # even conv1 rows, x row m+1
    A1 = U1 @ M1u[0]                    # odd  conv1 rows, x row m
    B1 = U0 @ M1u[1] + U1 @ M1u[2]      # odd  conv1 rows, x row m+1
    w1_stack = np.stack([A0, B0, A1, B1, M1s[0], M1s[1], M1s[2]])   # (7, W*Cin, W1o*C1)
    w2_stack = np.stack(M2)                                         # (3, W1o*C1, W2o*C2)

    # ConvTranspose bias folded into conv1 bias (every valid tap sees it).
    b1_eff = b1 + np.einsum("c,hwcd->d", up_b, w1h[:, :, :Cup, :])
    b1t = np.tile(b1_eff, W1o)[None, :].astype(np.float32)          # (1, W1o*C1)
    b2t = np.tile(b2, W2o)[None, :].astype(np.float32)              # (1, W2o*C2)

    def reduce_mat(wout, c):   # (wout*c, c): per-channel sum over the w positions
        p = np.zeros((wout * c, c), np.float32)
        p[np.arange(wout * c), np.arange(wout * c) % c] = 1.0
        return p

    P1, P2 = reduce_mat(W1o, C1), reduce_mat(W2o, C2)

    j = lambda a: jnp.asarray(a, jnp.float32)
    return dict(
        w1=j(w1_stack), w2=j(w2_stack), b1t=j(b1t), b2t=j(b2t),
        p1=j(P1), p1t=j(P1.T), p2=j(P2), p2t=j(P2.T),
        g1=j(params["bn1_g"])[None, :], be1=j(params["bn1_b"])[None, :],
        g2=j(params["bn2_g"])[None, :], be2=j(params["bn2_b"])[None, :],
    )


# ----------------------------------------------------------------------------
# Fused forward: one pallas_call for the entire Expand block
# ----------------------------------------------------------------------------
@jax.jit
def expand_forward(ops, x_from_down, x_current):
    N, H, W, Cin = x_current.shape
    Hf, Wf = 2 * H, 2 * W
    H1o, W1o = Hf - 2, Wf - 2
    H2o, W2o = Hf - 4, Wf - 4
    C1 = ops["g1"].shape[-1]
    C2 = ops["g2"].shape[-1]
    Le1, Le2 = W1o * C1, W2o * C2
    Cskip = x_from_down.shape[-1]
    cnt1 = float(N * H1o * W1o)
    cnt2 = float(N * H2o * W2o)

    # --- tiny input repack (one small XLA fusion; all heavy work is in-kernel) ---
    xc = x_current.reshape(N, H, W * Cin)                       # fused-lane rows
    d0 = x_from_down.shape[1] - Hf
    d1 = x_from_down.shape[2] - Wf
    crop = x_from_down[:, d0 // 2: x_from_down.shape[1] - d0 // 2,
                       d1 // 2: x_from_down.shape[2] - d1 // 2, :]
    if crop.shape[1] != Hf or crop.shape[2] != Wf:
        raise ValueError("skip-connection crop does not match upsampled size "
                         "(odd delta) - same failure torch.cat would raise")
    se = crop[:, 0::2].reshape(N, H, Wf * Cskip)                # even fine rows
    so = crop[:, 1::2].reshape(N, H, Wf * Cskip)                # odd  fine rows

    def kernel(xc_ref, se_ref, so_ref,
               w1_ref, b1_ref, g1_ref, be1_ref, p1_ref, p1t_ref,
               w2_ref, b2_ref, g2_ref, be2_ref, p2_ref, p2t_ref,
               o_ref, h1e_ref, h1o_ref):
        f32 = jnp.float32

        def rowdot(a, b):   # (N, R, K) x (K, L) -> (N, R, L) on the MXU
            return jax.lax.dot_general(a, b, (((2,), (0,)), ((), ())),
                                       preferred_element_type=f32)

        def bn_relu_pair(he, ho, p_ref, pt_ref, g_ref, be_ref, cnt):
            # Training-mode BatchNorm (biased batch stats over N,H,W per channel)
            # + ReLU; stats computed while data is still resident in VMEM/vregs.
            p, pt = p_ref[...], pt_ref[...]
            s = (jnp.sum(he, axis=(0, 1), keepdims=True)[0]
                 + jnp.sum(ho, axis=(0, 1), keepdims=True)[0])            # (1, W*C)
            mean_c = jnp.dot(s, p, preferred_element_type=f32) * (1.0 / cnt)    # (1, C)
            mean = jnp.dot(mean_c, pt, preferred_element_type=f32)              # (1, W*C)
            de = he - mean
            do = ho - mean
            sq = (jnp.sum(de * de, axis=(0, 1), keepdims=True)[0]
                  + jnp.sum(do * do, axis=(0, 1), keepdims=True)[0])
            var_c = jnp.dot(sq, p, preferred_element_type=f32) * (1.0 / cnt)    # (1, C)
            scale_c = g_ref[...] * jax.lax.rsqrt(var_c + 1e-5)
            shift_c = be_ref[...] - mean_c * scale_c
            scale = jnp.dot(scale_c, pt, preferred_element_type=f32)            # (1, W*C)
            shift = jnp.dot(shift_c, pt, preferred_element_type=f32)
            return (jnp.maximum(he * scale + shift, 0.0),
                    jnp.maximum(ho * scale + shift, 0.0))

        # conv1 == upsample + crop + concat + 3x3 conv, all folded into row GEMMs.
        xc_lo, xc_hi = xc_ref[:, 0:H - 1, :], xc_ref[:, 1:H, :]
        se_lo, se_hi = se_ref[:, 0:H - 1, :], se_ref[:, 1:H, :]
        so_lo, so_hi = so_ref[:, 0:H - 1, :], so_ref[:, 1:H, :]
        b1v = b1_ref[...]
        h1e = (rowdot(xc_lo, w1_ref[0]) + rowdot(xc_hi, w1_ref[1])
               + rowdot(se_lo, w1_ref[4]) + rowdot(so_lo, w1_ref[5])
               + rowdot(se_hi, w1_ref[6]) + b1v)
        h1o = (rowdot(xc_lo, w1_ref[2]) + rowdot(xc_hi, w1_ref[3])
               + rowdot(so_lo, w1_ref[4]) + rowdot(se_hi, w1_ref[5])
               + rowdot(so_hi, w1_ref[6]) + b1v)

        a1e, a1o = bn_relu_pair(h1e, h1o, p1_ref, p1t_ref, g1_ref, be1_ref, cnt1)
        h1e_ref[...] = a1e
        h1o_ref[...] = a1o

        # conv2 on the parity-split rows.
        e_lo, e_hi = h1e_ref[:, 0:H - 2, :], h1e_ref[:, 1:H - 1, :]
        o_lo, o_hi = h1o_ref[:, 0:H - 2, :], h1o_ref[:, 1:H - 1, :]
        b2v = b2_ref[...]
        h2e = (rowdot(e_lo, w2_ref[0]) + rowdot(o_lo, w2_ref[1])
               + rowdot(e_hi, w2_ref[2]) + b2v)
        h2o = (rowdot(o_lo, w2_ref[0]) + rowdot(e_hi, w2_ref[1])
               + rowdot(o_hi, w2_ref[2]) + b2v)

        a2e, a2o = bn_relu_pair(h2e, h2o, p2_ref, p2t_ref, g2_ref, be2_ref, cnt2)

        # Lane-dense final store; the row-parity interleave becomes a free
        # reshape of this slab outside the kernel.
        o_ref[...] = jnp.concatenate([a2e, a2o], axis=-1)

    def full(shape):
        nd = len(shape)
        return pl.BlockSpec(shape, lambda i, nd=nd: (0,) * nd)

    out = pl.pallas_call(
        kernel,
        out_shape=jax.ShapeDtypeStruct((N, H2o // 2, 2 * Le2), jnp.float32),
        grid=(1,),
        in_specs=[
            full((N, H, W * Cin)), full((N, H, Wf * Cskip)), full((N, H, Wf * Cskip)),
            full((7, W * Cin, Le1)), full((1, Le1)), full((1, C1)), full((1, C1)),
            full((Le1, C1)), full((C1, Le1)),
            full((3, Le1, Le2)), full((1, Le2)), full((1, C2)), full((1, C2)),
            full((Le2, C2)), full((C2, Le2)),
        ],
        out_specs=full((N, H2o // 2, 2 * Le2)),
        scratch_shapes=[pltpu.VMEM((N, H1o // 2, Le1), jnp.float32),
                        pltpu.VMEM((N, H1o // 2, Le1), jnp.float32)],
        compiler_params=pltpu.CompilerParams(dimension_semantics=("arbitrary",)),
    )(xc, se, so,
      ops["w1"], ops["b1t"], ops["g1"], ops["be1"], ops["p1"], ops["p1t"],
      ops["w2"], ops["b2t"], ops["g2"], ops["be2"], ops["p2"], ops["p2t"])

    # (N, H2o//2, 2*W2o*C2) slab -> (N, H2o, W2o, C2); same linear layout => free.
    return out.reshape(N, H2o, W2o, C2)


# ----------------------------------------------------------------------------
# Pure-numpy (float64) reference implementing the PyTorch semantics directly
# ----------------------------------------------------------------------------
def _ref_forward_np(params, x_from_down, x_current):
    xd = np.asarray(x_from_down, np.float64)
    xc = np.asarray(x_current, np.float64)
    up_w = np.asarray(params["up_w"], np.float64)
    up_b = np.asarray(params["up_b"], np.float64)
    w1 = np.asarray(params["c1_w"], np.float64)
    b1 = np.asarray(params["c1_b"], np.float64)
    w2 = np.asarray(params["c2_w"], np.float64)
    b2 = np.asarray(params["c2_b"], np.float64)
    g1, be1 = np.asarray(params["bn1_g"], np.float64), np.asarray(params["bn1_b"], np.float64)
    g2, be2 = np.asarray(params["bn2_g"], np.float64), np.asarray(params["bn2_b"], np.float64)

    N, H, W, _ = xc.shape
    Cup = up_w.shape[1]
    up = np.einsum("nhwc,cdkl->nhwdkl", xc, up_w) + up_b[None, None, None, :, None, None]
    up = up.transpose(0, 1, 4, 2, 5, 3).reshape(N, 2 * H, 2 * W, Cup)

    d0 = xd.shape[1] - up.shape[1]
    d1 = xd.shape[2] - up.shape[2]
    crop = xd[:, d0 // 2: xd.shape[1] - d0 // 2, d1 // 2: xd.shape[2] - d1 // 2, :]
    h = np.concatenate([up, crop], axis=-1)

    def conv3x3(x, w_oihw, b):
        Ho, Wo, Co = x.shape[1] - 2, x.shape[2] - 2, w_oihw.shape[0]
        out = np.zeros((x.shape[0], Ho, Wo, Co), np.float64)
        for kh in range(3):
            for kw in range(3):
                out += np.einsum("nhwc,dc->nhwd",
                                 x[:, kh:kh + Ho, kw:kw + Wo, :], w_oihw[:, :, kh, kw])
        return out + b

    def bn_relu(x, g, b):
        m = x.mean(axis=(0, 1, 2))
        v = x.var(axis=(0, 1, 2))
        return np.maximum((x - m) / np.sqrt(v + 1e-5) * g + b, 0.0)

    h = bn_relu(conv3x3(h, w1, b1), g1, be1)
    h = bn_relu(conv3x3(h, w2, b2), g2, be2)
    return h


if __name__ == "__main__":
    in_filters, out_filters = 8, 8
    ks = jax.random.split(jax.random.PRNGKey(0), 12)

    params = dict(
        up_w=0.1 * jax.random.normal(ks[0], (in_filters, in_filters // 2, 2, 2), jnp.float32),
        up_b=0.05 * jax.random.normal(ks[1], (in_filters // 2,), jnp.float32),
        c1_w=0.1 * jax.random.normal(ks[2], (out_filters, in_filters, 3, 3), jnp.float32),
        c1_b=0.05 * jax.random.normal(ks[3], (out_filters,), jnp.float32),
        c2_w=0.1 * jax.random.normal(ks[4], (out_filters, out_filters, 3, 3), jnp.float32),
        c2_b=0.05 * jax.random.normal(ks[5], (out_filters,), jnp.float32),
        bn1_g=1.0 + 0.1 * jax.random.normal(ks[6], (out_filters,), jnp.float32),
        bn1_b=0.1 * jax.random.normal(ks[7], (out_filters,), jnp.float32),
        bn2_g=1.0 + 0.1 * jax.random.normal(ks[8], (out_filters,), jnp.float32),
        bn2_b=0.1 * jax.random.normal(ks[9], (out_filters,), jnp.float32),
    )

    # Inputs (NHWC): skip connection is spatially larger, as in a valid-conv UNet.
    x_from_down = jax.random.normal(ks[10], (2, 20, 20, in_filters // 2), jnp.float32)
    x_current = jax.random.normal(ks[11], (2, 8, 8, in_filters), jnp.float32)

    ops = build_operands(params, H=x_current.shape[1], W=x_current.shape[2])
    out = expand_forward(ops, x_from_down, x_current)
    out = jax.block_until_ready(out)

    ref = _ref_forward_np(params, x_from_down, x_current)
    assert out.shape == (2, 12, 12, out_filters), out.shape
    err = float(np.max(np.abs(np.asarray(out, np.float64) - ref)))
    # Tolerance leaves headroom for reduced-precision MXU passes on f32 matmuls;
    # any layout / weight-folding bug would show up as an O(1) error.
    assert err < 2e-2, f"max abs diff vs float64 reference = {err}"
    print("KERNEL_OK")
</pallas_src>

<mosaic_0001>
module attributes {stable_mosaic.version = 11 : i64} {
  func.func @kernel(%arg0: i32, %arg1: memref<2x8x64xf32, #tpu.memory_space<vmem>>, %arg2: memref<2x8x64xf32, #tpu.memory_space<vmem>>, %arg3: memref<2x8x64xf32, #tpu.memory_space<vmem>>, %arg4: memref<7x64x112xf32, #tpu.memory_space<vmem>>, %arg5: memref<1x112xf32, #tpu.memory_space<vmem>>, %arg6: memref<1x8xf32, #tpu.memory_space<vmem>>, %arg7: memref<1x8xf32, #tpu.memory_space<vmem>>, %arg8: memref<112x8xf32, #tpu.memory_space<vmem>>, %arg9: memref<8x112xf32, #tpu.memory_space<vmem>>, %arg10: memref<3x112x96xf32, #tpu.memory_space<vmem>>, %arg11: memref<1x96xf32, #tpu.memory_space<vmem>>, %arg12: memref<1x8xf32, #tpu.memory_space<vmem>>, %arg13: memref<1x8xf32, #tpu.memory_space<vmem>>, %arg14: memref<96x8xf32, #tpu.memory_space<vmem>>, %arg15: memref<8x96xf32, #tpu.memory_space<vmem>>, %arg16: memref<2x6x192xf32, #tpu.memory_space<vmem>>, %arg17: memref<2x7x112xf32, #tpu.memory_space<vmem>>, %arg18: memref<2x7x112xf32, #tpu.memory_space<vmem>>) attributes {dimension_semantics = [#tpu.dimension_semantics<arbitrary>], iteration_bounds = array<i64: 1>, scalar_prefetch = 0 : i64, scratch_operands = 2 : i64, tpu.core_type = #tpu.core_type<tc>, window_params = [{pipeline_mode = #tpu.pipeline_mode<synchronous>, transform_indices = @transform_0, window_bounds = array<i64: 2, 8, 64>}, {pipeline_mode = #tpu.pipeline_mode<synchronous>, transform_indices = @transform_1, window_bounds = array<i64: 2, 8, 64>}, {pipeline_mode = #tpu.pipeline_mode<synchronous>, transform_indices = @transform_2, window_bounds = array<i64: 2, 8, 64>}, {pipeline_mode = #tpu.pipeline_mode<synchronous>, transform_indices = @transform_3, window_bounds = array<i64: 7, 64, 112>}, {pipeline_mode = #tpu.pipeline_mode<synchronous>, transform_indices = @transform_4, window_bounds = array<i64: 1, 112>}, {pipeline_mode = #tpu.pipeline_mode<synchronous>, transform_indices = @transform_5, window_bounds = array<i64: 1, 8>}, {pipeline_mode = #tpu.pipeline_mode<synchronous>, transform_indices = @transform_6, window_bounds = array<i64: 1, 8>}, {pipeline_mode = #tpu.pipeline_mode<synchronous>, transform_indices = @transform_7, window_bounds = array<i64: 112, 8>}, {pipeline_mode = #tpu.pipeline_mode<synchronous>, transform_indices = @transform_8, window_bounds = array<i64: 8, 112>}, {pipeline_mode = #tpu.pipeline_mode<synchronous>, transform_indices = @transform_9, window_bounds = array<i64: 3, 112, 96>}, {pipeline_mode = #tpu.pipeline_mode<synchronous>, transform_indices = @transform_10, window_bounds = array<i64: 1, 96>}, {pipeline_mode = #tpu.pipeline_mode<synchronous>, transform_indices = @transform_11, window_bounds = array<i64: 1, 8>}, {pipeline_mode = #tpu.pipeline_mode<synchronous>, transform_indices = @transform_12, window_bounds = array<i64: 1, 8>}, {pipeline_mode = #tpu.pipeline_mode<synchronous>, transform_indices = @transform_13, window_bounds = array<i64: 96, 8>}, {pipeline_mode = #tpu.pipeline_mode<synchronous>, transform_indices = @transform_14, window_bounds = array<i64: 8, 96>}, {pipeline_mode = #tpu.pipeline_mode<synchronous>, transform_indices = @transform_15, window_bounds = array<i64: 2, 6, 192>}]} {
    %c0 = arith.constant 0 : index
    %c0_0 = arith.constant 0 : index
    %c0_1 = arith.constant 0 : index
    %0 = vector.load %arg1[%c0, %c0_0, %c0_1] : memref<2x8x64xf32, #tpu.memory_space<vmem>>, vector<2x7x64xf32>
    %c0_2 = arith.constant 0 : index
    %c1 = arith.constant 1 : index
    %c0_3 = arith.constant 0 : index
    %1 = vector.load %arg1[%c0_2, %c1, %c0_3] : memref<2x8x64xf32, #tpu.memory_space<vmem>>, vector<2x7x64xf32>
    %c0_4 = arith.constant 0 : index
    %c0_5 = arith.constant 0 : index
    %c0_6 = arith.constant 0 : index
    %2 = vector.load %arg2[%c0_4, %c0_5, %c0_6] : memref<2x8x64xf32, #tpu.memory_space<vmem>>, vector<2x7x64xf32>
    %c0_7 = arith.constant 0 : index
    %c1_8 = arith.constant 1 : index
    %c0_9 = arith.constant 0 : index
    %3 = vector.load %arg2[%c0_7, %c1_8, %c0_9] : memref<2x8x64xf32, #tpu.memory_space<vmem>>, vector<2x7x64xf32>
    %c0_10 = arith.constant 0 : index
    %c0_11 = arith.constant 0 : index
    %c0_12 = arith.constant 0 : index
    %4 = vector.load %arg3[%c0_10, %c0_11, %c0_12] : memref<2x8x64xf32, #tpu.memory_space<vmem>>, vector<2x7x64xf32>
    %c0_13 = arith.constant 0 : index
    %c1_14 = arith.constant 1 : index
    %c0_15 = arith.constant 0 : index
    %5 = vector.load %arg3[%c0_13, %c1_14, %c0_15] : memref<2x8x64xf32, #tpu.memory_space<vmem>>, vector<2x7x64xf32>
    %c0_16 = arith.constant 0 : index
    %c0_17 = arith.constant 0 : index
    %6 = vector.load %arg5[%c0_16, %c0_17] : memref<1x112xf32, #tpu.memory_space<vmem>>, vector<1x112xf32>
    %c0_18 = arith.constant 0 : index
    %c0_19 = arith.constant 0 : index
    %c0_20 = arith.constant 0 : index
    %7 = vector.load %arg4[%c0_18, %c0_19, %c0_20] : memref<7x64x112xf32, #tpu.memory_space<vmem>>, vector<1x64x112xf32>
    %8 = vector.shape_cast %7 : vector<1x64x112xf32> to vector<64x112xf32>
    %cst = arith.constant dense<0.000000e+00> : vector<2x7x112xf32>
    %9 = tpu.matmul %0, %8, %cst {dimension_numbers = #tpu.dot_dimension_numbers<[2], [0], [0, 1], [1], [0, 0, 0, 1, 1, 1], [], []>} : vector<2x7x64xf32>, vector<64x112xf32>, vector<2x7x112xf32> -> vector<2x7x112xf32>
    %c1_21 = arith.constant 1 : index
    %c0_22 = arith.constant 0 : index
    %c0_23 = arith.constant 0 : index
    %10 = vector.load %arg4[%c1_21, %c0_22, %c0_23] : memref<7x64x112xf32, #tpu.memory_space<vmem>>, vector<1x64x112xf32>
    %11 = vector.shape_cast %10 : vector<1x64x112xf32> to vector<64x112xf32>
    %cst_24 = arith.constant dense<0.000000e+00> : vector<2x7x112xf32>
    %12 = tpu.matmul %1, %11, %cst_24 {dimension_numbers = #tpu.dot_dimension_numbers<[2], [0], [0, 1], [1], [0, 0, 0, 1, 1, 1], [], []>} : vector<2x7x64xf32>, vector<64x112xf32>, vector<2x7x112xf32> -> vector<2x7x112xf32>
    %13 = arith.addf %9, %12 : vector<2x7x112xf32>
    %c4 = arith.constant 4 : index
    %c0_25 = arith.constant 0 : index
    %c0_26 = arith.constant 0 : index
    %14 = vector.load %arg4[%c4, %c0_25, %c0_26] : memref<7x64x112xf32, #tpu.memory_space<vmem>>, vector<1x64x112xf32>
    %15 = vector.shape_cast %14 : vector<1x64x112xf32> to vector<64x112xf32>
    %cst_27 = arith.constant dense<0.000000e+00> : vector<2x7x112xf32>
    %16 = tpu.matmul %2, %15, %cst_27 {dimension_numbers = #tpu.dot_dimension_numbers<[2], [0], [0, 1], [1], [0, 0, 0, 1, 1, 1], [], []>} : vector<2x7x64xf32>, vector<64x112xf32>, vector<2x7x112xf32> -> vector<2x7x112xf32>
    %17 = arith.addf %13, %16 : vector<2x7x112xf32>
    %c5 = arith.constant 5 : index
    %c0_28 = arith.constant 0 : index
    %c0_29 = arith.constant 0 : index
    %18 = vector.load %arg4[%c5, %c0_28, %c0_29] : memref<7x64x112xf32, #tpu.memory_space<vmem>>, vector<1x64x112xf32>
    %19 = vector.shape_cast %18 : vector<1x64x112xf32> to vector<64x112xf32>
    %cst_30 = arith.constant dense<0.000000e+00> : vector<2x7x112xf32>
    %20 = tpu.matmul %4, %19, %cst_30 {dimension_numbers = #tpu.dot_dimension_numbers<[2], [0], [0, 1], [1], [0, 0, 0, 1, 1, 1], [], []>} : vector<2x7x64xf32>, vector<64x112xf32>, vector<2x7x112xf32> -> vector<2x7x112xf32>
    %21 = arith.addf %17, %20 : vector<2x7x112xf32>
    %c6 = arith.constant 6 : index
    %c0_31 = arith.constant 0 : index
    %c0_32 = arith.constant 0 : index
    %22 = vector.load %arg4[%c6, %c0_31, %c0_32] : memref<7x64x112xf32, #tpu.memory_space<vmem>>, vector<1x64x112xf32>
    %23 = vector.shape_cast %22 : vector<1x64x112xf32> to vector<64x112xf32>
    %cst_33 = arith.constant dense<0.000000e+00> : vector<2x7x112xf32>
    %24 = tpu.matmul %3, %23, %cst_33 {dimension_numbers = #tpu.dot_dimension_numbers<[2], [0], [0, 1], [1], [0, 0, 0, 1, 1, 1], [], []>} : vector<2x7x64xf32>, vector<64x112xf32>, vector<2x7x112xf32> -> vector<2x7x112xf32>
    %25 = arith.addf %21, %24 : vector<2x7x112xf32>
    %26 = vector.shape_cast %6 : vector<1x112xf32> to vector<1x1x112xf32>
    %27 = vector.broadcast %26 : vector<1x1x112xf32> to vector<2x7x112xf32>
    %28 = arith.addf %25, %27 : vector<2x7x112xf32>
    %c2 = arith.constant 2 : index
    %c0_34 = arith.constant 0 : index
    %c0_35 = arith.constant 0 : index
    %29 = vector.load %arg4[%c2, %c0_34, %c0_35] : memref<7x64x112xf32, #tpu.memory_space<vmem>>, vector<1x64x112xf32>
    %30 = vector.shape_cast %29 : vector<1x64x112xf32> to vector<64x112xf32>
    %cst_36 = arith.constant dense<0.000000e+00> : vector<2x7x112xf32>
    %31 = tpu.matmul %0, %30, %cst_36 {dimension_numbers = #tpu.dot_dimension_numbers<[2], [0], [0, 1], [1], [0, 0, 0, 1, 1, 1], [], []>} : vector<2x7x64xf32>, vector<64x112xf32>, vector<2x7x112xf32> -> vector<2x7x112xf32>
    %c3 = arith.constant 3 : index
    %c0_37 = arith.constant 0 : index
    %c0_38 = arith.constant 0 : index
    %32 = vector.load %arg4[%c3, %c0_37, %c0_38] : memref<7x64x112xf32, #tpu.memory_space<vmem>>, vector<1x64x112xf32>
    %33 = vector.shape_cast %32 : vector<1x64x112xf32> to vector<64x112xf32>
    %cst_39 = arith.constant dense<0.000000e+00> : vector<2x7x112xf32>
    %34 = tpu.matmul %1, %33, %cst_39 {dimension_numbers = #tpu.dot_dimension_numbers<[2], [0], [0, 1], [1], [0, 0, 0, 1, 1, 1], [], []>} : vector<2x7x64xf32>, vector<64x112xf32>, vector<2x7x112xf32> -> vector<2x7x112xf32>
    %35 = arith.addf %31, %34 : vector<2x7x112xf32>
    %c4_40 = arith.constant 4 : index
    %c0_41 = arith.constant 0 : index
    %c0_42 = arith.constant 0 : index
    %36 = vector.load %arg4[%c4_40, %c0_41, %c0_42] : memref<7x64x112xf32, #tpu.memory_space<vmem>>, vector<1x64x112xf32>
    %37 = vector.shape_cast %36 : vector<1x64x112xf32> to vector<64x112xf32>
    %cst_43 = arith.constant dense<0.000000e+00> : vector<2x7x112xf32>
    %38 = tpu.matmul %4, %37, %cst_43 {dimension_numbers = #tpu.dot_dimension_numbers<[2], [0], [0, 1], [1], [0, 0, 0, 1, 1, 1], [], []>} : vector<2x7x64xf32>, vector<64x112xf32>, vector<2x7x112xf32> -> vector<2x7x112xf32>
    %39 = arith.addf %35, %38 : vector<2x7x112xf32>
    %c5_44 = arith.constant 5 : index
    %c0_45 = arith.constant 0 : index
    %c0_46 = arith.constant 0 : index
    %40 = vector.load %arg4[%c5_44, %c0_45, %c0_46] : memref<7x64x112xf32, #tpu.memory_space<vmem>>, vector<1x64x112xf32>
    %41 = vector.shape_cast %40 : vector<1x64x112xf32> to vector<64x112xf32>
    %cst_47 = arith.constant dense<0.000000e+00> : vector<2x7x112xf32>
    %42 = tpu.matmul %3, %41, %cst_47 {dimension_numbers = #tpu.dot_dimension_numbers<[2], [0], [0, 1], [1], [0, 0, 0, 1, 1, 1], [], []>} : vector<2x7x64xf32>, vector<64x112xf32>, vector<2x7x112xf32> -> vector<2x7x112xf32>
    %43 = arith.addf %39, %42 : vector<2x7x112xf32>
    %c6_48 = arith.constant 6 : index
    %c0_49 = arith.constant 0 : index
    %c0_50 = arith.constant 0 : index
    %44 = vector.load %arg4[%c6_48, %c0_49, %c0_50] : memref<7x64x112xf32, #tpu.memory_space<vmem>>, vector<1x64x112xf32>
    %45 = vector.shape_cast %44 : vector<1x64x112xf32> to vector<64x112xf32>
    %cst_51 = arith.constant dense<0.000000e+00> : vector<2x7x112xf32>
    %46 = tpu.matmul %5, %45, %cst_51 {dimension_numbers = #tpu.dot_dimension_numbers<[2], [0], [0, 1], [1], [0, 0, 0, 1, 1, 1], [], []>} : vector<2x7x64xf32>, vector<64x112xf32>, vector<2x7x112xf32> -> vector<2x7x112xf32>
    %47 = arith.addf %43, %46 : vector<2x7x112xf32>
    %48 = vector.shape_cast %6 : vector<1x112xf32> to vector<1x1x112xf32>
    %49 = vector.broadcast %48 : vector<1x1x112xf32> to vector<2x7x112xf32>
    %50 = arith.addf %47, %49 : vector<2x7x112xf32>
    %c0_52 = arith.constant 0 : index
    %c0_53 = arith.constant 0 : index
    %51 = vector.load %arg8[%c0_52, %c0_53] : memref<112x8xf32, #tpu.memory_space<vmem>>, vector<112x8xf32>
    %c0_54 = arith.constant 0 : index
    %c0_55 = arith.constant 0 : index
    %52 = vector.load %arg9[%c0_54, %c0_55] : memref<8x112xf32, #tpu.memory_space<vmem>>, vector<8x112xf32>
    %cst_56 = arith.constant dense<0.000000e+00> : vector<112xf32>
    %53 = vector.multi_reduction <add>, %28, %cst_56 [0, 1] : vector<2x7x112xf32> to vector<112xf32>
    %54 = vector.shape_cast %53 : vector<112xf32> to vector<1x1x112xf32>
    %55 = vector.shape_cast %54 : vector<1x1x112xf32> to vector<1x112xf32>
    %cst_57 = arith.constant dense<0.000000e+00> : vector<112xf32>
    %56 = vector.multi_reduction <add>, %50, %cst_57 [0, 1] : vector<2x7x112xf32> to vector<112xf32>
    %57 = vector.shape_cast %56 : vector<112xf32> to vector<1x1x112xf32>
    %58 = vector.shape_cast %57 : vector<1x1x112xf32> to vector<1x112xf32>
    %59 = arith.addf %55, %58 : vector<1x112xf32>
    %cst_58 = arith.constant dense<0.000000e+00> : vector<1x8xf32>
    %60 = tpu.matmul %59, %51, %cst_58 {dimension_numbers = #tpu.dot_dimension_numbers<[1], [0], [0], [1], [0, 0, 1, 1], [], []>} : vector<1x112xf32>, vector<112x8xf32>, vector<1x8xf32> -> vector<1x8xf32>
    %cst_59 = arith.constant 0.00255102036 : f32
    %61 = vector.broadcast %cst_59 : f32 to vector<1x8xf32>
    %62 = arith.mulf %60, %61 : vector<1x8xf32>
    %cst_60 = arith.constant dense<0.000000e+00> : vector<1x112xf32>
    %63 = tpu.matmul %62, %52, %cst_60 {dimension_numbers = #tpu.dot_dimension_numbers<[1], [0], [0], [1], [0, 0, 1, 1], [], []>} : vector<1x8xf32>, vector<8x112xf32>, vector<1x112xf32> -> vector<1x112xf32>
    %64 = vector.shape_cast %63 : vector<1x112xf32> to vector<1x1x112xf32>
    %65 = vector.broadcast %64 : vector<1x1x112xf32> to vector<2x7x112xf32>
    %66 = arith.subf %28, %65 : vector<2x7x112xf32>
    %67 = vector.shape_cast %63 : vector<1x112xf32> to vector<1x1x112xf32>
    %68 = vector.broadcast %67 : vector<1x1x112xf32> to vector<2x7x112xf32>
    %69 = arith.subf %50, %68 : vector<2x7x112xf32>
    %70 = arith.mulf %66, %66 : vector<2x7x112xf32>
    %cst_61 = arith.constant dense<0.000000e+00> : vector<112xf32>
    %71 = vector.multi_reduction <add>, %70, %cst_61 [0, 1] : vector<2x7x112xf32> to vector<112xf32>
    %72 = vector.shape_cast %71 : vector<112xf32> to vector<1x1x112xf32>
    %73 = vector.shape_cast %72 : vector<1x1x112xf32> to vector<1x112xf32>
    %74 = arith.mulf %69, %69 : vector<2x7x112xf32>
    %cst_62 = arith.constant dense<0.000000e+00> : vector<112xf32>
    %75 = vector.multi_reduction <add>, %74, %cst_62 [0, 1] : vector<2x7x112xf32> to vector<112xf32>
    %76 = vector.shape_cast %75 : vector<112xf32> to vector<1x1x112xf32>
    %77 = vector.shape_cast %76 : vector<1x1x112xf32> to vector<1x112xf32>
    %78 = arith.addf %73, %77 : vector<1x112xf32>
    %cst_63 = arith.constant dense<0.000000e+00> : vector<1x8xf32>
    %79 = tpu.matmul %78, %51, %cst_63 {dimension_numbers = #tpu.dot_dimension_numbers<[1], [0], [0], [1], [0, 0, 1, 1], [], []>} : vector<1x112xf32>, vector<112x8xf32>, vector<1x8xf32> -> vector<1x8xf32>
    %cst_64 = arith.constant 0.00255102036 : f32
    %80 = vector.broadcast %cst_64 : f32 to vector<1x8xf32>
    %81 = arith.mulf %79, %80 : vector<1x8xf32>
    %c0_65 = arith.constant 0 : index
    %c0_66 = arith.constant 0 : index
    %82 = vector.load %arg6[%c0_65, %c0_66] : memref<1x8xf32, #tpu.memory_space<vmem>>, vector<1x8xf32>
    %cst_67 = arith.constant 9.99999974E-6 : f32
    %83 = vector.broadcast %cst_67 : f32 to vector<1x8xf32>
    %84 = arith.addf %81, %83 : vector<1x8xf32>
    %85 = math.rsqrt %84 : vector<1x8xf32>
    %86 = arith.mulf %82, %85 : vector<1x8xf32>
    %c0_68 = arith.constant 0 : index
    %c0_69 = arith.constant 0 : index
    %87 = vector.load %arg7[%c0_68, %c0_69] : memref<1x8xf32, #tpu.memory_space<vmem>>, vector<1x8xf32>
    %88 = arith.mulf %62, %86 : vector<1x8xf32>
    %89 = arith.subf %87, %88 : vector<1x8xf32>
    %cst_70 = arith.constant dense<0.000000e+00> : vector<1x112xf32>
    %90 = tpu.matmul %86, %52, %cst_70 {dimension_numbers = #tpu.dot_dimension_numbers<[1], [0], [0], [1], [0, 0, 1, 1], [], []>} : vector<1x8xf32>, vector<8x112xf32>, vector<1x112xf32> -> vector<1x112xf32>
    %cst_71 = arith.constant dense<0.000000e+00> : vector<1x112xf32>
    %91 = tpu.matmul %89, %52, %cst_71 {dimension_numbers = #tpu.dot_dimension_numbers<[1], [0], [0], [1], [0, 0, 1, 1], [], []>} : vector<1x8xf32>, vector<8x112xf32>, vector<1x112xf32> -> vector<1x112xf32>
    %92 = vector.shape_cast %90 : vector<1x112xf32> to vector<1x1x112xf32>
    %93 = vector.broadcast %92 : vector<1x1x112xf32> to vector<2x7x112xf32>
    %94 = arith.mulf %28, %93 : vector<2x7x112xf32>
    %95 = vector.shape_cast %91 : vector<1x112xf32> to vector<1x1x112xf32>
    %96 = vector.broadcast %95 : vector<1x1x112xf32> to vector<2x7x112xf32>
    %97 = arith.addf %94, %96 : vector<2x7x112xf32>
    %cst_72 = arith.constant 0.000000e+00 : f32
    %98 = vector.broadcast %cst_72 : f32 to vector<2x7x112xf32>
    %99 = arith.maximumf %97, %98 : vector<2x7x112xf32>
    %100 = vector.shape_cast %90 : vector<1x112xf32> to vector<1x1x112xf32>
    %101 = vector.broadcast %100 : vector<1x1x112xf32> to vector<2x7x112xf32>
    %102 = arith.mulf %50, %101 : vector<2x7x112xf32>
    %103 = vector.shape_cast %91 : vector<1x112xf32> to vector<1x1x112xf32>
    %104 = vector.broadcast %103 : vector<1x1x112xf32> to vector<2x7x112xf32>
    %105 = arith.addf %102, %104 : vector<2x7x112xf32>
    %cst_73 = arith.constant 0.000000e+00 : f32
    %106 = vector.broadcast %cst_73 : f32 to vector<2x7x112xf32>
    %107 = arith.maximumf %105, %106 : vector<2x7x112xf32>
    %c0_74 = arith.constant 0 : index
    %c0_75 = arith.constant 0 : index
    %c0_76 = arith.constant 0 : index
    %108 = vector.load %arg17[%c0_74, %c0_75, %c0_76] : memref<2x7x112xf32, #tpu.memory_space<vmem>>, vector<2x7x112xf32>
    tpu.vector_store %arg17[%c0_74, %c0_75, %c0_76], %99 {strides = array<i32>} : memref<2x7x112xf32, #tpu.memory_space<vmem>>, vector<2x7x112xf32>,
    %c0_77 = arith.constant 0 : index
    %c0_78 = arith.constant 0 : index
    %c0_79 = arith.constant 0 : index
    %109 = vector.load %arg18[%c0_77, %c0_78, %c0_79] : memref<2x7x112xf32, #tpu.memory_space<vmem>>, vector<2x7x112xf32>
    tpu.vector_store %arg18[%c0_77, %c0_78, %c0_79], %107 {strides = array<i32>} : memref<2x7x112xf32, #tpu.memory_space<vmem>>, vector<2x7x112xf32>,
    %c0_80 = arith.constant 0 : index
    %c0_81 = arith.constant 0 : index
    %c0_82 = arith.constant 0 : index
    %110 = vector.load %arg17[%c0_80, %c0_81, %c0_82] : memref<2x7x112xf32, #tpu.memory_space<vmem>>, vector<2x6x112xf32>
    %c0_83 = arith.constant 0 : index
    %c1_84 = arith.constant 1 : index
    %c0_85 = arith.constant 0 : index
    %111 = vector.load %arg17[%c0_83, %c1_84, %c0_85] : memref<2x7x112xf32, #tpu.memory_space<vmem>>, vector<2x6x112xf32>
    %c0_86 = arith.constant 0 : index
    %c0_87 = arith.constant 0 : index
    %c0_88 = arith.constant 0 : index
    %112 = vector.load %arg18[%c0_86, %c0_87, %c0_88] : memref<2x7x112xf32, #tpu.memory_space<vmem>>, vector<2x6x112xf32>
    %c0_89 = arith.constant 0 : index
    %c1_90 = arith.constant 1 : index
    %c0_91 = arith.constant 0 : index
    %113 = vector.load %arg18[%c0_89, %c1_90, %c0_91] : memref<2x7x112xf32, #tpu.memory_space<vmem>>, vector<2x6x112xf32>
    %c0_92 = arith.constant 0 : index
    %c0_93 = arith.constant 0 : index
    %114 = vector.load %arg11[%c0_92, %c0_93] : memref<1x96xf32, #tpu.memory_space<vmem>>, vector<1x96xf32>
    %c0_94 = arith.constant 0 : index
    %c0_95 = arith.constant 0 : index
    %c0_96 = arith.constant 0 : index
    %115 = vector.load %arg10[%c0_94, %c0_95, %c0_96] : memref<3x112x96xf32, #tpu.memory_space<vmem>>, vector<1x112x96xf32>
    %116 = vector.shape_cast %115 : vector<1x112x96xf32> to vector<112x96xf32>
    %cst_97 = arith.constant dense<0.000000e+00> : vector<2x6x96xf32>
    %117 = tpu.matmul %110, %116, %cst_97 {dimension_numbers = #tpu.dot_dimension_numbers<[2], [0], [0, 1], [1], [0, 0, 0, 1, 1, 1], [], []>} : vector<2x6x112xf32>, vector<112x96xf32>, vector<2x6x96xf32> -> vector<2x6x96xf32>
    %c1_98 = arith.constant 1 : index
    %c0_99 = arith.constant 0 : index
    %c0_100 = arith.constant 0 : index
    %118 = vector.load %arg10[%c1_98, %c0_99, %c0_100] : memref<3x112x96xf32, #tpu.memory_space<vmem>>, vector<1x112x96xf32>
    %119 = vector.shape_cast %118 : vector<1x112x96xf32> to vector<112x96xf32>
    %cst_101 = arith.constant dense<0.000000e+00> : vector<2x6x96xf32>
    %120 = tpu.matmul %112, %119, %cst_101 {dimension_numbers = #tpu.dot_dimension_numbers<[2], [0], [0, 1], [1], [0, 0, 0, 1, 1, 1], [], []>} : vector<2x6x112xf32>, vector<112x96xf32>, vector<2x6x96xf32> -> vector<2x6x96xf32>
    %121 = arith.addf %117, %120 : vector<2x6x96xf32>
    %c2_102 = arith.constant 2 : index
    %c0_103 = arith.constant 0 : index
    %c0_104 = arith.constant 0 : index
    %122 = vector.load %arg10[%c2_102, %c0_103, %c0_104] : memref<3x112x96xf32, #tpu.memory_space<vmem>>, vector<1x112x96xf32>
    %123 = vector.shape_cast %122 : vector<1x112x96xf32> to vector<112x96xf32>
    %cst_105 = arith.constant dense<0.000000e+00> : vector<2x6x96xf32>
    %124 = tpu.matmul %111, %123, %cst_105 {dimension_numbers = #tpu.dot_dimension_numbers<[2], [0], [0, 1], [1], [0, 0, 0, 1, 1, 1], [], []>} : vector<2x6x112xf32>, vector<112x96xf32>, vector<2x6x96xf32> -> vector<2x6x96xf32>
    %125 = arith.addf %121, %124 : vector<2x6x96xf32>
    %126 = vector.shape_cast %114 : vector<1x96xf32> to vector<1x1x96xf32>
    %127 = vector.broadcast %126 : vector<1x1x96xf32> to vector<2x6x96xf32>
    %128 = arith.addf %125, %127 : vector<2x6x96xf32>
    %c0_106 = arith.constant 0 : index
    %c0_107 = arith.constant 0 : index
    %c0_108 = arith.constant 0 : index
    %129 = vector.load %arg10[%c0_106, %c0_107, %c0_108] : memref<3x112x96xf32, #tpu.memory_space<vmem>>, vector<1x112x96xf32>
    %130 = vector.shape_cast %129 : vector<1x112x96xf32> to vector<112x96xf32>
    %cst_109 = arith.constant dense<0.000000e+00> : vector<2x6x96xf32>
    %131 = tpu.matmul %112, %130, %cst_109 {dimension_numbers = #tpu.dot_dimension_numbers<[2], [0], [0, 1], [1], [0, 0, 0, 1, 1, 1], [], []>} : vector<2x6x112xf32>, vector<112x96xf32>, vector<2x6x96xf32> -> vector<2x6x96xf32>
    %c1_110 = arith.constant 1 : index
    %c0_111 = arith.constant 0 : index
    %c0_112 = arith.constant 0 : index
    %132 = vector.load %arg10[%c1_110, %c0_111, %c0_112] : memref<3x112x96xf32, #tpu.memory_space<vmem>>, vector<1x112x96xf32>
    %133 = vector.shape_cast %132 : vector<1x112x96xf32> to vector<112x96xf32>
    %cst_113 = arith.constant dense<0.000000e+00> : vector<2x6x96xf32>
    %134 = tpu.matmul %111, %133, %cst_113 {dimension_numbers = #tpu.dot_dimension_numbers<[2], [0], [0, 1], [1], [0, 0, 0, 1, 1, 1], [], []>} : vector<2x6x112xf32>, vector<112x96xf32>, vector<2x6x96xf32> -> vector<2x6x96xf32>
    %135 = arith.addf %131, %134 : vector<2x6x96xf32>
    %c2_114 = arith.constant 2 : index
    %c0_115 = arith.constant 0 : index
    %c0_116 = arith.constant 0 : index
    %136 = vector.load %arg10[%c2_114, %c0_115, %c0_116] : memref<3x112x96xf32, #tpu.memory_space<vmem>>, vector<1x112x96xf32>
    %137 = vector.shape_cast %136 : vector<1x112x96xf32> to vector<112x96xf32>
    %cst_117 = arith.constant dense<0.000000e+00> : vector<2x6x96xf32>
    %138 = tpu.matmul %113, %137, %cst_117 {dimension_numbers = #tpu.dot_dimension_numbers<[2], [0], [0, 1], [1], [0, 0, 0, 1, 1, 1], [], []>} : vector<2x6x112xf32>, vector<112x96xf32>, vector<2x6x96xf32> -> vector<2x6x96xf32>
    %139 = arith.addf %135, %138 : vector<2x6x96xf32>
    %140 = vector.shape_cast %114 : vector<1x96xf32> to vector<1x1x96xf32>
    %141 = vector.broadcast %140 : vector<1x1x96xf32> to vector<2x6x96xf32>
    %142 = arith.addf %139, %141 : vector<2x6x96xf32>
    %c0_118 = arith.constant 0 : index
    %c0_119 = arith.constant 0 : index
    %143 = vector.load %arg14[%c0_118, %c0_119] : memref<96x8xf32, #tpu.memory_space<vmem>>, vector<96x8xf32>
    %c0_120 = arith.constant 0 : index
    %c0_121 = arith.constant 0 : index
    %144 = vector.load %arg15[%c0_120, %c0_121] : memref<8x96xf32, #tpu.memory_space<vmem>>, vector<8x96xf32>
    %cst_122 = arith.constant dense<0.000000e+00> : vector<96xf32>
    %145 = vector.multi_reduction <add>, %128, %cst_122 [0, 1] : vector<2x6x96xf32> to vector<96xf32>
    %146 = vector.shape_cast %145 : vector<96xf32> to vector<1x1x96xf32>
    %147 = vector.shape_cast %146 : vector<1x1x96xf32> to vector<1x96xf32>
    %cst_123 = arith.constant dense<0.000000e+00> : vector<96xf32>
    %148 = vector.multi_reduction <add>, %142, %cst_123 [0, 1] : vector<2x6x96xf32> to vector<96xf32>
    %149 = vector.shape_cast %148 : vector<96xf32> to vector<1x1x96xf32>
    %150 = vector.shape_cast %149 : vector<1x1x96xf32> to vector<1x96xf32>
    %151 = arith.addf %147, %150 : vector<1x96xf32>
    %cst_124 = arith.constant dense<0.000000e+00> : vector<1x8xf32>
    %152 = tpu.matmul %151, %143, %cst_124 {dimension_numbers = #tpu.dot_dimension_numbers<[1], [0], [0], [1], [0, 0, 1, 1], [], []>} : vector<1x96xf32>, vector<96x8xf32>, vector<1x8xf32> -> vector<1x8xf32>
    %cst_125 = arith.constant 0.00347222225 : f32
    %153 = vector.broadcast %cst_125 : f32 to vector<1x8xf32>
    %154 = arith.mulf %152, %153 : vector<1x8xf32>
    %cst_126 = arith.constant dense<0.000000e+00> : vector<1x96xf32>
    %155 = tpu.matmul %154, %144, %cst_126 {dimension_numbers = #tpu.dot_dimension_numbers<[1], [0], [0], [1], [0, 0, 1, 1], [], []>} : vector<1x8xf32>, vector<8x96xf32>, vector<1x96xf32> -> vector<1x96xf32>
    %156 = vector.shape_cast %155 : vector<1x96xf32> to vector<1x1x96xf32>
    %157 = vector.broadcast %156 : vector<1x1x96xf32> to vector<2x6x96xf32>
    %158 = arith.subf %128, %157 : vector<2x6x96xf32>
    %159 = vector.shape_cast %155 : vector<1x96xf32> to vector<1x1x96xf32>
    %160 = vector.broadcast %159 : vector<1x1x96xf32> to vector<2x6x96xf32>
    %161 = arith.subf %142, %160 : vector<2x6x96xf32>
    %162 = arith.mulf %158, %158 : vector<2x6x96xf32>
    %cst_127 = arith.constant dense<0.000000e+00> : vector<96xf32>
    %163 = vector.multi_reduction <add>, %162, %cst_127 [0, 1] : vector<2x6x96xf32> to vector<96xf32>
    %164 = vector.shape_cast %163 : vector<96xf32> to vector<1x1x96xf32>
    %165 = vector.shape_cast %164 : vector<1x1x96xf32> to vector<1x96xf32>
    %166 = arith.mulf %161, %161 : vector<2x6x96xf32>
    %cst_128 = arith.constant dense<0.000000e+00> : vector<96xf32>
    %167 = vector.multi_reduction <add>, %166, %cst_128 [0, 1] : vector<2x6x96xf32> to vector<96xf32>
    %168 = vector.shape_cast %167 : vector<96xf32> to vector<1x1x96xf32>
    %169 = vector.shape_cast %168 : vector<1x1x96xf32> to vector<1x96xf32>
    %170 = arith.addf %165, %169 : vector<1x96xf32>
    %cst_129 = arith.constant dense<0.000000e+00> : vector<1x8xf32>
    %171 = tpu.matmul %170, %143, %cst_129 {dimension_numbers = #tpu.dot_dimension_numbers<[1], [0], [0], [1], [0, 0, 1, 1], [], []>} : vector<1x96xf32>, vector<96x8xf32>, vector<1x8xf32> -> vector<1x8xf32>
    %cst_130 = arith.constant 0.00347222225 : f32
    %172 = vector.broadcast %cst_130 : f32 to vector<1x8xf32>
    %173 = arith.mulf %171, %172 : vector<1x8xf32>
    %c0_131 = arith.constant 0 : index
    %c0_132 = arith.constant 0 : index
    %174 = vector.load %arg12[%c0_131, %c0_132] : memref<1x8xf32, #tpu.memory_space<vmem>>, vector<1x8xf32>
    %cst_133 = arith.constant 9.99999974E-6 : f32
    %175 = vector.broadcast %cst_133 : f32 to vector<1x8xf32>
    %176 = arith.addf %173, %175 : vector<1x8xf32>
    %177 = math.rsqrt %176 : vector<1x8xf32>
    %178 = arith.mulf %174, %177 : vector<1x8xf32>
    %c0_134 = arith.constant 0 : index
    %c0_135 = arith.constant 0 : index
    %179 = vector.load %arg13[%c0_134, %c0_135] : memref<1x8xf32, #tpu.memory_space<vmem>>, vector<1x8xf32>
    %180 = arith.mulf %154, %178 : vector<1x8xf32>
    %181 = arith.subf %179, %180 : vector<1x8xf32>
    %cst_136 = arith.constant dense<0.000000e+00> : vector<1x96xf32>
    %182 = tpu.matmul %178, %144, %cst_136 {dimension_numbers = #tpu.dot_dimension_numbers<[1], [0], [0], [1], [0, 0, 1, 1], [], []>} : vector<1x8xf32>, vector<8x96xf32>, vector<1x96xf32> -> vector<1x96xf32>
    %cst_137 = arith.constant dense<0.000000e+00> : vector<1x96xf32>
    %183 = tpu.matmul %181, %144, %cst_137 {dimension_numbers = #tpu.dot_dimension_numbers<[1], [0], [0], [1], [0, 0, 1, 1], [], []>} : vector<1x8xf32>, vector<8x96xf32>, vector<1x96xf32> -> vector<1x96xf32>
    %184 = vector.shape_cast %182 : vector<1x96xf32> to vector<1x1x96xf32>
    %185 = vector.broadcast %184 : vector<1x1x96xf32> to vector<2x6x96xf32>
    %186 = arith.mulf %128, %185 : vector<2x6x96xf32>
    %187 = vector.shape_cast %183 : vector<1x96xf32> to vector<1x1x96xf32>
    %188 = vector.broadcast %187 : vector<1x1x96xf32> to vector<2x6x96xf32>
    %189 = arith.addf %186, %188 : vector<2x6x96xf32>
    %cst_138 = arith.constant 0.000000e+00 : f32
    %190 = vector.broadcast %cst_138 : f32 to vector<2x6x96xf32>
    %191 = arith.maximumf %189, %190 : vector<2x6x96xf32>
    %192 = vector.shape_cast %182 : vector<1x96xf32> to vector<1x1x96xf32>
    %193 = vector.broadcast %192 : vector<1x1x96xf32> to vector<2x6x96xf32>
    %194 = arith.mulf %142, %193 : vector<2x6x96xf32>
    %195 = vector.shape_cast %183 : vector<1x96xf32> to vector<1x1x96xf32>
    %196 = vector.broadcast %195 : vector<1x1x96xf32> to vector<2x6x96xf32>
    %197 = arith.addf %194, %196 : vector<2x6x96xf32>
    %cst_139 = arith.constant 0.000000e+00 : f32
    %198 = vector.broadcast %cst_139 : f32 to vector<2x6x96xf32>
    %199 = arith.maximumf %197, %198 : vector<2x6x96xf32>
    %200 = tpu.concatenate %191, %199 in 2 : vector<2x6x96xf32>, vector<2x6x96xf32> -> vector<2x6x192xf32>
    %c0_140 = arith.constant 0 : index
    %c0_141 = arith.constant 0 : index
    %c0_142 = arith.constant 0 : index
    %201 = vector.load %arg16[%c0_140, %c0_141, %c0_142] : memref<2x6x192xf32, #tpu.memory_space<vmem>>, vector<2x6x192xf32>
    tpu.vector_store %arg16[%c0_140, %c0_141, %c0_142], %200 {strides = array<i32>} : memref<2x6x192xf32, #tpu.memory_space<vmem>>, vector<2x6x192xf32>,
    return
  }
  func.func @transform_0(%arg0: i32) -> (i32, i32, i32) {
    %c0_i32 = arith.constant 0 : i32
    %c0_i32_0 = arith.constant 0 : i32
    %c0_i32_1 = arith.constant 0 : i32
    %c0_i32_2 = arith.constant 0 : i32
    return %c0_i32, %c0_i32_0, %c0_i32_1 : i32, i32, i32
  }
  func.func @transform_1(%arg0: i32) -> (i32, i32, i32) {
    %c0_i32 = arith.constant 0 : i32
    %c0_i32_0 = arith.constant 0 : i32
    %c0_i32_1 = arith.constant 0 : i32
    %c0_i32_2 = arith.constant 0 : i32
    return %c0_i32, %c0_i32_0, %c0_i32_1 : i32, i32, i32
  }
  func.func @transform_2(%arg0: i32) -> (i32, i32, i32) {
    %c0_i32 = arith.constant 0 : i32
    %c0_i32_0 = arith.constant 0 : i32
    %c0_i32_1 = arith.constant 0 : i32
    %c0_i32_2 = arith.constant 0 : i32
    return %c0_i32, %c0_i32_0, %c0_i32_1 : i32, i32, i32
  }
  func.func @transform_3(%arg0: i32) -> (i32, i32, i32) {
    %c0_i32 = arith.constant 0 : i32
    %c0_i32_0 = arith.constant 0 : i32
    %c0_i32_1 = arith.constant 0 : i32
    %c0_i32_2 = arith.constant 0 : i32
    return %c0_i32, %c0_i32_0, %c0_i32_1 : i32, i32, i32
  }
  func.func @transform_4(%arg0: i32) -> (i32, i32) {
    %c0_i32 = arith.constant 0 : i32
    %c0_i32_0 = arith.constant 0 : i32
    %c0_i32_1 = arith.constant 0 : i32
    return %c0_i32, %c0_i32_0 : i32, i32
  }
  func.func @transform_5(%arg0: i32) -> (i32, i32) {
    %c0_i32 = arith.constant 0 : i32
    %c0_i32_0 = arith.constant 0 : i32
    %c0_i32_1 = arith.constant 0 : i32
    return %c0_i32, %c0_i32_0 : i32, i32
  }
  func.func @transform_6(%arg0: i32) -> (i32, i32) {
    %c0_i32 = arith.constant 0 : i32
    %c0_i32_0 = arith.constant 0 : i32
    %c0_i32_1 = arith.constant 0 : i32
    return %c0_i32, %c0_i32_0 : i32, i32
  }
  func.func @transform_7(%arg0: i32) -> (i32, i32) {
    %c0_i32 = arith.constant 0 : i32
    %c0_i32_0 = arith.constant 0 : i32
    %c0_i32_1 = arith.constant 0 : i32
    return %c0_i32, %c0_i32_0 : i32, i32
  }
  func.func @transform_8(%arg0: i32) -> (i32, i32) {
    %c0_i32 = arith.constant 0 : i32
    %c0_i32_0 = arith.constant 0 : i32
    %c0_i32_1 = arith.constant 0 : i32
    return %c0_i32, %c0_i32_0 : i32, i32
  }
  func.func @transform_9(%arg0: i32) -> (i32, i32, i32) {
    %c0_i32 = arith.constant 0 : i32
    %c0_i32_0 = arith.constant 0 : i32
    %c0_i32_1 = arith.constant 0 : i32
    %c0_i32_2 = arith.constant 0 : i32
    return %c0_i32, %c0_i32_0, %c0_i32_1 : i32, i32, i32
  }
  func.func @transform_10(%arg0: i32) -> (i32, i32) {
    %c0_i32 = arith.constant 0 : i32
    %c0_i32_0 = arith.constant 0 : i32
    %c0_i32_1 = arith.constant 0 : i32
    return %c0_i32, %c0_i32_0 : i32, i32
  }
  func.func @transform_11(%arg0: i32) -> (i32, i32) {
    %c0_i32 = arith.constant 0 : i32
    %c0_i32_0 = arith.constant 0 : i32
    %c0_i32_1 = arith.constant 0 : i32
    return %c0_i32, %c0_i32_0 : i32, i32
  }
  func.func @transform_12(%arg0: i32) -> (i32, i32) {
    %c0_i32 = arith.constant 0 : i32
    %c0_i32_0 = arith.constant 0 : i32
    %c0_i32_1 = arith.constant 0 : i32
    return %c0_i32, %c0_i32_0 : i32, i32
  }
  func.func @transform_13(%arg0: i32) -> (i32, i32) {
    %c0_i32 = arith.constant 0 : i32
    %c0_i32_0 = arith.constant 0 : i32
    %c0_i32_1 = arith.constant 0 : i32
    return %c0_i32, %c0_i32_0 : i32, i32
  }
  func.func @transform_14(%arg0: i32) -> (i32, i32) {
    %c0_i32 = arith.constant 0 : i32
    %c0_i32_0 = arith.constant 0 : i32
    %c0_i32_1 = arith.constant 0 : i32
    return %c0_i32, %c0_i32_0 : i32, i32
  }
  func.func @transform_15(%arg0: i32) -> (i32, i32, i32) {
    %c0_i32 = arith.constant 0 : i32
    %c0_i32_0 = arith.constant 0 : i32
    %c0_i32_1 = arith.constant 0 : i32
    %c0_i32_2 = arith.constant 0 : i32
    return %c0_i32, %c0_i32_0, %c0_i32_1 : i32, i32, i32
  }
}

</mosaic_0001>

<llo_original>
// kernel: expand_forward.1
$region0: #{expand_forward.1}
  #allocation0 [shape = 'u32[]', space=smem, size = 0x4, offset = 0x4, fixed_abs, tag = 'smem constant byte address 0x4 - core index']
  #allocation1 [shape = 'u32[144,128]{1,0:T(1,128)}', space=vmem, size = 0x12000, scoped, tag = 'internal scratch']
  #allocation2 [shape = 'f32[2,7,112]{2,1,0:T(8,128)}', space=vmem, size = 0x2000, scoped, tag = 'scratch operand']
  #allocation3 [shape = 'f32[2,7,112]{2,1,0:T(8,128)}', space=vmem, size = 0x2000, scoped, tag = 'scratch operand']
  %s0 = inlined_call_operand.vmem [shape: f32[2,8,64], index: 0, kind: input, shape index: {}]
  %s1 = inlined_call_operand.vmem [shape: f32[2,8,64], index: 1, kind: input, shape index: {}]
  %s2 = inlined_call_operand.vmem [shape: f32[2,8,64], index: 2, kind: input, shape index: {}]
  %s3 = inlined_call_operand.vmem [shape: f32[7,64,112], index: 3, kind: input, shape index: {}]
  %s4 = inlined_call_operand.vmem [shape: f32[1,112], index: 4, kind: input, shape index: {}]
  %s5 = inlined_call_operand.vmem [shape: f32[1,8], index: 5, kind: input, shape index: {}]
  %s6 = inlined_call_operand.vmem [shape: f32[1,8], index: 6, kind: input, shape index: {}]
  %s7 = inlined_call_operand.vmem [shape: f32[112,8], index: 7, kind: input, shape index: {}]
  %s8 = inlined_call_operand.vmem [shape: f32[8,112], index: 8, kind: input, shape index: {}]
  %s9 = inlined_call_operand.vmem [shape: f32[3,112,96], index: 9, kind: input, shape index: {}]
  %s10 = inlined_call_operand.vmem [shape: f32[1,96], index: 10, kind: input, shape index: {}]
  %s11 = inlined_call_operand.vmem [shape: f32[1,8], index: 11, kind: input, shape index: {}]
  %s12 = inlined_call_operand.vmem [shape: f32[1,8], index: 12, kind: input, shape index: {}]
  %s13 = inlined_call_operand.vmem [shape: f32[96,8], index: 13, kind: input, shape index: {}]
  %s14 = inlined_call_operand.vmem [shape: f32[8,96], index: 14, kind: input, shape index: {}]
  %s15 = inlined_call_operand.vmem [shape: f32[2,6,192], index: 15, kind: output, shape index: {}]
  %s16 = sld [smem:[#allocation0]]
  $region70: #{expand_forward.1} parent=0
    _
  %s18 = ssub.s32 1, %s16
  %s19 = scalar_select 0, %s18, %s16
  // Predicated region
  $region2: #{expand_forward.1} parent=0 // pred_check
    _
  $region3: #{expand_forward.1} parent=0 // pred_check_branch
    %21 = sbr.rel (0) target = $region5
  $region4: #{expand_forward.1} parent=0 // pred_region
    _
  $region5: #{expand_forward.1} parent=0 // pred_fallthru
    _
  // Predicated region
  $region6: #{expand_forward.1} parent=0 // pred_check
    _
  $region7: #{expand_forward.1} parent=0 // pred_check_branch
    %23 = sbr.rel (0) target = $region9
  $region8: #{expand_forward.1} parent=0 // pred_region
    _
  $region9: #{expand_forward.1} parent=0 // pred_fallthru
    _
  // Predicated region
  $region10: #{expand_forward.1} parent=0 // pred_check
    _
  $region11: #{expand_forward.1} parent=0 // pred_check_branch
    %25 = sbr.rel (0) target = $region13
  $region12: #{expand_forward.1} parent=0 // pred_region
    _
  $region13: #{expand_forward.1} parent=0 // pred_fallthru
    _
  // Predicated region
  $region14: #{expand_forward.1} parent=0 // pred_check
    _
  $region15: #{expand_forward.1} parent=0 // pred_check_branch
    %27 = sbr.rel (0) target = $region17
  $region16: #{expand_forward.1} parent=0 // pred_region
    _
  $region17: #{expand_forward.1} parent=0 // pred_fallthru
    _
  // Predicated region
  $region18: #{expand_forward.1} parent=0 // pred_check
    _
  $region19: #{expand_forward.1} parent=0 // pred_check_branch
    %29 = sbr.rel (0) target = $region21
  $region20: #{expand_forward.1} parent=0 // pred_region
    _
  $region21: #{expand_forward.1} parent=0 // pred_fallthru
    _
  // Predicated region
  $region22: #{expand_forward.1} parent=0 // pred_check
    _
  $region23: #{expand_forward.1} parent=0 // pred_check_branch
    %31 = sbr.rel (0) target = $region25
  $region24: #{expand_forward.1} parent=0 // pred_region
    _
  $region25: #{expand_forward.1} parent=0 // pred_fallthru
    _
  // Predicated region
  $region26: #{expand_forward.1} parent=0 // pred_check
    _
  $region27: #{expand_forward.1} parent=0 // pred_check_branch
    %33 = sbr.rel (0) target = $region29
  $region28: #{expand_forward.1} parent=0 // pred_region
    _
  $region29: #{expand_forward.1} parent=0 // pred_fallthru
    _
  // Predicated region
  $region30: #{expand_forward.1} parent=0 // pred_check
    _
  $region31: #{expand_forward.1} parent=0 // pred_check_branch
    %35 = sbr.rel (0) target = $region33
  $region32: #{expand_forward.1} parent=0 // pred_region
    _
  $region33: #{expand_forward.1} parent=0 // pred_fallthru
    _
  // Predicated region
  $region34: #{expand_forward.1} parent=0 // pred_check
    _
  $region35: #{expand_forward.1} parent=0 // pred_check_branch
    %37 = sbr.rel (0) target = $region37
  $region36: #{expand_forward.1} parent=0 // pred_region
    _
  $region37: #{expand_forward.1} parent=0 // pred_fallthru
    _
  // Predicated region
  $region38: #{expand_forward.1} parent=0 // pred_check
    _
  $region39: #{expand_forward.1} parent=0 // pred_check_branch
    %39 = sbr.rel (0) target = $region41
  $region40: #{expand_forward.1} parent=0 // pred_region
    _
  $region41: #{expand_forward.1} parent=0 // pred_fallthru
    _
  // Predicated region
  $region42: #{expand_forward.1} parent=0 // pred_check
    _
  $region43: #{expand_forward.1} parent=0 // pred_check_branch
    %41 = sbr.rel (0) target = $region45
  $region44: #{expand_forward.1} parent=0 // pred_region
    _
  $region45: #{expand_forward.1} parent=0 // pred_fallthru
    _
  // Predicated region
  $region46: #{expand_forward.1} parent=0 // pred_check
    _
  $region47: #{expand_forward.1} parent=0 // pred_check_branch
    %43 = sbr.rel (0) target = $region49
  $region48: #{expand_forward.1} parent=0 // pred_region
    _
  $region49: #{expand_forward.1} parent=0 // pred_fallthru
    _
  // Predicated region
  $region50: #{expand_forward.1} parent=0 // pred_check
    _
  $region51: #{expand_forward.1} parent=0 // pred_check_branch
    %45 = sbr.rel (0) target = $region53
  $region52: #{expand_forward.1} parent=0 // pred_region
    _
  $region53: #{expand_forward.1} parent=0 // pred_fallthru
    _
  // Predicated region
  $region54: #{expand_forward.1} parent=0 // pred_check
    _
  $region55: #{expand_forward.1} parent=0 // pred_check_branch
    %47 = sbr.rel (0) target = $region57
  $region56: #{expand_forward.1} parent=0 // pred_region
    _
  $region57: #{expand_forward.1} parent=0 // pred_fallthru
    _
  // Predicated region
  $region58: #{expand_forward.1} parent=0 // pred_check
    _
  $region59: #{expand_forward.1} parent=0 // pred_check_branch
    %49 = sbr.rel (0) target = $region61
  $region60: #{expand_forward.1} parent=0 // pred_region
    _
  $region61: #{expand_forward.1} parent=0 // pred_fallthru
    _
  %v50 = vld [vmem:[%s0] sm:$0x7f]
  %v51 = vld [vmem:[%s0 + $0x8] sm:$0x7f]
  %v52 = vld [vmem:[%s0 + $0x1] sm:$0x7f]
  %v53 = vld [vmem:[%s0 + $0x9] sm:$0x7f]
  %v54 = vld [vmem:[%s1] sm:$0x7f]
  %v55 = vld [vmem:[%s1 + $0x8] sm:$0x7f]
  %v56 = vld [vmem:[%s1 + $0x1] sm:$0x7f]
  %v57 = vld [vmem:[%s1 + $0x9] sm:$0x7f]
  %v58 = vld [vmem:[%s2] sm:$0x7f]
  %v59 = vld [vmem:[%s2 + $0x8] sm:$0x7f]
  %v60 = vld [vmem:[%s2 + $0x1] sm:$0x7f]
  %v61 = vld [vmem:[%s2 + $0x9] sm:$0x7f]
  %v62 = vld [vmem:[%s4] sm:$0x1]
  %v63 = vld [vmem:[%s3] sm:$0xff]
  %v64 = vld [vmem:[%s3 + $0x8] sm:$0xff]
  %v65 = vld [vmem:[%s3 + $0x10] sm:$0xff]
  %v66 = vld [vmem:[%s3 + $0x18] sm:$0xff]
  %v67 = vld [vmem:[%s3 + $0x20] sm:$0xff]
  %v68 = vld [vmem:[%s3 + $0x28] sm:$0xff]
  %v69 = vld [vmem:[%s3 + $0x30] sm:$0xff]
  %v70 = vld [vmem:[%s3 + $0x38] sm:$0xff]
  %s71 = scalar_lea.vmem %s3, 64
  %v72 = vld [vmem:[%s71] sm:$0xff]
  %v73 = vld [vmem:[%s71 + $0x8] sm:$0xff]
  %v74 = vld [vmem:[%s71 + $0x10] sm:$0xff]
  %v75 = vld [vmem:[%s71 + $0x18] sm:$0xff]
  %v76 = vld [vmem:[%s71 + $0x20] sm:$0xff]
  %v77 = vld [vmem:[%s71 + $0x28] sm:$0xff]
  %v78 = vld [vmem:[%s71 + $0x30] sm:$0xff]
  %v79 = vld [vmem:[%s71 + $0x38] sm:$0xff]
  %v82 = vcombine.high %v52, %v52
  %v84 = vunpack.c.l.s4 1966171168
  %v85 = vunpack.c.0.s8 %v84
  %v86 = vlaneseq
  %v87 = vshrl.u32 %v86, 7
  %v88 = vsub.s32 %v85, %v87
  %v89 = vrot.slane %v52, %v88
  %v91 = vunpack.c.l.s4 1966171168
  %v92 = vunpack.c.0.s8 %v91
  %v93 = vlaneseq
  %v94 = vshrl.u32 %v93, 7
  %v95 = vsub.s32 %v92, %v94
  %v96 = vrot.slane %v82, %v95
  %v97 = vcombine.high %v89, %v89
  %v98 = vcombine.high %v96, %v96
  %v100 = vunpack.c.l.s4 1966171168
  %v101 = vunpack.c.0.s8 %v100
  %v102 = vlaneseq
  %v103 = vshrl.u32 %v102, 7
  %v104 = vsub.s32 %v101, %v103
  %v105 = vrot.slane %v89, %v104
  %v107 = vunpack.c.l.s4 1966171168
  %v108 = vunpack.c.0.s8 %v107
  %v109 = vlaneseq
  %v110 = vshrl.u32 %v109, 7
  %v111 = vsub.s32 %v108, %v110
  %v112 = vrot.slane %v96, %v111
  %v114 = vunpack.c.l.s4 1966171168
  %v115 = vunpack.c.0.s8 %v114
  %v116 = vlaneseq
  %v117 = vshrl.u32 %v116, 7
  %v118 = vsub.s32 %v115, %v117
  %v119 = vrot.slane %v97, %v118
  %v121 = vunpack.c.l.s4 1966171168
  %v122 = vunpack.c.0.s8 %v121
  %v123 = vlaneseq
  %v124 = vshrl.u32 %v123, 7
  %v125 = vsub.s32 %v122, %v124
  %v126 = vrot.slane %v98, %v125
  %v127 = vcombine.high %v105, %v105
  %v128 = vcombine.high %v112, %v112
  %v129 = vcombine.high %v119, %v119
  %v130 = vcombine.high %v53, %v53
  %v132 = vunpack.c.l.s4 1966171168
  %v133 = vunpack.c.0.s8 %v132
  %v134 = vlaneseq
  %v135 = vshrl.u32 %v134, 7
  %v136 = vsub.s32 %v133, %v135
  %v137 = vrot.slane %v53, %v136
  %v139 = vunpack.c.l.s4 1966171168
  %v140 = vunpack.c.0.s8 %v139
  %v141 = vlaneseq
  %v142 = vshrl.u32 %v141, 7
  %v143 = vsub.s32 %v140, %v142
  %v144 = vrot.slane %v130, %v143
  %v145 = vcombine.high %v137, %v137
  %v146 = vcombine.high %v144, %v144
  %v148 = vunpack.c.l.s4 1966171168
  %v149 = vunpack.c.0.s8 %v148
  %v150 = vlaneseq
  %v151 = vshrl.u32 %v150, 7
  %v152 = vsub.s32 %v149, %v151
  %v153 = vrot.slane %v137, %v152
  %v155 = vunpack.c.l.s4 1966171168
  %v156 = vunpack.c.0.s8 %v155
  %v157 = vlaneseq
  %v158 = vshrl.u32 %v157, 7
  %v159 = vsub.s32 %v156, %v158
  %v160 = vrot.slane %v144, %v159
  %v162 = vunpack.c.l.s4 1966171168
  %v163 = vunpack.c.0.s8 %v162
  %v164 = vlaneseq
  %v165 = vshrl.u32 %v164, 7
  %v166 = vsub.s32 %v163, %v165
  %v167 = vrot.slane %v145, %v166
  %v169 = vunpack.c.l.s4 1966171168
  %v170 = vunpack.c.0.s8 %v169
  %v171 = vlaneseq
  %v172 = vshrl.u32 %v171, 7
  %v173 = vsub.s32 %v170, %v172
  %v174 = vrot.slane %v146, %v173
  %v175 = vcombine.high %v153, %v153
  %v176 = vcombine.high %v160, %v160
  %v177 = vcombine.high %v167, %v167
  %v178 = vcombine.low %v105, %v119
  %v179 = vcombine.low %v127, %v129
  %v180 = vcombine.low %v112, %v126
  %v181 = vcombine.low %v128, %v153
  %v183 = vunpack.c.l.s4 1966171168
  %v184 = vunpack.c.0.s8 %v183
  %v185 = vlaneseq
  %v186 = vshrl.u32 %v185, 7
  %v187 = vsub.s32 %v184, %v186
  %v188 = vrot.slane %v178, %v187
  %v190 = vunpack.c.l.s4 1966171168
  %v191 = vunpack.c.0.s8 %v190
  %v192 = vlaneseq
  %v193 = vshrl.u32 %v192, 7
  %v194 = vsub.s32 %v191, %v193
  %v195 = vrot.slane %v179, %v194
  %v197 = vunpack.c.l.s4 1966171168
  %v198 = vunpack.c.0.s8 %v197
  %v199 = vlaneseq
  %v200 = vshrl.u32 %v199, 7
  %v201 = vsub.s32 %v198, %v200
  %v202 = vrot.slane %v180, %v201
  %v204 = vunpack.c.l.s4 1966171168
  %v205 = vunpack.c.0.s8 %v204
  %v206 = vlaneseq
  %v207 = vshrl.u32 %v206, 7
  %v208 = vsub.s32 %v205, %v207
  %v209 = vrot.slane %v181, %v208
  %v210 = vcombine.low %v188, %v195
  %v211 = vcombine.low %v202, %v209
  %v213 = vunpack.c.l.s4 1966171168
  %v214 = vunpack.c.0.s8 %v213
  %v215 = vlaneseq
  %v216 = vshrl.u32 %v215, 7
  %v217 = vsub.s32 %v214, %v216
  %v218 = vrot.slane %v210, %v217
  %v220 = vunpack.c.l.s4 1966171168
  %v221 = vunpack.c.0.s8 %v220
  %v222 = vlaneseq
  %v223 = vshrl.u32 %v222, 7
  %v224 = vsub.s32 %v221, %v223
  %v225 = vrot.slane %v211, %v224
  %v226 = vcombine.low %v218, %v225
  %v227 = vcombine.low %v167, %v175
  %v228 = vcombine.low %v177, %v160
  %v229 = vcombine.low %v174, %v176
  %v231 = vunpack.c.l.s4 1966171168
  %v232 = vunpack.c.0.s8 %v231
  %v233 = vlaneseq
  %v234 = vshrl.u32 %v233, 7
  %v235 = vsub.s32 %v232, %v234
  %v236 = vrot.slane %v227, %v235
  %v238 = vunpack.c.l.s4 1966171168
  %v239 = vunpack.c.0.s8 %v238
  %v240 = vlaneseq
  %v241 = vshrl.u32 %v240, 7
  %v242 = vsub.s32 %v239, %v241
  %v243 = vrot.slane %v228, %v242
  %v245 = vunpack.c.l.s4 1966171168
  %v246 = vunpack.c.0.s8 %v245
  %v247 = vlaneseq
  %v248 = vshrl.u32 %v247, 7
  %v249 = vsub.s32 %v246, %v248
  %v250 = vrot.slane %v229, %v249
  %v251 = vcombine.low %v236, %v243
  %v253 = vunpack.c.l.s4 1966171168
  %v254 = vunpack.c.0.s8 %v253
  %v255 = vlaneseq
  %v256 = vshrl.u32 %v255, 7
  %v257 = vsub.s32 %v254, %v256
  %v258 = vrot.slane %v251, %v257
  %v260 = vunpack.c.l.s4 1966171168
  %v261 = vunpack.c.0.s8 %v260
  %v262 = vlaneseq
  %v263 = vshrl.u32 %v262, 7
  %v264 = vsub.s32 %v261, %v263
  %v265 = vrot.slane %v250, %v264
  %v266 = vcombine.low %v258, %v265
  %vm267 = vcmask 523264
  %v268 = vsel %vm267, %v226, 0
  %v270 = vsel %vm267, %v266, 0
  %272 = vmatprep.subr.mxu0 0.0
  %273 = vmatpush1.msra.mxu0 %v72
  %274 = vmatprep.subr.mxu0 0.0
  %275 = vmatpush1.msra.mxu0 %v73
  %276 = vmatprep.subr.mxu0 0.0
  %277 = vmatpush1.msra.mxu0 %v74
  %278 = vmatprep.subr.mxu0 0.0
  %279 = vmatpush1.msra.mxu0 %v75
  %280 = vmatprep.subr.mxu0 0.0
  %281 = vmatpush1.msra.mxu0 %v76
  %282 = vmatprep.subr.mxu0 0.0
  %283 = vmatpush1.msra.mxu0 %v77
  %284 = vmatprep.subr.mxu0 0.0
  %285 = vmatpush1.msra.mxu0 %v78
  %286 = vmatprep.subr.mxu0 0.0
  %287 = vmatpush1.msra.mxu0 %v79
  %288 = vmatprep.subr.mxu0 0.0
  %289 = vmatpush1.msra.mxu0 0.0
  %290 = vmatprep.subr.mxu0 0.0
  %291 = vmatpush1.msra.mxu0 0.0
  %292 = vmatprep.subr.mxu0 0.0
  %293 = vmatpush1.msra.mxu0 0.0
  %294 = vmatprep.subr.mxu0 0.0
  %295 = vmatpush1.msra.mxu0 0.0
  %296 = vmatprep.subr.mxu0 0.0
  %297 = vmatpush1.msra.mxu0 0.0
  %298 = vmatprep.subr.mxu0 0.0
  %299 = vmatpush1.msra.mxu0 0.0
  %300 = vmatprep.subr.mxu0 0.0
  %301 = vmatpush1.msra.mxu0 0.0
  %302 = vmatprep.subr.mxu0 0.0
  %303 = vmatpush1.msra.mxu0 0.0
  %304 = vmatprep.subr.mxu0 0.0
  %305 = vmatpush1.msra.mxu0 0.0
  %306 = vmatprep.subr.mxu0 0.0
  %307 = vmatpush1.msra.mxu0 0.0
  %308 = vmatprep.subr.mxu0 0.0
  %309 = vmatpush1.msra.mxu0 0.0
  %310 = vmatprep.subr.mxu0 0.0
  %311 = vmatpush1.msra.mxu0 0.0
  %312 = vmatprep.subr.mxu0 0.0
  %313 = vmatpush1.msra.mxu0 0.0
  %314 = vmatprep.subr.mxu0 0.0
  %315 = vmatpush1.msra.mxu0 0.0
  %316 = vmatprep.subr.mxu0 0.0
  %317 = vmatpush1.msra.mxu0 0.0
  %318 = vmatprep.subr.mxu0 0.0
  %319 = vmatpush1.msra.mxu0 0.0
  %320 = vmatprep.subr.mxu0 0.0
  %321 = vmatpush1.msra.mxu0 0.0
  %322 = vmatprep.subr.mxu0 0.0
  %323 = vmatpush1.msra.mxu0 0.0
  %324 = vmatprep.subr.mxu0 0.0
  %325 = vmatpush1.msra.mxu0 0.0
  %326 = vmatprep.subr.mxu0 0.0
  %327 = vmatpush1.msra.mxu0 0.0
  %328 = vmatprep.subr.mxu0 0.0
  %329 = vmatpush1.msra.mxu0 0.0
  %330 = vmatprep.subr.mxu0 0.0
  %331 = vmatpush1.msra.mxu0 0.0
  %332 = vmatprep.subr.mxu0 0.0
  %333 = vmatpush1.msra.mxu0 0.0
  %334 = vmatprep.subr.mxu0 0.0
  %335 = vmatpush1.msra.mxu0 0.0
  %336 = vmatprep.mubr.f32.mxu0 0.0
  %337 = vmatmul.mubr.f32.gmra.mrb[0].mxu0 %v268
  %v338 = vpop.f32.mrb[0].mxu0
  %v339 = vadd.f32 0.0, %v338
  %v340 = vpop.f32.mrb[0].mxu0
  %341 = vmatprep.mubr.f32.mxu0 0.0
  %342 = vmatmul.mubr.f32.gmra.mrb[0].mxu0 %v270
  %v343 = vpop.f32.mrb[0].mxu0
  %v344 = vadd.f32 0.0, %v343
  %v345 = vpop.f32.mrb[0].mxu0
  %346 = vdwg.mxu0
  %v349 = vcombine.high %v50, %v50
  %v351 = vunpack.c.l.s4 1966171168
  %v352 = vunpack.c.0.s8 %v351
  %v353 = vlaneseq
  %v354 = vshrl.u32 %v353, 7
  %v355 = vsub.s32 %v352, %v354
  %v356 = vrot.slane %v50, %v355
  %v358 = vunpack.c.l.s4 1966171168
  %v359 = vunpack.c.0.s8 %v358
  %v360 = vlaneseq
  %v361 = vshrl.u32 %v360, 7
  %v362 = vsub.s32 %v359, %v361
  %v363 = vrot.slane %v349, %v362
  %v364 = vcombine.high %v356, %v356
  %v365 = vcombine.high %v363, %v363
  %v367 = vunpack.c.l.s4 1966171168
  %v368 = vunpack.c.0.s8 %v367
  %v369 = vlaneseq
  %v370 = vshrl.u32 %v369, 7
  %v371 = vsub.s32 %v368, %v370
  %v372 = vrot.slane %v356, %v371
  %v374 = vunpack.c.l.s4 1966171168
  %v375 = vunpack.c.0.s8 %v374
  %v376 = vlaneseq
  %v377 = vshrl.u32 %v376, 7
  %v378 = vsub.s32 %v375, %v377
  %v379 = vrot.slane %v363, %v378
  %v381 = vunpack.c.l.s4 1966171168
  %v382 = vunpack.c.0.s8 %v381
  %v383 = vlaneseq
  %v384 = vshrl.u32 %v383, 7
  %v385 = vsub.s32 %v382, %v384
  %v386 = vrot.slane %v364, %v385
  %v388 = vunpack.c.l.s4 1966171168
  %v389 = vunpack.c.0.s8 %v388
  %v390 = vlaneseq
  %v391 = vshrl.u32 %v390, 7
  %v392 = vsub.s32 %v389, %v391
  %v393 = vrot.slane %v365, %v392
  %v394 = vcombine.high %v372, %v372
  %v395 = vcombine.high %v379, %v379
  %v396 = vcombine.high %v386, %v386
  %v397 = vcombine.high %v51, %v51
  %v399 = vunpack.c.l.s4 1966171168
  %v400 = vunpack.c.0.s8 %v399
  %v401 = vlaneseq
  %v402 = vshrl.u32 %v401, 7
  %v403 = vsub.s32 %v400, %v402
  %v404 = vrot.slane %v51, %v403
  %v406 = vunpack.c.l.s4 1966171168
  %v407 = vunpack.c.0.s8 %v406
  %v408 = vlaneseq
  %v409 = vshrl.u32 %v408, 7
  %v410 = vsub.s32 %v407, %v409
  %v411 = vrot.slane %v397, %v410
  %v412 = vcombine.high %v404, %v404
  %v413 = vcombine.high %v411, %v411
  %v415 = vunpack.c.l.s4 1966171168
  %v416 = vunpack.c.0.s8 %v415
  %v417 = vlaneseq
  %v418 = vshrl.u32 %v417, 7
  %v419 = vsub.s32 %v416, %v418
  %v420 = vrot.slane %v404, %v419
  %v422 = vunpack.c.l.s4 1966171168
  %v423 = vunpack.c.0.s8 %v422
  %v424 = vlaneseq
  %v425 = vshrl.u32 %v424, 7
  %v426 = vsub.s32 %v423, %v425
  %v427 = vrot.slane %v411, %v426
  %v429 = vunpack.c.l.s4 1966171168
  %v430 = vunpack.c.0.s8 %v429
  %v431 = vlaneseq
  %v432 = vshrl.u32 %v431, 7
  %v433 = vsub.s32 %v430, %v432
  %v434 = vrot.slane %v412, %v433
  %v436 = vunpack.c.l.s4 1966171168
  %v437 = vunpack.c.0.s8 %v436
  %v438 = vlaneseq
  %v439 = vshrl.u32 %v438, 7
  %v440 = vsub.s32 %v437, %v439
  %v441 = vrot.slane %v413, %v440
  %v442 = vcombine.high %v420, %v420
  %v443 = vcombine.high %v427, %v427
  %v444 = vcombine.high %v434, %v434
  %v445 = vcombine.low %v372, %v386
  %v446 = vcombine.low %v394, %v396
  %v447 = vcombine.low %v379, %v393
  %v448 = vcombine.low %v395, %v420
  %v450 = vunpack.c.l.s4 1966171168
  %v451 = vunpack.c.0.s8 %v450
  %v452 = vlaneseq
  %v453 = vshrl.u32 %v452, 7
  %v454 = vsub.s32 %v451, %v453
  %v455 = vrot.slane %v445, %v454
  %v457 = vunpack.c.l.s4 1966171168
  %v458 = vunpack.c.0.s8 %v457
  %v459 = vlaneseq
  %v460 = vshrl.u32 %v459, 7
  %v461 = vsub.s32 %v458, %v460
  %v462 = vrot.slane %v446, %v461
  %v464 = vunpack.c.l.s4 1966171168
  %v465 = vunpack.c.0.s8 %v464
  %v466 = vlaneseq
  %v467 = vshrl.u32 %v466, 7
  %v468 = vsub.s32 %v465, %v467
  %v469 = vrot.slane %v447, %v468
  %v471 = vunpack.c.l.s4 1966171168
  %v472 = vunpack.c.0.s8 %v471
  %v473 = vlaneseq
  %v474 = vshrl.u32 %v473, 7
  %v475 = vsub.s32 %v472, %v474
  %v476 = vrot.slane %v448, %v475
  %v477 = vcombine.low %v455, %v462
  %v478 = vcombine.low %v469, %v476
  %v480 = vunpack.c.l.s4 1966171168
  %v481 = vunpack.c.0.s8 %v480
  %v482 = vlaneseq
  %v483 = vshrl.u32 %v482, 7
  %v484 = vsub.s32 %v481, %v483
  %v485 = vrot.slane %v477, %v484
  %v487 = vunpack.c.l.s4 1966171168
  %v488 = vunpack.c.0.s8 %v487
  %v489 = vlaneseq
  %v490 = vshrl.u32 %v489, 7
  %v491 = vsub.s32 %v488, %v490
  %v492 = vrot.slane %v478, %v491
  %v493 = vcombine.low %v485, %v492
  %v494 = vcombine.low %v434, %v442
  %v495 = vcombine.low %v444, %v427
  %v496 = vcombine.low %v441, %v443
  %v498 = vunpack.c.l.s4 1966171168
  %v499 = vunpack.c.0.s8 %v498
  %v500 = vlaneseq
  %v501 = vshrl.u32 %v500, 7
  %v502 = vsub.s32 %v499, %v501
  %v503 = vrot.slane %v494, %v502
  %v505 = vunpack.c.l.s4 1966171168
  %v506 = vunpack.c.0.s8 %v505
  %v507 = vlaneseq
  %v508 = vshrl.u32 %v507, 7
  %v509 = vsub.s32 %v506, %v508
  %v510 = vrot.slane %v495, %v509
  %v512 = vunpack.c.l.s4 1966171168
  %v513 = vunpack.c.0.s8 %v512
  %v514 = vlaneseq
  %v515 = vshrl.u32 %v514, 7
  %v516 = vsub.s32 %v513, %v515
  %v517 = vrot.slane %v496, %v516
  %v518 = vcombine.low %v503, %v510
  %v520 = vunpack.c.l.s4 1966171168
  %v521 = vunpack.c.0.s8 %v520
  %v522 = vlaneseq
  %v523 = vshrl.u32 %v522, 7
  %v524 = vsub.s32 %v521, %v523
  %v525 = vrot.slane %v518, %v524
  %v527 = vunpack.c.l.s4 1966171168
  %v528 = vunpack.c.0.s8 %v527
  %v529 = vlaneseq
  %v530 = vshrl.u32 %v529, 7
  %v531 = vsub.s32 %v528, %v530
  %v532 = vrot.slane %v517, %v531
  %v533 = vcombine.low %v525, %v532
  %v534 = vsel %vm267, %v493, 0
  %v536 = vsel %vm267, %v533, 0
  %538 = vmatprep.subr.mxu0 0.0
  %539 = vmatpush1.msra.mxu0 %v63
  %540 = vmatprep.subr.mxu0 0.0
  %541 = vmatpush1.msra.mxu0 %v64
  %542 = vmatprep.subr.mxu0 0.0
  %543 = vmatpush1.msra.mxu0 %v65
  %544 = vmatprep.subr.mxu0 0.0
  %545 = vmatpush1.msra.mxu0 %v66
  %546 = vmatprep.subr.mxu0 0.0
  %547 = vmatpush1.msra.mxu0 %v67
  %548 = vmatprep.subr.mxu0 0.0
  %549 = vmatpush1.msra.mxu0 %v68
  %550 = vmatprep.subr.mxu0 0.0
  %551 = vmatpush1.msra.mxu0 %v69
  %552 = vmatprep.subr.mxu0 0.0
  %553 = vmatpush1.msra.mxu0 %v70
  %554 = vmatprep.subr.mxu0 0.0
  %555 = vmatpush1.msra.mxu0 0.0
  %556 = vmatprep.subr.mxu0 0.0
  %557 = vmatpush1.msra.mxu0 0.0
  %558 = vmatprep.subr.mxu0 0.0
  %559 = vmatpush1.msra.mxu0 0.0
  %560 = vmatprep.subr.mxu0 0.0
  %561 = vmatpush1.msra.mxu0 0.0
  %562 = vmatprep.subr.mxu0 0.0
  %563 = vmatpush1.msra.mxu0 0.0
  %564 = vmatprep.subr.mxu0 0.0
  %565 = vmatpush1.msra.mxu0 0.0
  %566 = vmatprep.subr.mxu0 0.0
  %567 = vmatpush1.msra.mxu0 0.0
  %568 = vmatprep.subr.mxu0 0.0
  %569 = vmatpush1.msra.mxu0 0.0
  %570 = vmatprep.subr.mxu0 0.0
  %571 = vmatpush1.msra.mxu0 0.0
  %572 = vmatprep.subr.mxu0 0.0
  %573 = vmatpush1.msra.mxu0 0.0
  %574 = vmatprep.subr.mxu0 0.0
  %575 = vmatpush1.msra.mxu0 0.0
  %576 = vmatprep.subr.mxu0 0.0
  %577 = vmatpush1.msra.mxu0 0.0
  %578 = vmatprep.subr.mxu0 0.0
  %579 = vmatpush1.msra.mxu0 0.0
  %580 = vmatprep.subr.mxu0 0.0
  %581 = vmatpush1.msra.mxu0 0.0
  %582 = vmatprep.subr.mxu0 0.0
  %583 = vmatpush1.msra.mxu0 0.0
  %584 = vmatprep.subr.mxu0 0.0
  %585 = vmatpush1.msra.mxu0 0.0
  %586 = vmatprep.subr.mxu0 0.0
  %587 = vmatpush1.msra.mxu0 0.0
  %588 = vmatprep.subr.mxu0 0.0
  %589 = vmatpush1.msra.mxu0 0.0
  %590 = vmatprep.subr.mxu0 0.0
  %591 = vmatpush1.msra.mxu0 0.0
  %592 = vmatprep.subr.mxu0 0.0
  %593 = vmatpush1.msra.mxu0 0.0
  %594 = vmatprep.subr.mxu0 0.0
  %595 = vmatpush1.msra.mxu0 0.0
  %596 = vmatprep.subr.mxu0 0.0
  %597 = vmatpush1.msra.mxu0 0.0
  %598 = vmatprep.subr.mxu0 0.0
  %599 = vmatpush1.msra.mxu0 0.0
  %600 = vmatprep.subr.mxu0 0.0
  %601 = vmatpush1.msra.mxu0 0.0
  %602 = vmatprep.mubr.f32.mxu0 0.0
  %603 = vmatmul.mubr.f32.gmra.mrb[0].mxu0 %v534
  %v604 = vpop.f32.mrb[0].mxu0
  %v605 = vadd.f32 %v339, %v604
  %v606 = vpop.f32.mrb[0].mxu0
  %607 = vmatprep.mubr.f32.mxu0 0.0
  %608 = vmatmul.mubr.f32.gmra.mrb[0].mxu0 %v536
  %v609 = vpop.f32.mrb[0].mxu0
  %v610 = vadd.f32 %v344, %v609
  %v611 = vpop.f32.mrb[0].mxu0
  %612 = vdwg.mxu0
  %v615 = vcombine.high %v605, %v605
  %v617 = vunpack.c.l.s4 1966171168
  %v618 = vunpack.c.0.s8 %v617
  %v619 = vlaneseq
  %v620 = vshrl.u32 %v619, 7
  %v621 = vsub.s32 %v618, %v620
  %v622 = vrot.slane %v605, %v621
  %v624 = vunpack.c.l.s4 1966171168
  %v625 = vunpack.c.0.s8 %v624
  %v626 = vlaneseq
  %v627 = vshrl.u32 %v626, 7
  %v628 = vsub.s32 %v625, %v627
  %v629 = vrot.slane %v615, %v628
  %v630 = vcombine.high %v622, %v622
  %v631 = vcombine.high %v629, %v629
  %v633 = vunpack.c.l.s4 1966171168
  %v634 = vunpack.c.0.s8 %v633
  %v635 = vlaneseq
  %v636 = vshrl.u32 %v635, 7
  %v637 = vsub.s32 %v634, %v636
  %v638 = vrot.slane %v622, %v637
  %v640 = vunpack.c.l.s4 1966171168
  %v641 = vunpack.c.0.s8 %v640
  %v642 = vlaneseq
  %v643 = vshrl.u32 %v642, 7
  %v644 = vsub.s32 %v641, %v643
  %v645 = vrot.slane %v629, %v644
  %v647 = vunpack.c.l.s4 1966171168
  %v648 = vunpack.c.0.s8 %v647
  %v649 = vlaneseq
  %v650 = vshrl.u32 %v649, 7
  %v651 = vsub.s32 %v648, %v650
  %v652 = vrot.slane %v630, %v651
  %v654 = vunpack.c.l.s4 1966171168
  %v655 = vunpack.c.0.s8 %v654
  %v656 = vlaneseq
  %v657 = vshrl.u32 %v656, 7
  %v658 = vsub.s32 %v655, %v657
  %v659 = vrot.slane %v631, %v658
  %v660 = vcombine.high %v638, %v638
  %v661 = vcombine.high %v645, %v645
  %v662 = vcombine.high %v652, %v652
  %v663 = vcombine.high %v659, %v659
  %v664 = vcombine.high %v610, %v610
  %v666 = vunpack.c.l.s4 1966171168
  %v667 = vunpack.c.0.s8 %v666
  %v668 = vlaneseq
  %v669 = vshrl.u32 %v668, 7
  %v670 = vsub.s32 %v667, %v669
  %v671 = vrot.slane %v610, %v670
  %v673 = vunpack.c.l.s4 1966171168
  %v674 = vunpack.c.0.s8 %v673
  %v675 = vlaneseq
  %v676 = vshrl.u32 %v675, 7
  %v677 = vsub.s32 %v674, %v676
  %v678 = vrot.slane %v664, %v677
  %v679 = vcombine.high %v671, %v671
  %v680 = vcombine.high %v678, %v678
  %v682 = vunpack.c.l.s4 1966171168
  %v683 = vunpack.c.0.s8 %v682
  %v684 = vlaneseq
  %v685 = vshrl.u32 %v684, 7
  %v686 = vsub.s32 %v683, %v685
  %v687 = vrot.slane %v671, %v686
  %v689 = vunpack.c.l.s4 1966171168
  %v690 = vunpack.c.0.s8 %v689
  %v691 = vlaneseq
  %v692 = vshrl.u32 %v691, 7
  %v693 = vsub.s32 %v690, %v692
  %v694 = vrot.slane %v678, %v693
  %v696 = vunpack.c.l.s4 1966171168
  %v697 = vunpack.c.0.s8 %v696
  %v698 = vlaneseq
  %v699 = vshrl.u32 %v698, 7
  %v700 = vsub.s32 %v697, %v699
  %v701 = vrot.slane %v679, %v700
  %v703 = vunpack.c.l.s4 1966171168
  %v704 = vunpack.c.0.s8 %v703
  %v705 = vlaneseq
  %v706 = vshrl.u32 %v705, 7
  %v707 = vsub.s32 %v704, %v706
  %v708 = vrot.slane %v680, %v707
  %v709 = vcombine.high %v687, %v687
  %v710 = vcombine.high %v701, %v701
  %s725 = scalar_lea.vmem %s3, 256
  %v726 = vld [vmem:[%s725] sm:$0xff]
  %v727 = vld [vmem:[%s725 + $0x8] sm:$0xff]
  %v728 = vld [vmem:[%s725 + $0x10] sm:$0xff]
  %v729 = vld [vmem:[%s725 + $0x18] sm:$0xff]
  %v730 = vld [vmem:[%s725 + $0x20] sm:$0xff]
  %v731 = vld [vmem:[%s725 + $0x28] sm:$0xff]
  %v732 = vld [vmem:[%s725 + $0x30] sm:$0xff]
  %v733 = vld [vmem:[%s725 + $0x38] sm:$0xff]
  %v736 = vcombine.high %v54, %v54
  %v738 = vunpack.c.l.s4 1966171168
  %v739 = vunpack.c.0.s8 %v738
  %v740 = vlaneseq
  %v741 = vshrl.u32 %v740, 7
  %v742 = vsub.s32 %v739, %v741
  %v743 = vrot.slane %v54, %v742
  %v745 = vunpack.c.l.s4 1966171168
  %v746 = vunpack.c.0.s8 %v745
  %v747 = vlaneseq
  %v748 = vshrl.u32 %v747, 7
  %v749 = vsub.s32 %v746, %v748
  %v750 = vrot.slane %v736, %v749
  %v751 = vcombine.high %v743, %v743
  %v752 = vcombine.high %v750, %v750
  %v754 = vunpack.c.l.s4 1966171168
  %v755 = vunpack.c.0.s8 %v754
  %v756 = vlaneseq
  %v757 = vshrl.u32 %v756, 7
  %v758 = vsub.s32 %v755, %v757
  %v759 = vrot.slane %v743, %v758
  %v761 = vunpack.c.l.s4 1966171168
  %v762 = vunpack.c.0.s8 %v761
  %v763 = vlaneseq
  %v764 = vshrl.u32 %v763, 7
  %v765 = vsub.s32 %v762, %v764
  %v766 = vrot.slane %v750, %v765
  %v768 = vunpack.c.l.s4 1966171168
  %v769 = vunpack.c.0.s8 %v768
  %v770 = vlaneseq
  %v771 = vshrl.u32 %v770, 7
  %v772 = vsub.s32 %v769, %v771
  %v773 = vrot.slane %v751, %v772
  %v775 = vunpack.c.l.s4 1966171168
  %v776 = vunpack.c.0.s8 %v775
  %v777 = vlaneseq
  %v778 = vshrl.u32 %v777, 7
  %v779 = vsub.s32 %v776, %v778
  %v780 = vrot.slane %v752, %v779
  %v781 = vcombine.high %v759, %v759
  %v782 = vcombine.high %v766, %v766
  %v783 = vcombine.high %v773, %v773
  %v784 = vcombine.high %v55, %v55
  %v786 = vunpack.c.l.s4 1966171168
  %v787 = vunpack.c.0.s8 %v786
  %v788 = vlaneseq
  %v789 = vshrl.u32 %v788, 7
  %v790 = vsub.s32 %v787, %v789
  %v791 = vrot.slane %v55, %v790
  %v793 = vunpack.c.l.s4 1966171168
  %v794 = vunpack.c.0.s8 %v793
  %v795 = vlaneseq
  %v796 = vshrl.u32 %v795, 7
  %v797 = vsub.s32 %v794, %v796
  %v798 = vrot.slane %v784, %v797
  %v799 = vcombine.high %v791, %v791
  %v800 = vcombine.high %v798, %v798
  %v802 = vunpack.c.l.s4 1966171168
  %v803 = vunpack.c.0.s8 %v802
  %v804 = vlaneseq
  %v805 = vshrl.u32 %v804, 7
  %v806 = vsub.s32 %v803, %v805
  %v807 = vrot.slane %v791, %v806
  %v809 = vunpack.c.l.s4 1966171168
  %v810 = vunpack.c.0.s8 %v809
  %v811 = vlaneseq
  %v812 = vshrl.u32 %v811, 7
  %v813 = vsub.s32 %v810, %v812
  %v814 = vrot.slane %v798, %v813
  %v816 = vunpack.c.l.s4 1966171168
  %v817 = vunpack.c.0.s8 %v816
  %v818 = vlaneseq
  %v819 = vshrl.u32 %v818, 7
  %v820 = vsub.s32 %v817, %v819
  %v821 = vrot.slane %v799, %v820
  %v823 = vunpack.c.l.s4 1966171168
  %v824 = vunpack.c.0.s8 %v823
  %v825 = vlaneseq
  %v826 = vshrl.u32 %v825, 7
  %v827 = vsub.s32 %v824, %v826
  %v828 = vrot.slane %v800, %v827
  %v829 = vcombine.high %v807, %v807
  %v830 = vcombine.high %v814, %v814
  %v831 = vcombine.high %v821, %v821
  %v832 = vcombine.low %v759, %v773
  %v833 = vcombine.low %v781, %v783
  %v834 = vcombine.low %v766, %v780
  %v835 = vcombine.low %v782, %v807
  %v837 = vunpack.c.l.s4 1966171168
  %v838 = vunpack.c.0.s8 %v837
  %v839 = vlaneseq
  %v840 = vshrl.u32 %v839, 7
  %v841 = vsub.s32 %v838, %v840
  %v842 = vrot.slane %v832, %v841
  %v844 = vunpack.c.l.s4 1966171168
  %v845 = vunpack.c.0.s8 %v844
  %v846 = vlaneseq
  %v847 = vshrl.u32 %v846, 7
  %v848 = vsub.s32 %v845, %v847
  %v849 = vrot.slane %v833, %v848
  %v851 = vunpack.c.l.s4 1966171168
  %v852 = vunpack.c.0.s8 %v851
  %v853 = vlaneseq
  %v854 = vshrl.u32 %v853, 7
  %v855 = vsub.s32 %v852, %v854
  %v856 = vrot.slane %v834, %v855
  %v858 = vunpack.c.l.s4 1966171168
  %v859 = vunpack.c.0.s8 %v858
  %v860 = vlaneseq
  %v861 = vshrl.u32 %v860, 7
  %v862 = vsub.s32 %v859, %v861
  %v863 = vrot.slane %v835, %v862
  %v864 = vcombine.low %v842, %v849
  %v865 = vcombine.low %v856, %v863
  %v867 = vunpack.c.l.s4 1966171168
  %v868 = vunpack.c.0.s8 %v867
  %v869 = vlaneseq
  %v870 = vshrl.u32 %v869, 7
  %v871 = vsub.s32 %v868, %v870
  %v872 = vrot.slane %v864, %v871
  %v874 = vunpack.c.l.s4 1966171168
  %v875 = vunpack.c.0.s8 %v874
  %v876 = vlaneseq
  %v877 = vshrl.u32 %v876, 7
  %v878 = vsub.s32 %v875, %v877
  %v879 = vrot.slane %v865, %v878
  %v880 = vcombine.low %v872, %v879
  %v881 = vcombine.low %v821, %v829
  %v882 = vcombine.low %v831, %v814
  %v883 = vcombine.low %v828, %v830
  %v885 = vunpack.c.l.s4 1966171168
  %v886 = vunpack.c.0.s8 %v885
  %v887 = vlaneseq
  %v888 = vshrl.u32 %v887, 7
  %v889 = vsub.s32 %v886, %v888
  %v890 = vrot.slane %v881, %v889
  %v892 = vunpack.c.l.s4 1966171168
  %v893 = vunpack.c.0.s8 %v892
  %v894 = vlaneseq
  %v895 = vshrl.u32 %v894, 7
  %v896 = vsub.s32 %v893, %v895
  %v897 = vrot.slane %v882, %v896
  %v899 = vunpack.c.l.s4 1966171168
  %v900 = vunpack.c.0.s8 %v899
  %v901 = vlaneseq
  %v902 = vshrl.u32 %v901, 7
  %v903 = vsub.s32 %v900, %v902
  %v904 = vrot.slane %v883, %v903
  %v905 = vcombine.low %v890, %v897
  %v907 = vunpack.c.l.s4 1966171168
  %v908 = vunpack.c.0.s8 %v907
  %v909 = vlaneseq
  %v910 = vshrl.u32 %v909, 7
  %v911 = vsub.s32 %v908, %v910
  %v912 = vrot.slane %v905, %v911
  %v914 = vunpack.c.l.s4 1966171168
  %v915 = vunpack.c.0.s8 %v914
  %v916 = vlaneseq
  %v917 = vshrl.u32 %v916, 7
  %v918 = vsub.s32 %v915, %v917
  %v919 = vrot.slane %v904, %v918
  %v920 = vcombine.low %v912, %v919
  %v921 = vsel %vm267, %v880, 0
  %v923 = vsel %vm267, %v920, 0
  %925 = vmatprep.subr.mxu0 0.0
  %926 = vmatpush1.msra.mxu0 %v726
  %927 = vmatprep.subr.mxu0 0.0
  %928 = vmatpush1.msra.mxu0 %v727
  %929 = vmatprep.subr.mxu0 0.0
  %930 = vmatpush1.msra.mxu0 %v728
  %931 = vmatprep.subr.mxu0 0.0
  %932 = vmatpush1.msra.mxu0 %v729
  %933 = vmatprep.subr.mxu0 0.0
  %934 = vmatpush1.msra.mxu0 %v730
  %935 = vmatprep.subr.mxu0 0.0
  %936 = vmatpush1.msra.mxu0 %v731
  %937 = vmatprep.subr.mxu0 0.0
  %938 = vmatpush1.msra.mxu0 %v732
  %939 = vmatprep.subr.mxu0 0.0
  %940 = vmatpush1.msra.mxu0 %v733
  %941 = vmatprep.subr.mxu0 0.0
  %942 = vmatpush1.msra.mxu0 0.0
  %943 = vmatprep.subr.mxu0 0.0
  %944 = vmatpush1.msra.mxu0 0.0
  %945 = vmatprep.subr.mxu0 0.0
  %946 = vmatpush1.msra.mxu0 0.0
  %947 = vmatprep.subr.mxu0 0.0
  %948 = vmatpush1.msra.mxu0 0.0
  %949 = vmatprep.subr.mxu0 0.0
  %950 = vmatpush1.msra.mxu0 0.0
  %951 = vmatprep.subr.mxu0 0.0
  %952 = vmatpush1.msra.mxu0 0.0
  %953 = vmatprep.subr.mxu0 0.0
  %954 = vmatpush1.msra.mxu0 0.0
  %955 = vmatprep.subr.mxu0 0.0
  %956 = vmatpush1.msra.mxu0 0.0
  %957 = vmatprep.subr.mxu0 0.0
  %958 = vmatpush1.msra.mxu0 0.0
  %959 = vmatprep.subr.mxu0 0.0
  %960 = vmatpush1.msra.mxu0 0.0
  %961 = vmatprep.subr.mxu0 0.0
  %962 = vmatpush1.msra.mxu0 0.0
  %963 = vmatprep.subr.mxu0 0.0
  %964 = vmatpush1.msra.mxu0 0.0
  %965 = vmatprep.subr.mxu0 0.0
  %966 = vmatpush1.msra.mxu0 0.0
  %967 = vmatprep.subr.mxu0 0.0
  %968 = vmatpush1.msra.mxu0 0.0
  %969 = vmatprep.subr.mxu0 0.0
  %970 = vmatpush1.msra.mxu0 0.0
  %971 = vmatprep.subr.mxu0 0.0
  %972 = vmatpush1.msra.mxu0 0.0
  %973 = vmatprep.subr.mxu0 0.0
  %974 = vmatpush1.msra.mxu0 0.0
  %975 = vmatprep.subr.mxu0 0.0
  %976 = vmatpush1.msra.mxu0 0.0
  %977 = vmatprep.subr.mxu0 0.0
  %978 = vmatpush1.msra.mxu0 0.0
  %979 = vmatprep.subr.mxu0 0.0
  %980 = vmatpush1.msra.mxu0 0.0
  %981 = vmatprep.subr.mxu0 0.0
  %982 = vmatpush1.msra.mxu0 0.0
  %983 = vmatprep.subr.mxu0 0.0
  %984 = vmatpush1.msra.mxu0 0.0
  %985 = vmatprep.subr.mxu0 0.0
  %986 = vmatpush1.msra.mxu0 0.0
  %987 = vmatprep.subr.mxu0 0.0
  %988 = vmatpush1.msra.mxu0 0.0
  %989 = vmatprep.mubr.f32.mxu0 0.0
  %990 = vmatmul.mubr.f32.gmra.mrb[0].mxu0 %v921
  %v991 = vpop.f32.mrb[0].mxu0
  %v992 = vadd.f32 0.0, %v991
  %v993 = vpop.f32.mrb[0].mxu0
  %994 = vmatprep.mubr.f32.mxu0 0.0
  %995 = vmatmul.mubr.f32.gmra.mrb[0].mxu0 %v923
  %v996 = vpop.f32.mrb[0].mxu0
  %v997 = vadd.f32 0.0, %v996
  %v998 = vpop.f32.mrb[0].mxu0
  %999 = vdwg.mxu0
  %v1002 = vcombine.high %v992, %v992
  %v1004 = vunpack.c.l.s4 1966171168
  %v1005 = vunpack.c.0.s8 %v1004
  %v1006 = vlaneseq
  %v1007 = vshrl.u32 %v1006, 7
  %v1008 = vsub.s32 %v1005, %v1007
  %v1009 = vrot.slane %v992, %v1008
  %v1011 = vunpack.c.l.s4 1966171168
  %v1012 = vunpack.c.0.s8 %v1011
  %v1013 = vlaneseq
  %v1014 = vshrl.u32 %v1013, 7
  %v1015 = vsub.s32 %v1012, %v1014
  %v1016 = vrot.slane %v1002, %v1015
  %v1017 = vcombine.high %v1009, %v1009
  %v1018 = vcombine.high %v1016, %v1016
  %v1020 = vunpack.c.l.s4 1966171168
  %v1021 = vunpack.c.0.s8 %v1020
  %v1022 = vlaneseq
  %v1023 = vshrl.u32 %v1022, 7
  %v1024 = vsub.s32 %v1021, %v1023
  %v1025 = vrot.slane %v1009, %v1024
  %v1027 = vunpack.c.l.s4 1966171168
  %v1028 = vunpack.c.0.s8 %v1027
  %v1029 = vlaneseq
  %v1030 = vshrl.u32 %v1029, 7
  %v1031 = vsub.s32 %v1028, %v1030
  %v1032 = vrot.slane %v1016, %v1031
  %v1034 = vunpack.c.l.s4 1966171168
  %v1035 = vunpack.c.0.s8 %v1034
  %v1036 = vlaneseq
  %v1037 = vshrl.u32 %v1036, 7
  %v1038 = vsub.s32 %v1035, %v1037
  %v1039 = vrot.slane %v1017, %v1038
  %v1041 = vunpack.c.l.s4 1966171168
  %v1042 = vunpack.c.0.s8 %v1041
  %v1043 = vlaneseq
  %v1044 = vshrl.u32 %v1043, 7
  %v1045 = vsub.s32 %v1042, %v1044
  %v1046 = vrot.slane %v1018, %v1045
  %v1047 = vcombine.high %v1025, %v1025
  %v1048 = vcombine.high %v1032, %v1032
  %v1049 = vcombine.high %v1039, %v1039
  %v1050 = vcombine.high %v1046, %v1046
  %v1051 = vcombine.high %v997, %v997
  %v1053 = vunpack.c.l.s4 1966171168
  %v1054 = vunpack.c.0.s8 %v1053
  %v1055 = vlaneseq
  %v1056 = vshrl.u32 %v1055, 7
  %v1057 = vsub.s32 %v1054, %v1056
  %v1058 = vrot.slane %v997, %v1057
  %v1060 = vunpack.c.l.s4 1966171168
  %v1061 = vunpack.c.0.s8 %v1060
  %v1062 = vlaneseq
  %v1063 = vshrl.u32 %v1062, 7
  %v1064 = vsub.s32 %v1061, %v1063
  %v1065 = vrot.slane %v1051, %v1064
  %v1066 = vcombine.high %v1058, %v1058
  %v1067 = vcombine.high %v1065, %v1065
  %v1069 = vunpack.c.l.s4 1966171168
  %v1070 = vunpack.c.0.s8 %v1069
  %v1071 = vlaneseq
  %v1072 = vshrl.u32 %v1071, 7
  %v1073 = vsub.s32 %v1070, %v1072
  %v1074 = vrot.slane %v1058, %v1073
  %v1076 = vunpack.c.l.s4 1966171168
  %v1077 = vunpack.c.0.s8 %v1076
  %v1078 = vlaneseq
  %v1079 = vshrl.u32 %v1078, 7
  %v1080 = vsub.s32 %v1077, %v1079
  %v1081 = vrot.slane %v1065, %v1080
  %v1083 = vunpack.c.l.s4 1966171168
  %v1084 = vunpack.c.0.s8 %v1083
  %v1085 = vlaneseq
  %v1086 = vshrl.u32 %v1085, 7
  %v1087 = vsub.s32 %v1084, %v1086
  %v1088 = vrot.slane %v1066, %v1087
  %v1090 = vunpack.c.l.s4 1966171168
  %v1091 = vunpack.c.0.s8 %v1090
  %v1092 = vlaneseq
  %v1093 = vshrl.u32 %v1092, 7
  %v1094 = vsub.s32 %v1091, %v1093
  %v1095 = vrot.slane %v1067, %v1094
  %v1096 = vcombine.high %v1074, %v1074
  %v1097 = vcombine.high %v1088, %v1088
  %v1112 = vadd.f32 %v638, %v1025
  %v1113 = vadd.f32 %v652, %v1039
  %v1114 = vadd.f32 %v660, %v1047
  %v1115 = vadd.f32 %v662, %v1049
  %v1116 = vadd.f32 %v645, %v1032
  %v1117 = vadd.f32 %v659, %v1046
  %v1118 = vadd.f32 %v661, %v1048
  %v1119 = vadd.f32 %v663, %v1050
  %v1120 = vadd.f32 %v687, %v1074
  %v1121 = vadd.f32 %v701, %v1088
  %v1122 = vadd.f32 %v709, %v1096
  %v1123 = vadd.f32 %v710, %v1097
  %v1124 = vadd.f32 %v694, %v1081
  %v1125 = vadd.f32 %v708, %v1095
  %s1126 = scalar_lea.vmem %s3, 320
  %v1127 = vld [vmem:[%s1126] sm:$0xff]
  %v1128 = vld [vmem:[%s1126 + $0x8] sm:$0xff]
  %v1129 = vld [vmem:[%s1126 + $0x10] sm:$0xff]
  %v1130 = vld [vmem:[%s1126 + $0x18] sm:$0xff]
  %v1131 = vld [vmem:[%s1126 + $0x20] sm:$0xff]
  %v1132 = vld [vmem:[%s1126 + $0x28] sm:$0xff]
  %v1133 = vld [vmem:[%s1126 + $0x30] sm:$0xff]
  %v1134 = vld [vmem:[%s1126 + $0x38] sm:$0xff]
  %v1137 = vcombine.high %v58, %v58
  %v1139 = vunpack.c.l.s4 1966171168
  %v1140 = vunpack.c.0.s8 %v1139
  %v1141 = vlaneseq
  %v1142 = vshrl.u32 %v1141, 7
  %v1143 = vsub.s32 %v1140, %v1142
  %v1144 = vrot.slane %v58, %v1143
  %v1146 = vunpack.c.l.s4 1966171168
  %v1147 = vunpack.c.0.s8 %v1146
  %v1148 = vlaneseq
  %v1149 = vshrl.u32 %v1148, 7
  %v1150 = vsub.s32 %v1147, %v1149
  %v1151 = vrot.slane %v1137, %v1150
  %v1152 = vcombine.high %v1144, %v1144
  %v1153 = vcombine.high %v1151, %v1151
  %v1155 = vunpack.c.l.s4 1966171168
  %v1156 = vunpack.c.0.s8 %v1155
  %v1157 = vlaneseq
  %v1158 = vshrl.u32 %v1157, 7
  %v1159 = vsub.s32 %v1156, %v1158
  %v1160 = vrot.slane %v1144, %v1159
  %v1162 = vunpack.c.l.s4 1966171168
  %v1163 = vunpack.c.0.s8 %v1162
  %v1164 = vlaneseq
  %v1165 = vshrl.u32 %v1164, 7
  %v1166 = vsub.s32 %v1163, %v1165
  %v1167 = vrot.slane %v1151, %v1166
  %v1169 = vunpack.c.l.s4 1966171168
  %v1170 = vunpack.c.0.s8 %v1169
  %v1171 = vlaneseq
  %v1172 = vshrl.u32 %v1171, 7
  %v1173 = vsub.s32 %v1170, %v1172
  %v1174 = vrot.slane %v1152, %v1173
  %v1176 = vunpack.c.l.s4 1966171168
  %v1177 = vunpack.c.0.s8 %v1176
  %v1178 = vlaneseq
  %v1179 = vshrl.u32 %v1178, 7
  %v1180 = vsub.s32 %v1177, %v1179
  %v1181 = vrot.slane %v1153, %v1180
  %v1182 = vcombine.high %v1160, %v1160
  %v1183 = vcombine.high %v1167, %v1167
  %v1184 = vcombine.high %v1174, %v1174
  %v1185 = vcombine.high %v59, %v59
  %v1187 = vunpack.c.l.s4 1966171168
  %v1188 = vunpack.c.0.s8 %v1187
  %v1189 = vlaneseq
  %v1190 = vshrl.u32 %v1189, 7
  %v1191 = vsub.s32 %v1188, %v1190
  %v1192 = vrot.slane %v59, %v1191
  %v1194 = vunpack.c.l.s4 1966171168
  %v1195 = vunpack.c.0.s8 %v1194
  %v1196 = vlaneseq
  %v1197 = vshrl.u32 %v1196, 7
  %v1198 = vsub.s32 %v1195, %v1197
  %v1199 = vrot.slane %v1185, %v1198
  %v1200 = vcombine.high %v1192, %v1192
  %v1201 = vcombine.high %v1199, %v1199
  %v1203 = vunpack.c.l.s4 1966171168
  %v1204 = vunpack.c.0.s8 %v1203
  %v1205 = vlaneseq
  %v1206 = vshrl.u32 %v1205, 7
  %v1207 = vsub.s32 %v1204, %v1206
  %v1208 = vrot.slane %v1192, %v1207
  %v1210 = vunpack.c.l.s4 1966171168
  %v1211 = vunpack.c.0.s8 %v1210
  %v1212 = vlaneseq
  %v1213 = vshrl.u32 %v1212, 7
  %v1214 = vsub.s32 %v1211, %v1213
  %v1215 = vrot.slane %v1199, %v1214
  %v1217 = vunpack.c.l.s4 1966171168
  %v1218 = vunpack.c.0.s8 %v1217
  %v1219 = vlaneseq
  %v1220 = vshrl.u32 %v1219, 7
  %v1221 = vsub.s32 %v1218, %v1220
  %v1222 = vrot.slane %v1200, %v1221
  %v1224 = vunpack.c.l.s4 1966171168
  %v1225 = vunpack.c.0.s8 %v1224
  %v1226 = vlaneseq
  %v1227 = vshrl.u32 %v1226, 7
  %v1228 = vsub.s32 %v1225, %v1227
  %v1229 = vrot.slane %v1201, %v1228
  %v1230 = vcombine.high %v1208, %v1208
  %v1231 = vcombine.high %v1215, %v1215
  %v1232 = vcombine.high %v1222, %v1222
  %v1233 = vcombine.low %v1160, %v1174
  %v1234 = vcombine.low %v1182, %v1184
  %v1235 = vcombine.low %v1167, %v1181
  %v1236 = vcombine.low %v1183, %v1208
  %v1238 = vunpack.c.l.s4 1966171168
  %v1239 = vunpack.c.0.s8 %v1238
  %v1240 = vlaneseq
  %v1241 = vshrl.u32 %v1240, 7
  %v1242 = vsub.s32 %v1239, %v1241
  %v1243 = vrot.slane %v1233, %v1242
  %v1245 = vunpack.c.l.s4 1966171168
  %v1246 = vunpack.c.0.s8 %v1245
  %v1247 = vlaneseq
  %v1248 = vshrl.u32 %v1247, 7
  %v1249 = vsub.s32 %v1246, %v1248
  %v1250 = vrot.slane %v1234, %v1249
  %v1252 = vunpack.c.l.s4 1966171168
  %v1253 = vunpack.c.0.s8 %v1252
  %v1254 = vlaneseq
  %v1255 = vshrl.u32 %v1254, 7
  %v1256 = vsub.s32 %v1253, %v1255
  %v1257 = vrot.slane %v1235, %v1256
  %v1259 = vunpack.c.l.s4 1966171168
  %v1260 = vunpack.c.0.s8 %v1259
  %v1261 = vlaneseq
  %v1262 = vshrl.u32 %v1261, 7
  %v1263 = vsub.s32 %v1260, %v1262
  %v1264 = vrot.slane %v1236, %v1263
  %v1265 = vcombine.low %v1243, %v1250
  %v1266 = vcombine.low %v1257, %v1264
  %v1268 = vunpack.c.l.s4 1966171168
  %v1269 = vunpack.c.0.s8 %v1268
  %v1270 = vlaneseq
  %v1271 = vshrl.u32 %v1270, 7
  %v1272 = vsub.s32 %v1269, %v1271
  %v1273 = vrot.slane %v1265, %v1272
  %v1275 = vunpack.c.l.s4 1966171168
  %v1276 = vunpack.c.0.s8 %v1275
  %v1277 = vlaneseq
  %v1278 = vshrl.u32 %v1277, 7
  %v1279 = vsub.s32 %v1276, %v1278
  %v1280 = vrot.slane %v1266, %v1279
  %v1281 = vcombine.low %v1273, %v1280
  %v1282 = vcombine.low %v1222, %v1230
  %v1283 = vcombine.low %v1232, %v1215
  %v1284 = vcombine.low %v1229, %v1231
  %v1286 = vunpack.c.l.s4 1966171168
  %v1287 = vunpack.c.0.s8 %v1286
  %v1288 = vlaneseq
  %v1289 = vshrl.u32 %v1288, 7
  %v1290 = vsub.s32 %v1287, %v1289
  %v1291 = vrot.slane %v1282, %v1290
  %v1293 = vunpack.c.l.s4 1966171168
  %v1294 = vunpack.c.0.s8 %v1293
  %v1295 = vlaneseq
  %v1296 = vshrl.u32 %v1295, 7
  %v1297 = vsub.s32 %v1294, %v1296
  %v1298 = vrot.slane %v1283, %v1297
  %v1300 = vunpack.c.l.s4 1966171168
  %v1301 = vunpack.c.0.s8 %v1300
  %v1302 = vlaneseq
  %v1303 = vshrl.u32 %v1302, 7
  %v1304 = vsub.s32 %v1301, %v1303
  %v1305 = vrot.slane %v1284, %v1304
  %v1306 = vcombine.low %v1291, %v1298
  %v1308 = vunpack.c.l.s4 1966171168
  %v1309 = vunpack.c.0.s8 %v1308
  %v1310 = vlaneseq
  %v1311 = vshrl.u32 %v1310, 7
  %v1312 = vsub.s32 %v1309, %v1311
  %v1313 = vrot.slane %v1306, %v1312
  %v1315 = vunpack.c.l.s4 1966171168
  %v1316 = vunpack.c.0.s8 %v1315
  %v1317 = vlaneseq
  %v1318 = vshrl.u32 %v1317, 7
  %v1319 = vsub.s32 %v1316, %v1318
  %v1320 = vrot.slane %v1305, %v1319
  %v1321 = vcombine.low %v1313, %v1320
  %v1322 = vsel %vm267, %v1281, 0
  %v1324 = vsel %vm267, %v1321, 0
  %1326 = vmatprep.subr.mxu0 0.0
  %1327 = vmatpush1.msra.mxu0 %v1127
  %1328 = vmatprep.subr.mxu0 0.0
  %1329 = vmatpush1.msra.mxu0 %v1128
  %1330 = vmatprep.subr.mxu0 0.0
  %1331 = vmatpush1.msra.mxu0 %v1129
  %1332 = vmatprep.subr.mxu0 0.0
  %1333 = vmatpush1.msra.mxu0 %v1130
  %1334 = vmatprep.subr.mxu0 0.0
  %1335 = vmatpush1.msra.mxu0 %v1131
  %1336 = vmatprep.subr.mxu0 0.0
  %1337 = vmatpush1.msra.mxu0 %v1132
  %1338 = vmatprep.subr.mxu0 0.0
  %1339 = vmatpush1.msra.mxu0 %v1133
  %1340 = vmatprep.subr.mxu0 0.0
  %1341 = vmatpush1.msra.mxu0 %v1134
  %1342 = vmatprep.subr.mxu0 0.0
  %1343 = vmatpush1.msra.mxu0 0.0
  %1344 = vmatprep.subr.mxu0 0.0
  %1345 = vmatpush1.msra.mxu0 0.0
  %1346 = vmatprep.subr.mxu0 0.0
  %1347 = vmatpush1.msra.mxu0 0.0
  %1348 = vmatprep.subr.mxu0 0.0
  %1349 = vmatpush1.msra.mxu0 0.0
  %1350 = vmatprep.subr.mxu0 0.0
  %1351 = vmatpush1.msra.mxu0 0.0
  %1352 = vmatprep.subr.mxu0 0.0
  %1353 = vmatpush1.msra.mxu0 0.0
  %1354 = vmatprep.subr.mxu0 0.0
  %1355 = vmatpush1.msra.mxu0 0.0
  %1356 = vmatprep.subr.mxu0 0.0
  %1357 = vmatpush1.msra.mxu0 0.0
  %1358 = vmatprep.subr.mxu0 0.0
  %1359 = vmatpush1.msra.mxu0 0.0
  %1360 = vmatprep.subr.mxu0 0.0
  %1361 = vmatpush1.msra.mxu0 0.0
  %1362 = vmatprep.subr.mxu0 0.0
  %1363 = vmatpush1.msra.mxu0 0.0
  %1364 = vmatprep.subr.mxu0 0.0
  %1365 = vmatpush1.msra.mxu0 0.0
  %1366 = vmatprep.subr.mxu0 0.0
  %1367 = vmatpush1.msra.mxu0 0.0
  %1368 = vmatprep.subr.mxu0 0.0
  %1369 = vmatpush1.msra.mxu0 0.0
  %1370 = vmatprep.subr.mxu0 0.0
  %1371 = vmatpush1.msra.mxu0 0.0
  %1372 = vmatprep.subr.mxu0 0.0
  %1373 = vmatpush1.msra.mxu0 0.0
  %1374 = vmatprep.subr.mxu0 0.0
  %1375 = vmatpush1.msra.mxu0 0.0
  %1376 = vmatprep.subr.mxu0 0.0
  %1377 = vmatpush1.msra.mxu0 0.0
  %1378 = vmatprep.subr.mxu0 0.0
  %1379 = vmatpush1.msra.mxu0 0.0
  %1380 = vmatprep.subr.mxu0 0.0
  %1381 = vmatpush1.msra.mxu0 0.0
  %1382 = vmatprep.subr.mxu0 0.0
  %1383 = vmatpush1.msra.mxu0 0.0
  %1384 = vmatprep.subr.mxu0 0.0
  %1385 = vmatpush1.msra.mxu0 0.0
  %1386 = vmatprep.subr.mxu0 0.0
  %1387 = vmatpush1.msra.mxu0 0.0
  %1388 = vmatprep.subr.mxu0 0.0
  %1389 = vmatpush1.msra.mxu0 0.0
  %1390 = vmatprep.mubr.f32.mxu0 0.0
  %1391 = vmatmul.mubr.f32.gmra.mrb[0].mxu0 %v1322
  %v1392 = vpop.f32.mrb[0].mxu0
  %v1393 = vadd.f32 0.0, %v1392
  %v1394 = vpop.f32.mrb[0].mxu0
  %1395 = vmatprep.mubr.f32.mxu0 0.0
  %1396 = vmatmul.mubr.f32.gmra.mrb[0].mxu0 %v1324
  %v1397 = vpop.f32.mrb[0].mxu0
  %v1398 = vadd.f32 0.0, %v1397
  %v1399 = vpop.f32.mrb[0].mxu0
  %1400 = vdwg.mxu0
  %v1403 = vcombine.high %v1393, %v1393
  %v1405 = vunpack.c.l.s4 1966171168
  %v1406 = vunpack.c.0.s8 %v1405
  %v1407 = vlaneseq
  %v1408 = vshrl.u32 %v1407, 7
  %v1409 = vsub.s32 %v1406, %v1408
  %v1410 = vrot.slane %v1393, %v1409
  %v1412 = vunpack.c.l.s4 1966171168
  %v1413 = vunpack.c.0.s8 %v1412
  %v1414 = vlaneseq
  %v1415 = vshrl.u32 %v1414, 7
  %v1416 = vsub.s32 %v1413, %v1415
  %v1417 = vrot.slane %v1403, %v1416
  %v1418 = vcombine.high %v1410, %v1410
  %v1419 = vcombine.high %v1417, %v1417
  %v1421 = vunpack.c.l.s4 1966171168
  %v1422 = vunpack.c.0.s8 %v1421
  %v1423 = vlaneseq
  %v1424 = vshrl.u32 %v1423, 7
  %v1425 = vsub.s32 %v1422, %v1424
  %v1426 = vrot.slane %v1410, %v1425
  %v1428 = vunpack.c.l.s4 1966171168
  %v1429 = vunpack.c.0.s8 %v1428
  %v1430 = vlaneseq
  %v1431 = vshrl.u32 %v1430, 7
  %v1432 = vsub.s32 %v1429, %v1431
  %v1433 = vrot.slane %v1417, %v1432
  %v1435 = vunpack.c.l.s4 1966171168
  %v1436 = vunpack.c.0.s8 %v1435
  %v1437 = vlaneseq
  %v1438 = vshrl.u32 %v1437, 7
  %v1439 = vsub.s32 %v1436, %v1438
  %v1440 = vrot.slane %v1418, %v1439
  %v1442 = vunpack.c.l.s4 1966171168
  %v1443 = vunpack.c.0.s8 %v1442
  %v1444 = vlaneseq
  %v1445 = vshrl.u32 %v1444, 7
  %v1446 = vsub.s32 %v1443, %v1445
  %v1447 = vrot.slane %v1419, %v1446
  %v1448 = vcombine.high %v1426, %v1426
  %v1449 = vcombine.high %v1433, %v1433
  %v1450 = vcombine.high %v1440, %v1440
  %v1451 = vcombine.high %v1447, %v1447
  %v1452 = vcombine.high %v1398, %v1398
  %v1454 = vunpack.c.l.s4 1966171168
  %v1455 = vunpack.c.0.s8 %v1454
  %v1456 = vlaneseq
  %v1457 = vshrl.u32 %v1456, 7
  %v1458 = vsub.s32 %v1455, %v1457
  %v1459 = vrot.slane %v1398, %v1458
  %v1461 = vunpack.c.l.s4 1966171168
  %v1462 = vunpack.c.0.s8 %v1461
  %v1463 = vlaneseq
  %v1464 = vshrl.u32 %v1463, 7
  %v1465 = vsub.s32 %v1462, %v1464
  %v1466 = vrot.slane %v1452, %v1465
  %v1467 = vcombine.high %v1459, %v1459
  %v1468 = vcombine.high %v1466, %v1466
  %v1470 = vunpack.c.l.s4 1966171168
  %v1471 = vunpack.c.0.s8 %v1470
  %v1472 = vlaneseq
  %v1473 = vshrl.u32 %v1472, 7
  %v1474 = vsub.s32 %v1471, %v1473
  %v1475 = vrot.slane %v1459, %v1474
  %v1477 = vunpack.c.l.s4 1966171168
  %v1478 = vunpack.c.0.s8 %v1477
  %v1479 = vlaneseq
  %v1480 = vshrl.u32 %v1479, 7
  %v1481 = vsub.s32 %v1478, %v1480
  %v1482 = vrot.slane %v1466, %v1481
  %v1484 = vunpack.c.l.s4 1966171168
  %v1485 = vunpack.c.0.s8 %v1484
  %v1486 = vlaneseq
  %v1487 = vshrl.u32 %v1486, 7
  %v1488 = vsub.s32 %v1485, %v1487
  %v1489 = vrot.slane %v1467, %v1488
  %v1491 = vunpack.c.l.s4 1966171168
  %v1492 = vunpack.c.0.s8 %v1491
  %v1493 = vlaneseq
  %v1494 = vshrl.u32 %v1493, 7
  %v1495 = vsub.s32 %v1492, %v1494
  %v1496 = vrot.slane %v1468, %v1495
  %v1497 = vcombine.high %v1475, %v1475
  %v1498 = vcombine.high %v1489, %v1489
  %v1513 = vadd.f32 %v1112, %v1426
  %v1514 = vadd.f32 %v1113, %v1440
  %v1515 = vadd.f32 %v1114, %v1448
  %v1516 = vadd.f32 %v1115, %v1450
  %v1517 = vadd.f32 %v1116, %v1433
  %v1518 = vadd.f32 %v1117, %v1447
  %v1519 = vadd.f32 %v1118, %v1449
  %v1520 = vadd.f32 %v1119, %v1451
  %v1521 = vadd.f32 %v1120, %v1475
  %v1522 = vadd.f32 %v1121, %v1489
  %v1523 = vadd.f32 %v1122, %v1497
  %v1524 = vadd.f32 %v1123, %v1498
  %v1525 = vadd.f32 %v1124, %v1482
  %v1526 = vadd.f32 %v1125, %v1496
  %s1527 = scalar_lea.vmem %s3, 384
  %v1528 = vld [vmem:[%s1527] sm:$0xff]
  %v1529 = vld [vmem:[%s1527 + $0x8] sm:$0xff]
  %v1530 = vld [vmem:[%s1527 + $0x10] sm:$0xff]
  %v1531 = vld [vmem:[%s1527 + $0x18] sm:$0xff]
  %v1532 = vld [vmem:[%s1527 + $0x20] sm:$0xff]
  %v1533 = vld [vmem:[%s1527 + $0x28] sm:$0xff]
  %v1534 = vld [vmem:[%s1527 + $0x30] sm:$0xff]
  %v1535 = vld [vmem:[%s1527 + $0x38] sm:$0xff]
  %v1538 = vcombine.high %v56, %v56
  %v1540 = vunpack.c.l.s4 1966171168
  %v1541 = vunpack.c.0.s8 %v1540
  %v1542 = vlaneseq
  %v1543 = vshrl.u32 %v1542, 7
  %v1544 = vsub.s32 %v1541, %v1543
  %v1545 = vrot.slane %v56, %v1544
  %v1547 = vunpack.c.l.s4 1966171168
  %v1548 = vunpack.c.0.s8 %v1547
  %v1549 = vlaneseq
  %v1550 = vshrl.u32 %v1549, 7
  %v1551 = vsub.s32 %v1548, %v1550
  %v1552 = vrot.slane %v1538, %v1551
  %v1553 = vcombine.high %v1545, %v1545
  %v1554 = vcombine.high %v1552, %v1552
  %v1556 = vunpack.c.l.s4 1966171168
  %v1557 = vunpack.c.0.s8 %v1556
  %v1558 = vlaneseq
  %v1559 = vshrl.u32 %v1558, 7
  %v1560 = vsub.s32 %v1557, %v1559
  %v1561 = vrot.slane %v1545, %v1560
  %v1563 = vunpack.c.l.s4 1966171168
  %v1564 = vunpack.c.0.s8 %v1563
  %v1565 = vlaneseq
  %v1566 = vshrl.u32 %v1565, 7
  %v1567 = vsub.s32 %v1564, %v1566
  %v1568 = vrot.slane %v1552, %v1567
  %v1570 = vunpack.c.l.s4 1966171168
  %v1571 = vunpack.c.0.s8 %v1570
  %v1572 = vlaneseq
  %v1573 = vshrl.u32 %v1572, 7
  %v1574 = vsub.s32 %v1571, %v1573
  %v1575 = vrot.slane %v1553, %v1574
  %v1577 = vunpack.c.l.s4 1966171168
  %v1578 = vunpack.c.0.s8 %v1577
  %v1579 = vlaneseq
  %v1580 = vshrl.u32 %v1579, 7
  %v1581 = vsub.s32 %v1578, %v1580
  %v1582 = vrot.slane %v1554, %v1581
  %v1583 = vcombine.high %v1561, %v1561
  %v1584 = vcombine.high %v1568, %v1568
  %v1585 = vcombine.high %v1575, %v1575
  %v1586 = vcombine.high %v57, %v57
  %v1588 = vunpack.c.l.s4 1966171168
  %v1589 = vunpack.c.0.s8 %v1588
  %v1590 = vlaneseq
  %v1591 = vshrl.u32 %v1590, 7
  %v1592 = vsub.s32 %v1589, %v1591
  %v1593 = vrot.slane %v57, %v1592
  %v1595 = vunpack.c.l.s4 1966171168
  %v1596 = vunpack.c.0.s8 %v1595
  %v1597 = vlaneseq
  %v1598 = vshrl.u32 %v1597, 7
  %v1599 = vsub.s32 %v1596, %v1598
  %v1600 = vrot.slane %v1586, %v1599
  %v1601 = vcombine.high %v1593, %v1593
  %v1602 = vcombine.high %v1600, %v1600
  %v1604 = vunpack.c.l.s4 1966171168
  %v1605 = vunpack.c.0.s8 %v1604
  %v1606 = vlaneseq
  %v1607 = vshrl.u32 %v1606, 7
  %v1608 = vsub.s32 %v1605, %v1607
  %v1609 = vrot.slane %v1593, %v1608
  %v1611 = vunpack.c.l.s4 1966171168
  %v1612 = vunpack.c.0.s8 %v1611
  %v1613 = vlaneseq
  %v1614 = vshrl.u32 %v1613, 7
  %v1615 = vsub.s32 %v1612, %v1614
  %v1616 = vrot.slane %v1600, %v1615
  %v1618 = vunpack.c.l.s4 1966171168
  %v1619 = vunpack.c.0.s8 %v1618
  %v1620 = vlaneseq
  %v1621 = vshrl.u32 %v1620, 7
  %v1622 = vsub.s32 %v1619, %v1621
  %v1623 = vrot.slane %v1601, %v1622
  %v1625 = vunpack.c.l.s4 1966171168
  %v1626 = vunpack.c.0.s8 %v1625
  %v1627 = vlaneseq
  %v1628 = vshrl.u32 %v1627, 7
  %v1629 = vsub.s32 %v1626, %v1628
  %v1630 = vrot.slane %v1602, %v1629
  %v1631 = vcombine.high %v1609, %v1609
  %v1632 = vcombine.high %v1616, %v1616
  %v1633 = vcombine.high %v1623, %v1623
  %v1634 = vcombine.low %v1561, %v1575
  %v1635 = vcombine.low %v1583, %v1585
  %v1636 = vcombine.low %v1568, %v1582
  %v1637 = vcombine.low %v1584, %v1609
  %v1639 = vunpack.c.l.s4 1966171168
  %v1640 = vunpack.c.0.s8 %v1639
  %v1641 = vlaneseq
  %v1642 = vshrl.u32 %v1641, 7
  %v1643 = vsub.s32 %v1640, %v1642
  %v1644 = vrot.slane %v1634, %v1643
  %v1646 = vunpack.c.l.s4 1966171168
  %v1647 = vunpack.c.0.s8 %v1646
  %v1648 = vlaneseq
  %v1649 = vshrl.u32 %v1648, 7
  %v1650 = vsub.s32 %v1647, %v1649
  %v1651 = vrot.slane %v1635, %v1650
  %v1653 = vunpack.c.l.s4 1966171168
  %v1654 = vunpack.c.0.s8 %v1653
  %v1655 = vlaneseq
  %v1656 = vshrl.u32 %v1655, 7
  %v1657 = vsub.s32 %v1654, %v1656
  %v1658 = vrot.slane %v1636, %v1657
  %v1660 = vunpack.c.l.s4 1966171168
  %v1661 = vunpack.c.0.s8 %v1660
  %v1662 = vlaneseq
  %v1663 = vshrl.u32 %v1662, 7
  %v1664 = vsub.s32 %v1661, %v1663
  %v1665 = vrot.slane %v1637, %v1664
  %v1666 = vcombine.low %v1644, %v1651
  %v1667 = vcombine.low %v1658, %v1665
  %v1669 = vunpack.c.l.s4 1966171168
  %v1670 = vunpack.c.0.s8 %v1669
  %v1671 = vlaneseq
  %v1672 = vshrl.u32 %v1671, 7
  %v1673 = vsub.s32 %v1670, %v1672
  %v1674 = vrot.slane %v1666, %v1673
  %v1676 = vunpack.c.l.s4 1966171168
  %v1677 = vunpack.c.0.s8 %v1676
  %v1678 = vlaneseq
  %v1679 = vshrl.u32 %v1678, 7
  %v1680 = vsub.s32 %v1677, %v1679
  %v1681 = vrot.slane %v1667, %v1680
  %v1682 = vcombine.low %v1674, %v1681
  %v1683 = vcombine.low %v1623, %v1631
  %v1684 = vcombine.low %v1633, %v1616
  %v1685 = vcombine.low %v1630, %v1632
  %v1687 = vunpack.c.l.s4 1966171168
  %v1688 = vunpack.c.0.s8 %v1687
  %v1689 = vlaneseq
  %v1690 = vshrl.u32 %v1689, 7
  %v1691 = vsub.s32 %v1688, %v1690
  %v1692 = vrot.slane %v1683, %v1691
  %v1694 = vunpack.c.l.s4 1966171168
  %v1695 = vunpack.c.0.s8 %v1694
  %v1696 = vlaneseq
  %v1697 = vshrl.u32 %v1696, 7
  %v1698 = vsub.s32 %v1695, %v1697
  %v1699 = vrot.slane %v1684, %v1698
  %v1701 = vunpack.c.l.s4 1966171168
  %v1702 = vunpack.c.0.s8 %v1701
  %v1703 = vlaneseq
  %v1704 = vshrl.u32 %v1703, 7
  %v1705 = vsub.s32 %v1702, %v1704
  %v1706 = vrot.slane %v1685, %v1705
  %v1707 = vcombine.low %v1692, %v1699
  %v1709 = vunpack.c.l.s4 1966171168
  %v1710 = vunpack.c.0.s8 %v1709
  %v1711 = vlaneseq
  %v1712 = vshrl.u32 %v1711, 7
  %v1713 = vsub.s32 %v1710, %v1712
  %v1714 = vrot.slane %v1707, %v1713
  %v1716 = vunpack.c.l.s4 1966171168
  %v1717 = vunpack.c.0.s8 %v1716
  %v1718 = vlaneseq
  %v1719 = vshrl.u32 %v1718, 7
  %v1720 = vsub.s32 %v1717, %v1719
  %v1721 = vrot.slane %v1706, %v1720
  %v1722 = vcombine.low %v1714, %v1721
  %v1723 = vsel %vm267, %v1682, 0
  %v1725 = vsel %vm267, %v1722, 0
  %1727 = vmatprep.subr.mxu0 0.0
  %1728 = vmatpush1.msra.mxu0 %v1528
  %1729 = vmatprep.subr.mxu0 0.0
  %1730 = vmatpush1.msra.mxu0 %v1529
  %1731 = vmatprep.subr.mxu0 0.0
  %1732 = vmatpush1.msra.mxu0 %v1530
  %1733 = vmatprep.subr.mxu0 0.0
  %1734 = vmatpush1.msra.mxu0 %v1531
  %1735 = vmatprep.subr.mxu0 0.0
  %1736 = vmatpush1.msra.mxu0 %v1532
  %1737 = vmatprep.subr.mxu0 0.0
  %1738 = vmatpush1.msra.mxu0 %v1533
  %1739 = vmatprep.subr.mxu0 0.0
  %1740 = vmatpush1.msra.mxu0 %v1534
  %1741 = vmatprep.subr.mxu0 0.0
  %1742 = vmatpush1.msra.mxu0 %v1535
  %1743 = vmatprep.subr.mxu0 0.0
  %1744 = vmatpush1.msra.mxu0 0.0
  %1745 = vmatprep.subr.mxu0 0.0
  %1746 = vmatpush1.msra.mxu0 0.0
  %1747 = vmatprep.subr.mxu0 0.0
  %1748 = vmatpush1.msra.mxu0 0.0
  %1749 = vmatprep.subr.mxu0 0.0
  %1750 = vmatpush1.msra.mxu0 0.0
  %1751 = vmatprep.subr.mxu0 0.0
  %1752 = vmatpush1.msra.mxu0 0.0
  %1753 = vmatprep.subr.mxu0 0.0
  %1754 = vmatpush1.msra.mxu0 0.0
  %1755 = vmatprep.subr.mxu0 0.0
  %1756 = vmatpush1.msra.mxu0 0.0
  %1757 = vmatprep.subr.mxu0 0.0
  %1758 = vmatpush1.msra.mxu0 0.0
  %1759 = vmatprep.subr.mxu0 0.0
  %1760 = vmatpush1.msra.mxu0 0.0
  %1761 = vmatprep.subr.mxu0 0.0
  %1762 = vmatpush1.msra.mxu0 0.0
  %1763 = vmatprep.subr.mxu0 0.0
  %1764 = vmatpush1.msra.mxu0 0.0
  %1765 = vmatprep.subr.mxu0 0.0
  %1766 = vmatpush1.msra.mxu0 0.0
  %1767 = vmatprep.subr.mxu0 0.0
  %1768 = vmatpush1.msra.mxu0 0.0
  %1769 = vmatprep.subr.mxu0 0.0
  %1770 = vmatpush1.msra.mxu0 0.0
  %1771 = vmatprep.subr.mxu0 0.0
  %1772 = vmatpush1.msra.mxu0 0.0
  %1773 = vmatprep.subr.mxu0 0.0
  %1774 = vmatpush1.msra.mxu0 0.0
  %1775 = vmatprep.subr.mxu0 0.0
  %1776 = vmatpush1.msra.mxu0 0.0
  %1777 = vmatprep.subr.mxu0 0.0
  %1778 = vmatpush1.msra.mxu0 0.0
  %1779 = vmatprep.subr.mxu0 0.0
  %1780 = vmatpush1.msra.mxu0 0.0
  %1781 = vmatprep.subr.mxu0 0.0
  %1782 = vmatpush1.msra.mxu0 0.0
  %1783 = vmatprep.subr.mxu0 0.0
  %1784 = vmatpush1.msra.mxu0 0.0
  %1785 = vmatprep.subr.mxu0 0.0
  %1786 = vmatpush1.msra.mxu0 0.0
  %1787 = vmatprep.subr.mxu0 0.0
  %1788 = vmatpush1.msra.mxu0 0.0
  %1789 = vmatprep.subr.mxu0 0.0
  %1790 = vmatpush1.msra.mxu0 0.0
  %1791 = vmatprep.mubr.f32.mxu0 0.0
  %1792 = vmatmul.mubr.f32.gmra.mrb[0].mxu0 %v1723
  %v1793 = vpop.f32.mrb[0].mxu0
  %v1794 = vadd.f32 0.0, %v1793
  %v1795 = vpop.f32.mrb[0].mxu0
  %1796 = vmatprep.mubr.f32.mxu0 0.0
  %1797 = vmatmul.mubr.f32.gmra.mrb[0].mxu0 %v1725
  %v1798 = vpop.f32.mrb[0].mxu0
  %v1799 = vadd.f32 0.0, %v1798
  %v1800 = vpop.f32.mrb[0].mxu0
  %1801 = vdwg.mxu0
  %v1804 = vcombine.high %v1794, %v1794
  %v1806 = vunpack.c.l.s4 1966171168
  %v1807 = vunpack.c.0.s8 %v1806
  %v1808 = vlaneseq
  %v1809 = vshrl.u32 %v1808, 7
  %v1810 = vsub.s32 %v1807, %v1809
  %v1811 = vrot.slane %v1794, %v1810
  %v1813 = vunpack.c.l.s4 1966171168
  %v1814 = vunpack.c.0.s8 %v1813
  %v1815 = vlaneseq
  %v1816 = vshrl.u32 %v1815, 7
  %v1817 = vsub.s32 %v1814, %v1816
  %v1818 = vrot.slane %v1804, %v1817
  %v1819 = vcombine.high %v1811, %v1811
  %v1820 = vcombine.high %v1818, %v1818
  %v1822 = vunpack.c.l.s4 1966171168
  %v1823 = vunpack.c.0.s8 %v1822
  %v1824 = vlaneseq
  %v1825 = vshrl.u32 %v1824, 7
  %v1826 = vsub.s32 %v1823, %v1825
  %v1827 = vrot.slane %v1811, %v1826
  %v1829 = vunpack.c.l.s4 1966171168
  %v1830 = vunpack.c.0.s8 %v1829
  %v1831 = vlaneseq
  %v1832 = vshrl.u32 %v1831, 7
  %v1833 = vsub.s32 %v1830, %v1832
  %v1834 = vrot.slane %v1818, %v1833
  %v1836 = vunpack.c.l.s4 1966171168
  %v1837 = vunpack.c.0.s8 %v1836
  %v1838 = vlaneseq
  %v1839 = vshrl.u32 %v1838, 7
  %v1840 = vsub.s32 %v1837, %v1839
  %v1841 = vrot.slane %v1819, %v1840
  %v1843 = vunpack.c.l.s4 1966171168
  %v1844 = vunpack.c.0.s8 %v1843
  %v1845 = vlaneseq
  %v1846 = vshrl.u32 %v1845, 7
  %v1847 = vsub.s32 %v1844, %v1846
  %v1848 = vrot.slane %v1820, %v1847
  %v1849 = vcombine.high %v1827, %v1827
  %v1850 = vcombine.high %v1834, %v1834
  %v1851 = vcombine.high %v1841, %v1841
  %v1852 = vcombine.high %v1848, %v1848
  %v1853 = vcombine.high %v1799, %v1799
  %v1855 = vunpack.c.l.s4 1966171168
  %v1856 = vunpack.c.0.s8 %v1855
  %v1857 = vlaneseq
  %v1858 = vshrl.u32 %v1857, 7
  %v1859 = vsub.s32 %v1856, %v1858
  %v1860 = vrot.slane %v1799, %v1859
  %v1862 = vunpack.c.l.s4 1966171168
  %v1863 = vunpack.c.0.s8 %v1862
  %v1864 = vlaneseq
  %v1865 = vshrl.u32 %v1864, 7
  %v1866 = vsub.s32 %v1863, %v1865
  %v1867 = vrot.slane %v1853, %v1866
  %v1868 = vcombine.high %v1860, %v1860
  %v1869 = vcombine.high %v1867, %v1867
  %v1871 = vunpack.c.l.s4 1966171168
  %v1872 = vunpack.c.0.s8 %v1871
  %v1873 = vlaneseq
  %v1874 = vshrl.u32 %v1873, 7
  %v1875 = vsub.s32 %v1872, %v1874
  %v1876 = vrot.slane %v1860, %v1875
  %v1878 = vunpack.c.l.s4 1966171168
  %v1879 = vunpack.c.0.s8 %v1878
  %v1880 = vlaneseq
  %v1881 = vshrl.u32 %v1880, 7
  %v1882 = vsub.s32 %v1879, %v1881
  %v1883 = vrot.slane %v1867, %v1882
  %v1885 = vunpack.c.l.s4 1966171168
  %v1886 = vunpack.c.0.s8 %v1885
  %v1887 = vlaneseq
  %v1888 = vshrl.u32 %v1887, 7
  %v1889 = vsub.s32 %v1886, %v1888
  %v1890 = vrot.slane %v1868, %v1889
  %v1892 = vunpack.c.l.s4 1966171168
  %v1893 = vunpack.c.0.s8 %v1892
  %v1894 = vlaneseq
  %v1895 = vshrl.u32 %v1894, 7
  %v1896 = vsub.s32 %v1893, %v1895
  %v1897 = vrot.slane %v1869, %v1896
  %v1898 = vcombine.high %v1876, %v1876
  %v1899 = vcombine.high %v1890, %v1890
  %v1914 = vadd.f32 %v1513, %v1827
  %v1915 = vadd.f32 %v1514, %v1841
  %v1916 = vadd.f32 %v1515, %v1849
  %v1917 = vadd.f32 %v1516, %v1851
  %v1918 = vadd.f32 %v1517, %v1834
  %v1919 = vadd.f32 %v1518, %v1848
  %v1920 = vadd.f32 %v1519, %v1850
  %v1921 = vadd.f32 %v1520, %v1852
  %v1922 = vadd.f32 %v1521, %v1876
  %v1923 = vadd.f32 %v1522, %v1890
  %v1924 = vadd.f32 %v1523, %v1898
  %v1925 = vadd.f32 %v1524, %v1899
  %v1926 = vadd.f32 %v1525, %v1883
  %v1927 = vadd.f32 %v1526, %v1897
  %v1929 = vlaneseq
  %v1930 = vshrl.u32 %v1929, 7
  %v1931 = vsub.s32 0, %v1930
  %v1932 = vrot.slane %v62, %v1931
  %v1933 = vcombine.high %v1932, %v1932
  %v1935 = vunpack.c.l.s4 1966171168
  %v1936 = vunpack.c.0.s8 %v1935
  %v1937 = vlaneseq
  %v1938 = vshrl.u32 %v1937, 7
  %v1939 = vsub.s32 %v1936, %v1938
  %v1940 = vrot.slane %v1932, %v1939
  %v1942 = vunpack.c.l.s4 1966171168
  %v1943 = vunpack.c.0.s8 %v1942
  %v1944 = vlaneseq
  %v1945 = vshrl.u32 %v1944, 7
  %v1946 = vsub.s32 %v1943, %v1945
  %v1947 = vrot.slane %v1933, %v1946
  %v1948 = vcombine.high %v1940, %v1940
  %v1949 = vcombine.high %v1947, %v1947
  %v1951 = vunpack.c.l.s4 1966171168
  %v1952 = vunpack.c.0.s8 %v1951
  %v1953 = vlaneseq
  %v1954 = vshrl.u32 %v1953, 7
  %v1955 = vsub.s32 %v1952, %v1954
  %v1956 = vrot.slane %v1940, %v1955
  %v1958 = vunpack.c.l.s4 1966171168
  %v1959 = vunpack.c.0.s8 %v1958
  %v1960 = vlaneseq
  %v1961 = vshrl.u32 %v1960, 7
  %v1962 = vsub.s32 %v1959, %v1961
  %v1963 = vrot.slane %v1947, %v1962
  %v1965 = vunpack.c.l.s4 1966171168
  %v1966 = vunpack.c.0.s8 %v1965
  %v1967 = vlaneseq
  %v1968 = vshrl.u32 %v1967, 7
  %v1969 = vsub.s32 %v1966, %v1968
  %v1970 = vrot.slane %v1948, %v1969
  %v1972 = vunpack.c.l.s4 1966171168
  %v1973 = vunpack.c.0.s8 %v1972
  %v1974 = vlaneseq
  %v1975 = vshrl.u32 %v1974, 7
  %v1976 = vsub.s32 %v1973, %v1975
  %v1977 = vrot.slane %v1949, %v1976
  %v1978 = vcombine.high %v1956, %v1956
  %v1979 = vcombine.high %v1963, %v1963
  %v1980 = vcombine.high %v1970, %v1970
  %v1988 = vadd.f32 %v1914, %v1956
  %v1989 = vadd.f32 %v1915, %v1970
  %v1990 = vadd.f32 %v1916, %v1978
  %v1991 = vadd.f32 %v1917, %v1980
  %v1992 = vadd.f32 %v1918, %v1963
  %v1993 = vadd.f32 %v1919, %v1977
  %v1994 = vadd.f32 %v1920, %v1979
  %v1995 = vadd.f32 %v1921, %v1956
  %v1996 = vadd.f32 %v1922, %v1970
  %v1997 = vadd.f32 %v1923, %v1978
  %v1998 = vadd.f32 %v1924, %v1980
  %v1999 = vadd.f32 %v1925, %v1963
  %v2000 = vadd.f32 %v1926, %v1977
  %v2001 = vadd.f32 %v1927, %v1979
  %s2002 = scalar_lea.vmem %s3, 128
  %v2003 = vld [vmem:[%s2002] sm:$0xff]
  %v2004 = vld [vmem:[%s2002 + $0x8] sm:$0xff]
  %v2005 = vld [vmem:[%s2002 + $0x10] sm:$0xff]
  %v2006 = vld [vmem:[%s2002 + $0x18] sm:$0xff]
  %v2007 = vld [vmem:[%s2002 + $0x20] sm:$0xff]
  %v2008 = vld [vmem:[%s2002 + $0x28] sm:$0xff]
  %v2009 = vld [vmem:[%s2002 + $0x30] sm:$0xff]
  %v2010 = vld [vmem:[%s2002 + $0x38] sm:$0xff]
  %s2011 = scalar_lea.vmem %s3, 192
  %v2012 = vld [vmem:[%s2011] sm:$0xff]
  %v2013 = vld [vmem:[%s2011 + $0x8] sm:$0xff]
  %v2014 = vld [vmem:[%s2011 + $0x10] sm:$0xff]
  %v2015 = vld [vmem:[%s2011 + $0x18] sm:$0xff]
  %v2016 = vld [vmem:[%s2011 + $0x20] sm:$0xff]
  %v2017 = vld [vmem:[%s2011 + $0x28] sm:$0xff]
  %v2018 = vld [vmem:[%s2011 + $0x30] sm:$0xff]
  %v2019 = vld [vmem:[%s2011 + $0x38] sm:$0xff]
  %2020 = vmatprep.subr.mxu0 0.0
  %2021 = vmatpush1.msra.mxu0 %v2012
  %2022 = vmatprep.subr.mxu0 0.0
  %2023 = vmatpush1.msra.mxu0 %v2013
  %2024 = vmatprep.subr.mxu0 0.0
  %2025 = vmatpush1.msra.mxu0 %v2014
  %2026 = vmatprep.subr.mxu0 0.0
  %2027 = vmatpush1.msra.mxu0 %v2015
  %2028 = vmatprep.subr.mxu0 0.0
  %2029 = vmatpush1.msra.mxu0 %v2016
  %2030 = vmatprep.subr.mxu0 0.0
  %2031 = vmatpush1.msra.mxu0 %v2017
  %2032 = vmatprep.subr.mxu0 0.0
  %2033 = vmatpush1.msra.mxu0 %v2018
  %2034 = vmatprep.subr.mxu0 0.0
  %2035 = vmatpush1.msra.mxu0 %v2019
  %2036 = vmatprep.subr.mxu0 0.0
  %2037 = vmatpush1.msra.mxu0 0.0
  %2038 = vmatprep.subr.mxu0 0.0
  %2039 = vmatpush1.msra.mxu0 0.0
  %2040 = vmatprep.subr.mxu0 0.0
  %2041 = vmatpush1.msra.mxu0 0.0
  %2042 = vmatprep.subr.mxu0 0.0
  %2043 = vmatpush1.msra.mxu0 0.0
  %2044 = vmatprep.subr.mxu0 0.0
  %2045 = vmatpush1.msra.mxu0 0.0
  %2046 = vmatprep.subr.mxu0 0.0
  %2047 = vmatpush1.msra.mxu0 0.0
  %2048 = vmatprep.subr.mxu0 0.0
  %2049 = vmatpush1.msra.mxu0 0.0
  %2050 = vmatprep.subr.mxu0 0.0
  %2051 = vmatpush1.msra.mxu0 0.0
  %2052 = vmatprep.subr.mxu0 0.0
  %2053 = vmatpush1.msra.mxu0 0.0
  %2054 = vmatprep.subr.mxu0 0.0
  %2055 = vmatpush1.msra.mxu0 0.0
  %2056 = vmatprep.subr.mxu0 0.0
  %2057 = vmatpush1.msra.mxu0 0.0
  %2058 = vmatprep.subr.mxu0 0.0
  %2059 = vmatpush1.msra.mxu0 0.0
  %2060 = vmatprep.subr.mxu0 0.0
  %2061 = vmatpush1.msra.mxu0 0.0
  %2062 = vmatprep.subr.mxu0 0.0
  %2063 = vmatpush1.msra.mxu0 0.0
  %2064 = vmatprep.subr.mxu0 0.0
  %2065 = vmatpush1.msra.mxu0 0.0
  %2066 = vmatprep.subr.mxu0 0.0
  %2067 = vmatpush1.msra.mxu0 0.0
  %2068 = vmatprep.subr.mxu0 0.0
  %2069 = vmatpush1.msra.mxu0 0.0
  %2070 = vmatprep.subr.mxu0 0.0
  %2071 = vmatpush1.msra.mxu0 0.0
  %2072 = vmatprep.subr.mxu0 0.0
  %2073 = vmatpush1.msra.mxu0 0.0
  %2074 = vmatprep.subr.mxu0 0.0
  %2075 = vmatpush1.msra.mxu0 0.0
  %2076 = vmatprep.subr.mxu0 0.0
  %2077 = vmatpush1.msra.mxu0 0.0
  %2078 = vmatprep.subr.mxu0 0.0
  %2079 = vmatpush1.msra.mxu0 0.0
  %2080 = vmatprep.subr.mxu0 0.0
  %2081 = vmatpush1.msra.mxu0 0.0
  %2082 = vmatprep.subr.mxu0 0.0
  %2083 = vmatpush1.msra.mxu0 0.0
  %2084 = vmatprep.mubr.f32.mxu0 0.0
  %2085 = vmatmul.mubr.f32.gmra.mrb[0].mxu0 %v268
  %v2086 = vpop.f32.mrb[0].mxu0
  %v2087 = vadd.f32 0.0, %v2086
  %v2088 = vpop.f32.mrb[0].mxu0
  %2089 = vmatprep.mubr.f32.mxu0 0.0
  %2090 = vmatmul.mubr.f32.gmra.mrb[0].mxu0 %v270
  %v2091 = vpop.f32.mrb[0].mxu0
  %v2092 = vadd.f32 0.0, %v2091
  %v2093 = vpop.f32.mrb[0].mxu0
  %2094 = vdwg.mxu0
  %2095 = vmatprep.subr.mxu0 0.0
  %2096 = vmatpush1.msra.mxu0 %v2003
  %2097 = vmatprep.subr.mxu0 0.0
  %2098 = vmatpush1.msra.mxu0 %v2004
  %2099 = vmatprep.subr.mxu0 0.0
  %2100 = vmatpush1.msra.mxu0 %v2005
  %2101 = vmatprep.subr.mxu0 0.0
  %2102 = vmatpush1.msra.mxu0 %v2006
  %2103 = vmatprep.subr.mxu0 0.0
  %2104 = vmatpush1.msra.mxu0 %v2007
  %2105 = vmatprep.subr.mxu0 0.0
  %2106 = vmatpush1.msra.mxu0 %v2008
  %2107 = vmatprep.subr.mxu0 0.0
  %2108 = vmatpush1.msra.mxu0 %v2009
  %2109 = vmatprep.subr.mxu0 0.0
  %2110 = vmatpush1.msra.mxu0 %v2010
  %2111 = vmatprep.subr.mxu0 0.0
  %2112 = vmatpush1.msra.mxu0 0.0
  %2113 = vmatprep.subr.mxu0 0.0
  %2114 = vmatpush1.msra.mxu0 0.0
  %2115 = vmatprep.subr.mxu0 0.0
  %2116 = vmatpush1.msra.mxu0 0.0
  %2117 = vmatprep.subr.mxu0 0.0
  %2118 = vmatpush1.msra.mxu0 0.0
  %2119 = vmatprep.subr.mxu0 0.0
  %2120 = vmatpush1.msra.mxu0 0.0
  %2121 = vmatprep.subr.mxu0 0.0
  %2122 = vmatpush1.msra.mxu0 0.0
  %2123 = vmatprep.subr.mxu0 0.0
  %2124 = vmatpush1.msra.mxu0 0.0
  %2125 = vmatprep.subr.mxu0 0.0
  %2126 = vmatpush1.msra.mxu0 0.0
  %2127 = vmatprep.subr.mxu0 0.0
  %2128 = vmatpush1.msra.mxu0 0.0
  %2129 = vmatprep.subr.mxu0 0.0
  %2130 = vmatpush1.msra.mxu0 0.0
  %2131 = vmatprep.subr.mxu0 0.0
  %2132 = vmatpush1.msra.mxu0 0.0
  %2133 = vmatprep.subr.mxu0 0.0
  %2134 = vmatpush1.msra.mxu0 0.0
  %2135 = vmatprep.subr.mxu0 0.0
  %2136 = vmatpush1.msra.mxu0 0.0
  %2137 = vmatprep.subr.mxu0 0.0
  %2138 = vmatpush1.msra.mxu0 0.0
  %2139 = vmatprep.subr.mxu0 0.0
  %2140 = vmatpush1.msra.mxu0 0.0
  %2141 = vmatprep.subr.mxu0 0.0
  %2142 = vmatpush1.msra.mxu0 0.0
  %2143 = vmatprep.subr.mxu0 0.0
  %2144 = vmatpush1.msra.mxu0 0.0
  %2145 = vmatprep.subr.mxu0 0.0
  %2146 = vmatpush1.msra.mxu0 0.0
  %2147 = vmatprep.subr.mxu0 0.0
  %2148 = vmatpush1.msra.mxu0 0.0
  %2149 = vmatprep.subr.mxu0 0.0
  %2150 = vmatpush1.msra.mxu0 0.0
  %2151 = vmatprep.subr.mxu0 0.0
  %2152 = vmatpush1.msra.mxu0 0.0
  %2153 = vmatprep.subr.mxu0 0.0
  %2154 = vmatpush1.msra.mxu0 0.0
  %2155 = vmatprep.subr.mxu0 0.0
  %2156 = vmatpush1.msra.mxu0 0.0
  %2157 = vmatprep.subr.mxu0 0.0
  %2158 = vmatpush1.msra.mxu0 0.0
  %2159 = vmatprep.mubr.f32.mxu0 0.0
  %2160 = vmatmul.mubr.f32.gmra.mrb[0].mxu0 %v534
  %v2161 = vpop.f32.mrb[0].mxu0
  %v2162 = vadd.f32 %v2087, %v2161
  %v2163 = vpop.f32.mrb[0].mxu0
  %2164 = vmatprep.mubr.f32.mxu0 0.0
  %2165 = vmatmul.mubr.f32.gmra.mrb[0].mxu0 %v536
  %v2166 = vpop.f32.mrb[0].mxu0
  %v2167 = vadd.f32 %v2092, %v2166
  %v2168 = vpop.f32.mrb[0].mxu0
  %2169 = vdwg.mxu0
  %v2172 = vcombine.high %v2162, %v2162
  %v2174 = vunpack.c.l.s4 1966171168
  %v2175 = vunpack.c.0.s8 %v2174
  %v2176 = vlaneseq
  %v2177 = vshrl.u32 %v2176, 7
  %v2178 = vsub.s32 %v2175, %v2177
  %v2179 = vrot.slane %v2162, %v2178
  %v2181 = vunpack.c.l.s4 1966171168
  %v2182 = vunpack.c.0.s8 %v2181
  %v2183 = vlaneseq
  %v2184 = vshrl.u32 %v2183, 7
  %v2185 = vsub.s32 %v2182, %v2184
  %v2186 = vrot.slane %v2172, %v2185
  %v2187 = vcombine.high %v2179, %v2179
  %v2188 = vcombine.high %v2186, %v2186
  %v2190 = vunpack.c.l.s4 1966171168
  %v2191 = vunpack.c.0.s8 %v2190
  %v2192 = vlaneseq
  %v2193 = vshrl.u32 %v2192, 7
  %v2194 = vsub.s32 %v2191, %v2193
  %v2195 = vrot.slane %v2179, %v2194
  %v2197 = vunpack.c.l.s4 1966171168
  %v2198 = vunpack.c.0.s8 %v2197
  %v2199 = vlaneseq
  %v2200 = vshrl.u32 %v2199, 7
  %v2201 = vsub.s32 %v2198, %v2200
  %v2202 = vrot.slane %v2186, %v2201
  %v2204 = vunpack.c.l.s4 1966171168
  %v2205 = vunpack.c.0.s8 %v2204
  %v2206 = vlaneseq
  %v2207 = vshrl.u32 %v2206, 7
  %v2208 = vsub.s32 %v2205, %v2207
  %v2209 = vrot.slane %v2187, %v2208
  %v2211 = vunpack.c.l.s4 1966171168
  %v2212 = vunpack.c.0.s8 %v2211
  %v2213 = vlaneseq
  %v2214 = vshrl.u32 %v2213, 7
  %v2215 = vsub.s32 %v2212, %v2214
  %v2216 = vrot.slane %v2188, %v2215
  %v2217 = vcombine.high %v2195, %v2195
  %v2218 = vcombine.high %v2202, %v2202
  %v2219 = vcombine.high %v2209, %v2209
  %v2220 = vcombine.high %v2216, %v2216
  %v2221 = vcombine.high %v2167, %v2167
  %v2223 = vunpack.c.l.s4 1966171168
  %v2224 = vunpack.c.0.s8 %v2223
  %v2225 = vlaneseq
  %v2226 = vshrl.u32 %v2225, 7
  %v2227 = vsub.s32 %v2224, %v2226
  %v2228 = vrot.slane %v2167, %v2227
  %v2230 = vunpack.c.l.s4 1966171168
  %v2231 = vunpack.c.0.s8 %v2230
  %v2232 = vlaneseq
  %v2233 = vshrl.u32 %v2232, 7
  %v2234 = vsub.s32 %v2231, %v2233
  %v2235 = vrot.slane %v2221, %v2234
  %v2236 = vcombine.high %v2228, %v2228
  %v2237 = vcombine.high %v2235, %v2235
  %v2239 = vunpack.c.l.s4 1966171168
  %v2240 = vunpack.c.0.s8 %v2239
  %v2241 = vlaneseq
  %v2242 = vshrl.u32 %v2241, 7
  %v2243 = vsub.s32 %v2240, %v2242
  %v2244 = vrot.slane %v2228, %v2243
  %v2246 = vunpack.c.l.s4 1966171168
  %v2247 = vunpack.c.0.s8 %v2246
  %v2248 = vlaneseq
  %v2249 = vshrl.u32 %v2248, 7
  %v2250 = vsub.s32 %v2247, %v2249
  %v2251 = vrot.slane %v2235, %v2250
  %v2253 = vunpack.c.l.s4 1966171168
  %v2254 = vunpack.c.0.s8 %v2253
  %v2255 = vlaneseq
  %v2256 = vshrl.u32 %v2255, 7
  %v2257 = vsub.s32 %v2254, %v2256
  %v2258 = vrot.slane %v2236, %v2257
  %v2260 = vunpack.c.l.s4 1966171168
  %v2261 = vunpack.c.0.s8 %v2260
  %v2262 = vlaneseq
  %v2263 = vshrl.u32 %v2262, 7
  %v2264 = vsub.s32 %v2261, %v2263
  %v2265 = vrot.slane %v2237, %v2264
  %v2266 = vcombine.high %v2244, %v2244
  %v2267 = vcombine.high %v2258, %v2258
  %2282 = vmatprep.subr.mxu0 0.0
  %2283 = vmatpush1.msra.mxu0 %v726
  %2284 = vmatprep.subr.mxu0 0.0
  %2285 = vmatpush1.msra.mxu0 %v727
  %2286 = vmatprep.subr.mxu0 0.0
  %2287 = vmatpush1.msra.mxu0 %v728
  %2288 = vmatprep.subr.mxu0 0.0
  %2289 = vmatpush1.msra.mxu0 %v729
  %2290 = vmatprep.subr.mxu0 0.0
  %2291 = vmatpush1.msra.mxu0 %v730
  %2292 = vmatprep.subr.mxu0 0.0
  %2293 = vmatpush1.msra.mxu0 %v731
  %2294 = vmatprep.subr.mxu0 0.0
  %2295 = vmatpush1.msra.mxu0 %v732
  %2296 = vmatprep.subr.mxu0 0.0
  %2297 = vmatpush1.msra.mxu0 %v733
  %2298 = vmatprep.subr.mxu0 0.0
  %2299 = vmatpush1.msra.mxu0 0.0
  %2300 = vmatprep.subr.mxu0 0.0
  %2301 = vmatpush1.msra.mxu0 0.0
  %2302 = vmatprep.subr.mxu0 0.0
  %2303 = vmatpush1.msra.mxu0 0.0
  %2304 = vmatprep.subr.mxu0 0.0
  %2305 = vmatpush1.msra.mxu0 0.0
  %2306 = vmatprep.subr.mxu0 0.0
  %2307 = vmatpush1.msra.mxu0 0.0
  %2308 = vmatprep.subr.mxu0 0.0
  %2309 = vmatpush1.msra.mxu0 0.0
  %2310 = vmatprep.subr.mxu0 0.0
  %2311 = vmatpush1.msra.mxu0 0.0
  %2312 = vmatprep.subr.mxu0 0.0
  %2313 = vmatpush1.msra.mxu0 0.0
  %2314 = vmatprep.subr.mxu0 0.0
  %2315 = vmatpush1.msra.mxu0 0.0
  %2316 = vmatprep.subr.mxu0 0.0
  %2317 = vmatpush1.msra.mxu0 0.0
  %2318 = vmatprep.subr.mxu0 0.0
  %2319 = vmatpush1.msra.mxu0 0.0
  %2320 = vmatprep.subr.mxu0 0.0
  %2321 = vmatpush1.msra.mxu0 0.0
  %2322 = vmatprep.subr.mxu0 0.0
  %2323 = vmatpush1.msra.mxu0 0.0
  %2324 = vmatprep.subr.mxu0 0.0
  %2325 = vmatpush1.msra.mxu0 0.0
  %2326 = vmatprep.subr.mxu0 0.0
  %2327 = vmatpush1.msra.mxu0 0.0
  %2328 = vmatprep.subr.mxu0 0.0
  %2329 = vmatpush1.msra.mxu0 0.0
  %2330 = vmatprep.subr.mxu0 0.0
  %2331 = vmatpush1.msra.mxu0 0.0
  %2332 = vmatprep.subr.mxu0 0.0
  %2333 = vmatpush1.msra.mxu0 0.0
  %2334 = vmatprep.subr.mxu0 0.0
  %2335 = vmatpush1.msra.mxu0 0.0
  %2336 = vmatprep.subr.mxu0 0.0
  %2337 = vmatpush1.msra.mxu0 0.0
  %2338 = vmatprep.subr.mxu0 0.0
  %2339 = vmatpush1.msra.mxu0 0.0
  %2340 = vmatprep.subr.mxu0 0.0
  %2341 = vmatpush1.msra.mxu0 0.0
  %2342 = vmatprep.subr.mxu0 0.0
  %2343 = vmatpush1.msra.mxu0 0.0
  %2344 = vmatprep.subr.mxu0 0.0
  %2345 = vmatpush1.msra.mxu0 0.0
  %2346 = vmatprep.mubr.f32.mxu0 0.0
  %2347 = vmatmul.mubr.f32.gmra.mrb[0].mxu0 %v1322
  %v2348 = vpop.f32.mrb[0].mxu0
  %v2349 = vadd.f32 0.0, %v2348
  %v2350 = vpop.f32.mrb[0].mxu0
  %2351 = vmatprep.mubr.f32.mxu0 0.0
  %2352 = vmatmul.mubr.f32.gmra.mrb[0].mxu0 %v1324
  %v2353 = vpop.f32.mrb[0].mxu0
  %v2354 = vadd.f32 0.0, %v2353
  %v2355 = vpop.f32.mrb[0].mxu0
  %2356 = vdwg.mxu0
  %v2359 = vcombine.high %v2349, %v2349
  %v2361 = vunpack.c.l.s4 1966171168
  %v2362 = vunpack.c.0.s8 %v2361
  %v2363 = vlaneseq
  %v2364 = vshrl.u32 %v2363, 7
  %v2365 = vsub.s32 %v2362, %v2364
  %v2366 = vrot.slane %v2349, %v2365
  %v2368 = vunpack.c.l.s4 1966171168
  %v2369 = vunpack.c.0.s8 %v2368
  %v2370 = vlaneseq
  %v2371 = vshrl.u32 %v2370, 7
  %v2372 = vsub.s32 %v2369, %v2371
  %v2373 = vrot.slane %v2359, %v2372
  %v2374 = vcombine.high %v2366, %v2366
  %v2375 = vcombine.high %v2373, %v2373
  %v2377 = vunpack.c.l.s4 1966171168
  %v2378 = vunpack.c.0.s8 %v2377
  %v2379 = vlaneseq
  %v2380 = vshrl.u32 %v2379, 7
  %v2381 = vsub.s32 %v2378, %v2380
  %v2382 = vrot.slane %v2366, %v2381
  %v2384 = vunpack.c.l.s4 1966171168
  %v2385 = vunpack.c.0.s8 %v2384
  %v2386 = vlaneseq
  %v2387 = vshrl.u32 %v2386, 7
  %v2388 = vsub.s32 %v2385, %v2387
  %v2389 = vrot.slane %v2373, %v2388
  %v2391 = vunpack.c.l.s4 1966171168
  %v2392 = vunpack.c.0.s8 %v2391
  %v2393 = vlaneseq
  %v2394 = vshrl.u32 %v2393, 7
  %v2395 = vsub.s32 %v2392, %v2394
  %v2396 = vrot.slane %v2374, %v2395
  %v2398 = vunpack.c.l.s4 1966171168
  %v2399 = vunpack.c.0.s8 %v2398
  %v2400 = vlaneseq
  %v2401 = vshrl.u32 %v2400, 7
  %v2402 = vsub.s32 %v2399, %v2401
  %v2403 = vrot.slane %v2375, %v2402
  %v2404 = vcombine.high %v2382, %v2382
  %v2405 = vcombine.high %v2389, %v2389
  %v2406 = vcombine.high %v2396, %v2396
  %v2407 = vcombine.high %v2403, %v2403
  %v2408 = vcombine.high %v2354, %v2354
  %v2410 = vunpack.c.l.s4 1966171168
  %v2411 = vunpack.c.0.s8 %v2410
  %v2412 = vlaneseq
  %v2413 = vshrl.u32 %v2412, 7
  %v2414 = vsub.s32 %v2411, %v2413
  %v2415 = vrot.slane %v2354, %v2414
  %v2417 = vunpack.c.l.s4 1966171168
  %v2418 = vunpack.c.0.s8 %v2417
  %v2419 = vlaneseq
  %v2420 = vshrl.u32 %v2419, 7
  %v2421 = vsub.s32 %v2418, %v2420
  %v2422 = vrot.slane %v2408, %v2421
  %v2423 = vcombine.high %v2415, %v2415
  %v2424 = vcombine.high %v2422, %v2422
  %v2426 = vunpack.c.l.s4 1966171168
  %v2427 = vunpack.c.0.s8 %v2426
  %v2428 = vlaneseq
  %v2429 = vshrl.u32 %v2428, 7
  %v2430 = vsub.s32 %v2427, %v2429
  %v2431 = vrot.slane %v2415, %v2430
  %v2433 = vunpack.c.l.s4 1966171168
  %v2434 = vunpack.c.0.s8 %v2433
  %v2435 = vlaneseq
  %v2436 = vshrl.u32 %v2435, 7
  %v2437 = vsub.s32 %v2434, %v2436
  %v2438 = vrot.slane %v2422, %v2437
  %v2440 = vunpack.c.l.s4 1966171168
  %v2441 = vunpack.c.0.s8 %v2440
  %v2442 = vlaneseq
  %v2443 = vshrl.u32 %v2442, 7
  %v2444 = vsub.s32 %v2441, %v2443
  %v2445 = vrot.slane %v2423, %v2444
  %v2447 = vunpack.c.l.s4 1966171168
  %v2448 = vunpack.c.0.s8 %v2447
  %v2449 = vlaneseq
  %v2450 = vshrl.u32 %v2449, 7
  %v2451 = vsub.s32 %v2448, %v2450
  %v2452 = vrot.slane %v2424, %v2451
  %v2453 = vcombine.high %v2431, %v2431
  %v2454 = vcombine.high %v2445, %v2445
  %v2469 = vadd.f32 %v2195, %v2382
  %v2470 = vadd.f32 %v2209, %v2396
  %v2471 = vadd.f32 %v2217, %v2404
  %v2472 = vadd.f32 %v2219, %v2406
  %v2473 = vadd.f32 %v2202, %v2389
  %v2474 = vadd.f32 %v2216, %v2403
  %v2475 = vadd.f32 %v2218, %v2405
  %v2476 = vadd.f32 %v2220, %v2407
  %v2477 = vadd.f32 %v2244, %v2431
  %v2478 = vadd.f32 %v2258, %v2445
  %v2479 = vadd.f32 %v2266, %v2453
  %v2480 = vadd.f32 %v2267, %v2454
  %v2481 = vadd.f32 %v2251, %v2438
  %v2482 = vadd.f32 %v2265, %v2452
  %2483 = vmatprep.subr.mxu0 0.0
  %2484 = vmatpush1.msra.mxu0 %v1127
  %2485 = vmatprep.subr.mxu0 0.0
  %2486 = vmatpush1.msra.mxu0 %v1128
  %2487 = vmatprep.subr.mxu0 0.0
  %2488 = vmatpush1.msra.mxu0 %v1129
  %2489 = vmatprep.subr.mxu0 0.0
  %2490 = vmatpush1.msra.mxu0 %v1130
  %2491 = vmatprep.subr.mxu0 0.0
  %2492 = vmatpush1.msra.mxu0 %v1131
  %2493 = vmatprep.subr.mxu0 0.0
  %2494 = vmatpush1.msra.mxu0 %v1132
  %2495 = vmatprep.subr.mxu0 0.0
  %2496 = vmatpush1.msra.mxu0 %v1133
  %2497 = vmatprep.subr.mxu0 0.0
  %2498 = vmatpush1.msra.mxu0 %v1134
  %2499 = vmatprep.subr.mxu0 0.0
  %2500 = vmatpush1.msra.mxu0 0.0
  %2501 = vmatprep.subr.mxu0 0.0
  %2502 = vmatpush1.msra.mxu0 0.0
  %2503 = vmatprep.subr.mxu0 0.0
  %2504 = vmatpush1.msra.mxu0 0.0
  %2505 = vmatprep.subr.mxu0 0.0
  %2506 = vmatpush1.msra.mxu0 0.0
  %2507 = vmatprep.subr.mxu0 0.0
  %2508 = vmatpush1.msra.mxu0 0.0
  %2509 = vmatprep.subr.mxu0 0.0
  %2510 = vmatpush1.msra.mxu0 0.0
  %2511 = vmatprep.subr.mxu0 0.0
  %2512 = vmatpush1.msra.mxu0 0.0
  %2513 = vmatprep.subr.mxu0 0.0
  %2514 = vmatpush1.msra.mxu0 0.0
  %2515 = vmatprep.subr.mxu0 0.0
  %2516 = vmatpush1.msra.mxu0 0.0
  %2517 = vmatprep.subr.mxu0 0.0
  %2518 = vmatpush1.msra.mxu0 0.0
  %2519 = vmatprep.subr.mxu0 0.0
  %2520 = vmatpush1.msra.mxu0 0.0
  %2521 = vmatprep.subr.mxu0 0.0
  %2522 = vmatpush1.msra.mxu0 0.0
  %2523 = vmatprep.subr.mxu0 0.0
  %2524 = vmatpush1.msra.mxu0 0.0
  %2525 = vmatprep.subr.mxu0 0.0
  %2526 = vmatpush1.msra.mxu0 0.0
  %2527 = vmatprep.subr.mxu0 0.0
  %2528 = vmatpush1.msra.mxu0 0.0
  %2529 = vmatprep.subr.mxu0 0.0
  %2530 = vmatpush1.msra.mxu0 0.0
  %2531 = vmatprep.subr.mxu0 0.0
  %2532 = vmatpush1.msra.mxu0 0.0
  %2533 = vmatprep.subr.mxu0 0.0
  %2534 = vmatpush1.msra.mxu0 0.0
  %2535 = vmatprep.subr.mxu0 0.0
  %2536 = vmatpush1.msra.mxu0 0.0
  %2537 = vmatprep.subr.mxu0 0.0
  %2538 = vmatpush1.msra.mxu0 0.0
  %2539 = vmatprep.subr.mxu0 0.0
  %2540 = vmatpush1.msra.mxu0 0.0
  %2541 = vmatprep.subr.mxu0 0.0
  %2542 = vmatpush1.msra.mxu0 0.0
  %2543 = vmatprep.subr.mxu0 0.0
  %2544 = vmatpush1.msra.mxu0 0.0
  %2545 = vmatprep.subr.mxu0 0.0
  %2546 = vmatpush1.msra.mxu0 0.0
  %2547 = vmatprep.mubr.f32.mxu0 0.0
  %2548 = vmatmul.mubr.f32.gmra.mrb[0].mxu0 %v1723
  %v2549 = vpop.f32.mrb[0].mxu0
  %v2550 = vadd.f32 0.0, %v2549
  %v2551 = vpop.f32.mrb[0].mxu0
  %2552 = vmatprep.mubr.f32.mxu0 0.0
  %2553 = vmatmul.mubr.f32.gmra.mrb[0].mxu0 %v1725
  %v2554 = vpop.f32.mrb[0].mxu0
  %v2555 = vadd.f32 0.0, %v2554
  %v2556 = vpop.f32.mrb[0].mxu0
  %2557 = vdwg.mxu0
  %v2560 = vcombine.high %v2550, %v2550
  %v2562 = vunpack.c.l.s4 1966171168
  %v2563 = vunpack.c.0.s8 %v2562
  %v2564 = vlaneseq
  %v2565 = vshrl.u32 %v2564, 7
  %v2566 = vsub.s32 %v2563, %v2565
  %v2567 = vrot.slane %v2550, %v2566
  %v2569 = vunpack.c.l.s4 1966171168
  %v2570 = vunpack.c.0.s8 %v2569
  %v2571 = vlaneseq
  %v2572 = vshrl.u32 %v2571, 7
  %v2573 = vsub.s32 %v2570, %v2572
  %v2574 = vrot.slane %v2560, %v2573
  %v2575 = vcombine.high %v2567, %v2567
  %v2576 = vcombine.high %v2574, %v2574
  %v2578 = vunpack.c.l.s4 1966171168
  %v2579 = vunpack.c.0.s8 %v2578
  %v2580 = vlaneseq
  %v2581 = vshrl.u32 %v2580, 7
  %v2582 = vsub.s32 %v2579, %v2581
  %v2583 = vrot.slane %v2567, %v2582
  %v2585 = vunpack.c.l.s4 1966171168
  %v2586 = vunpack.c.0.s8 %v2585
  %v2587 = vlaneseq
  %v2588 = vshrl.u32 %v2587, 7
  %v2589 = vsub.s32 %v2586, %v2588
  %v2590 = vrot.slane %v2574, %v2589
  %v2592 = vunpack.c.l.s4 1966171168
  %v2593 = vunpack.c.0.s8 %v2592
  %v2594 = vlaneseq
  %v2595 = vshrl.u32 %v2594, 7
  %v2596 = vsub.s32 %v2593, %v2595
  %v2597 = vrot.slane %v2575, %v2596
  %v2599 = vunpack.c.l.s4 1966171168
  %v2600 = vunpack.c.0.s8 %v2599
  %v2601 = vlaneseq
  %v2602 = vshrl.u32 %v2601, 7
  %v2603 = vsub.s32 %v2600, %v2602
  %v2604 = vrot.slane %v2576, %v2603
  %v2605 = vcombine.high %v2583, %v2583
  %v2606 = vcombine.high %v2590, %v2590
  %v2607 = vcombine.high %v2597, %v2597
  %v2608 = vcombine.high %v2604, %v2604
  %v2609 = vcombine.high %v2555, %v2555
  %v2611 = vunpack.c.l.s4 1966171168
  %v2612 = vunpack.c.0.s8 %v2611
  %v2613 = vlaneseq
  %v2614 = vshrl.u32 %v2613, 7
  %v2615 = vsub.s32 %v2612, %v2614
  %v2616 = vrot.slane %v2555, %v2615
  %v2618 = vunpack.c.l.s4 1966171168
  %v2619 = vunpack.c.0.s8 %v2618
  %v2620 = vlaneseq
  %v2621 = vshrl.u32 %v2620, 7
  %v2622 = vsub.s32 %v2619, %v2621
  %v2623 = vrot.slane %v2609, %v2622
  %v2624 = vcombine.high %v2616, %v2616
  %v2625 = vcombine.high %v2623, %v2623
  %v2627 = vunpack.c.l.s4 1966171168
  %v2628 = vunpack.c.0.s8 %v2627
  %v2629 = vlaneseq
  %v2630 = vshrl.u32 %v2629, 7
  %v2631 = vsub.s32 %v2628, %v2630
  %v2632 = vrot.slane %v2616, %v2631
  %v2634 = vunpack.c.l.s4 1966171168
  %v2635 = vunpack.c.0.s8 %v2634
  %v2636 = vlaneseq
  %v2637 = vshrl.u32 %v2636, 7
  %v2638 = vsub.s32 %v2635, %v2637
  %v2639 = vrot.slane %v2623, %v2638
  %v2641 = vunpack.c.l.s4 1966171168
  %v2642 = vunpack.c.0.s8 %v2641
  %v2643 = vlaneseq
  %v2644 = vshrl.u32 %v2643, 7
  %v2645 = vsub.s32 %v2642, %v2644
  %v2646 = vrot.slane %v2624, %v2645
  %v2648 = vunpack.c.l.s4 1966171168
  %v2649 = vunpack.c.0.s8 %v2648
  %v2650 = vlaneseq
  %v2651 = vshrl.u32 %v2650, 7
  %v2652 = vsub.s32 %v2649, %v2651
  %v2653 = vrot.slane %v2625, %v2652
  %v2654 = vcombine.high %v2632, %v2632
  %v2655 = vcombine.high %v2646, %v2646
  %v2670 = vadd.f32 %v2469, %v2583
  %v2671 = vadd.f32 %v2470, %v2597
  %v2672 = vadd.f32 %v2471, %v2605
  %v2673 = vadd.f32 %v2472, %v2607
  %v2674 = vadd.f32 %v2473, %v2590
  %v2675 = vadd.f32 %v2474, %v2604
  %v2676 = vadd.f32 %v2475, %v2606
  %v2677 = vadd.f32 %v2476, %v2608
  %v2678 = vadd.f32 %v2477, %v2632
  %v2679 = vadd.f32 %v2478, %v2646
  %v2680 = vadd.f32 %v2479, %v2654
  %v2681 = vadd.f32 %v2480, %v2655
  %v2682 = vadd.f32 %v2481, %v2639
  %v2683 = vadd.f32 %v2482, %v2653
  %v2686 = vcombine.high %v60, %v60
  %v2688 = vunpack.c.l.s4 1966171168
  %v2689 = vunpack.c.0.s8 %v2688
  %v2690 = vlaneseq
  %v2691 = vshrl.u32 %v2690, 7
  %v2692 = vsub.s32 %v2689, %v2691
  %v2693 = vrot.slane %v60, %v2692
  %v2695 = vunpack.c.l.s4 1966171168
  %v2696 = vunpack.c.0.s8 %v2695
  %v2697 = vlaneseq
  %v2698 = vshrl.u32 %v2697, 7
  %v2699 = vsub.s32 %v2696, %v2698
  %v2700 = vrot.slane %v2686, %v2699
  %v2701 = vcombine.high %v2693, %v2693
  %v2702 = vcombine.high %v2700, %v2700
  %v2704 = vunpack.c.l.s4 1966171168
  %v2705 = vunpack.c.0.s8 %v2704
  %v2706 = vlaneseq
  %v2707 = vshrl.u32 %v2706, 7
  %v2708 = vsub.s32 %v2705, %v2707
  %v2709 = vrot.slane %v2693, %v2708
  %v2711 = vunpack.c.l.s4 1966171168
  %v2712 = vunpack.c.0.s8 %v2711
  %v2713 = vlaneseq
  %v2714 = vshrl.u32 %v2713, 7
  %v2715 = vsub.s32 %v2712, %v2714
  %v2716 = vrot.slane %v2700, %v2715
  %v2718 = vunpack.c.l.s4 1966171168
  %v2719 = vunpack.c.0.s8 %v2718
  %v2720 = vlaneseq
  %v2721 = vshrl.u32 %v2720, 7
  %v2722 = vsub.s32 %v2719, %v2721
  %v2723 = vrot.slane %v2701, %v2722
  %v2725 = vunpack.c.l.s4 1966171168
  %v2726 = vunpack.c.0.s8 %v2725
  %v2727 = vlaneseq
  %v2728 = vshrl.u32 %v2727, 7
  %v2729 = vsub.s32 %v2726, %v2728
  %v2730 = vrot.slane %v2702, %v2729
  %v2731 = vcombine.high %v2709, %v2709
  %v2732 = vcombine.high %v2716, %v2716
  %v2733 = vcombine.high %v2723, %v2723
  %v2734 = vcombine.high %v61, %v61
  %v2736 = vunpack.c.l.s4 1966171168
  %v2737 = vunpack.c.0.s8 %v2736
  %v2738 = vlaneseq
  %v2739 = vshrl.u32 %v2738, 7
  %v2740 = vsub.s32 %v2737, %v2739
  %v2741 = vrot.slane %v61, %v2740
  %v2743 = vunpack.c.l.s4 1966171168
  %v2744 = vunpack.c.0.s8 %v2743
  %v2745 = vlaneseq
  %v2746 = vshrl.u32 %v2745, 7
  %v2747 = vsub.s32 %v2744, %v2746
  %v2748 = vrot.slane %v2734, %v2747
  %v2749 = vcombine.high %v2741, %v2741
  %v2750 = vcombine.high %v2748, %v2748
  %v2752 = vunpack.c.l.s4 1966171168
  %v2753 = vunpack.c.0.s8 %v2752
  %v2754 = vlaneseq
  %v2755 = vshrl.u32 %v2754, 7
  %v2756 = vsub.s32 %v2753, %v2755
  %v2757 = vrot.slane %v2741, %v2756
  %v2759 = vunpack.c.l.s4 1966171168
  %v2760 = vunpack.c.0.s8 %v2759
  %v2761 = vlaneseq
  %v2762 = vshrl.u32 %v2761, 7
  %v2763 = vsub.s32 %v2760, %v2762
  %v2764 = vrot.slane %v2748, %v2763
  %v2766 = vunpack.c.l.s4 1966171168
  %v2767 = vunpack.c.0.s8 %v2766
  %v2768 = vlaneseq
  %v2769 = vshrl.u32 %v2768, 7
  %v2770 = vsub.s32 %v2767, %v2769
  %v2771 = vrot.slane %v2749, %v2770
  %v2773 = vunpack.c.l.s4 1966171168
  %v2774 = vunpack.c.0.s8 %v2773
  %v2775 = vlaneseq
  %v2776 = vshrl.u32 %v2775, 7
  %v2777 = vsub.s32 %v2774, %v2776
  %v2778 = vrot.slane %v2750, %v2777
  %v2779 = vcombine.high %v2757, %v2757
  %v2780 = vcombine.high %v2764, %v2764
  %v2781 = vcombine.high %v2771, %v2771
  %v2782 = vcombine.low %v2709, %v2723
  %v2783 = vcombine.low %v2731, %v2733
  %v2784 = vcombine.low %v2716, %v2730
  %v2785 = vcombine.low %v2732, %v2757
  %v2787 = vunpack.c.l.s4 1966171168
  %v2788 = vunpack.c.0.s8 %v2787
  %v2789 = vlaneseq
  %v2790 = vshrl.u32 %v2789, 7
  %v2791 = vsub.s32 %v2788, %v2790
  %v2792 = vrot.slane %v2782, %v2791
  %v2794 = vunpack.c.l.s4 1966171168
  %v2795 = vunpack.c.0.s8 %v2794
  %v2796 = vlaneseq
  %v2797 = vshrl.u32 %v2796, 7
  %v2798 = vsub.s32 %v2795, %v2797
  %v2799 = vrot.slane %v2783, %v2798
  %v2801 = vunpack.c.l.s4 1966171168
  %v2802 = vunpack.c.0.s8 %v2801
  %v2803 = vlaneseq
  %v2804 = vshrl.u32 %v2803, 7
  %v2805 = vsub.s32 %v2802, %v2804
  %v2806 = vrot.slane %v2784, %v2805
  %v2808 = vunpack.c.l.s4 1966171168
  %v2809 = vunpack.c.0.s8 %v2808
  %v2810 = vlaneseq
  %v2811 = vshrl.u32 %v2810, 7
  %v2812 = vsub.s32 %v2809, %v2811
  %v2813 = vrot.slane %v2785, %v2812
  %v2814 = vcombine.low %v2792, %v2799
  %v2815 = vcombine.low %v2806, %v2813
  %v2817 = vunpack.c.l.s4 1966171168
  %v2818 = vunpack.c.0.s8 %v2817
  %v2819 = vlaneseq
  %v2820 = vshrl.u32 %v2819, 7
  %v2821 = vsub.s32 %v2818, %v2820
  %v2822 = vrot.slane %v2814, %v2821
  %v2824 = vunpack.c.l.s4 1966171168
  %v2825 = vunpack.c.0.s8 %v2824
  %v2826 = vlaneseq
  %v2827 = vshrl.u32 %v2826, 7
  %v2828 = vsub.s32 %v2825, %v2827
  %v2829 = vrot.slane %v2815, %v2828
  %v2830 = vcombine.low %v2822, %v2829
  %v2831 = vcombine.low %v2771, %v2779
  %v2832 = vcombine.low %v2781, %v2764
  %v2833 = vcombine.low %v2778, %v2780
  %v2835 = vunpack.c.l.s4 1966171168
  %v2836 = vunpack.c.0.s8 %v2835
  %v2837 = vlaneseq
  %v2838 = vshrl.u32 %v2837, 7
  %v2839 = vsub.s32 %v2836, %v2838
  %v2840 = vrot.slane %v2831, %v2839
  %v2842 = vunpack.c.l.s4 1966171168
  %v2843 = vunpack.c.0.s8 %v2842
  %v2844 = vlaneseq
  %v2845 = vshrl.u32 %v2844, 7
  %v2846 = vsub.s32 %v2843, %v2845
  %v2847 = vrot.slane %v2832, %v2846
  %v2849 = vunpack.c.l.s4 1966171168
  %v2850 = vunpack.c.0.s8 %v2849
  %v2851 = vlaneseq
  %v2852 = vshrl.u32 %v2851, 7
  %v2853 = vsub.s32 %v2850, %v2852
  %v2854 = vrot.slane %v2833, %v2853
  %v2855 = vcombine.low %v2840, %v2847
  %v2857 = vunpack.c.l.s4 1966171168
  %v2858 = vunpack.c.0.s8 %v2857
  %v2859 = vlaneseq
  %v2860 = vshrl.u32 %v2859, 7
  %v2861 = vsub.s32 %v2858, %v2860
  %v2862 = vrot.slane %v2855, %v2861
  %v2864 = vunpack.c.l.s4 1966171168
  %v2865 = vunpack.c.0.s8 %v2864
  %v2866 = vlaneseq
  %v2867 = vshrl.u32 %v2866, 7
  %v2868 = vsub.s32 %v2865, %v2867
  %v2869 = vrot.slane %v2854, %v2868
  %v2870 = vcombine.low %v2862, %v2869
  %v2871 = vsel %vm267, %v2830, 0
  %v2873 = vsel %vm267, %v2870, 0
  %2875 = vmatprep.subr.mxu0 0.0
  %2876 = vmatpush1.msra.mxu0 %v1528
  %2877 = vmatprep.subr.mxu0 0.0
  %2878 = vmatpush1.msra.mxu0 %v1529
  %2879 = vmatprep.subr.mxu0 0.0
  %2880 = vmatpush1.msra.mxu0 %v1530
  %2881 = vmatprep.subr.mxu0 0.0
  %2882 = vmatpush1.msra.mxu0 %v1531
  %2883 = vmatprep.subr.mxu0 0.0
  %2884 = vmatpush1.msra.mxu0 %v1532
  %2885 = vmatprep.subr.mxu0 0.0
  %2886 = vmatpush1.msra.mxu0 %v1533
  %2887 = vmatprep.subr.mxu0 0.0
  %2888 = vmatpush1.msra.mxu0 %v1534
  %2889 = vmatprep.subr.mxu0 0.0
  %2890 = vmatpush1.msra.mxu0 %v1535
  %2891 = vmatprep.subr.mxu0 0.0
  %2892 = vmatpush1.msra.mxu0 0.0
  %2893 = vmatprep.subr.mxu0 0.0
  %2894 = vmatpush1.msra.mxu0 0.0
  %2895 = vmatprep.subr.mxu0 0.0
  %2896 = vmatpush1.msra.mxu0 0.0
  %2897 = vmatprep.subr.mxu0 0.0
  %2898 = vmatpush1.msra.mxu0 0.0
  %2899 = vmatprep.subr.mxu0 0.0
  %2900 = vmatpush1.msra.mxu0 0.0
  %2901 = vmatprep.subr.mxu0 0.0
  %2902 = vmatpush1.msra.mxu0 0.0
  %2903 = vmatprep.subr.mxu0 0.0
  %2904 = vmatpush1.msra.mxu0 0.0
  %2905 = vmatprep.subr.mxu0 0.0
  %2906 = vmatpush1.msra.mxu0 0.0
  %2907 = vmatprep.subr.mxu0 0.0
  %2908 = vmatpush1.msra.mxu0 0.0
  %2909 = vmatprep.subr.mxu0 0.0
  %2910 = vmatpush1.msra.mxu0 0.0
  %2911 = vmatprep.subr.mxu0 0.0
  %2912 = vmatpush1.msra.mxu0 0.0
  %2913 = vmatprep.subr.mxu0 0.0
  %2914 = vmatpush1.msra.mxu0 0.0
  %2915 = vmatprep.subr.mxu0 0.0
  %2916 = vmatpush1.msra.mxu0 0.0
  %2917 = vmatprep.subr.mxu0 0.0
  %2918 = vmatpush1.msra.mxu0 0.0
  %2919 = vmatprep.subr.mxu0 0.0
  %2920 = vmatpush1.msra.mxu0 0.0
  %2921 = vmatprep.subr.mxu0 0.0
  %2922 = vmatpush1.msra.mxu0 0.0
  %2923 = vmatprep.subr.mxu0 0.0
  %2924 = vmatpush1.msra.mxu0 0.0
  %2925 = vmatprep.subr.mxu0 0.0
  %2926 = vmatpush1.msra.mxu0 0.0
  %2927 = vmatprep.subr.mxu0 0.0
  %2928 = vmatpush1.msra.mxu0 0.0
  %2929 = vmatprep.subr.mxu0 0.0
  %2930 = vmatpush1.msra.mxu0 0.0
  %2931 = vmatprep.subr.mxu0 0.0
  %2932 = vmatpush1.msra.mxu0 0.0
  %2933 = vmatprep.subr.mxu0 0.0
  %2934 = vmatpush1.msra.mxu0 0.0
  %2935 = vmatprep.subr.mxu0 0.0
  %2936 = vmatpush1.msra.mxu0 0.0
  %2937 = vmatprep.subr.mxu0 0.0
  %2938 = vmatpush1.msra.mxu0 0.0
  %2939 = vmatprep.mubr.f32.mxu0 0.0
  %2940 = vmatmul.mubr.f32.gmra.mrb[0].mxu0 %v2871
  %v2941 = vpop.f32.mrb[0].mxu0
  %v2942 = vadd.f32 0.0, %v2941
  %v2943 = vpop.f32.mrb[0].mxu0
  %2944 = vmatprep.mubr.f32.mxu0 0.0
  %2945 = vmatmul.mubr.f32.gmra.mrb[0].mxu0 %v2873
  %v2946 = vpop.f32.mrb[0].mxu0
  %v2947 = vadd.f32 0.0, %v2946
  %v2948 = vpop.f32.mrb[0].mxu0
  %2949 = vdwg.mxu0
  %v2952 = vcombine.high %v2942, %v2942
  %v2954 = vunpack.c.l.s4 1966171168
  %v2955 = vunpack.c.0.s8 %v2954
  %v2956 = vlaneseq
  %v2957 = vshrl.u32 %v2956, 7
  %v2958 = vsub.s32 %v2955, %v2957
  %v2959 = vrot.slane %v2942, %v2958
  %v2961 = vunpack.c.l.s4 1966171168
  %v2962 = vunpack.c.0.s8 %v2961
  %v2963 = vlaneseq
  %v2964 = vshrl.u32 %v2963, 7
  %v2965 = vsub.s32 %v2962, %v2964
  %v2966 = vrot.slane %v2952, %v2965
  %v2967 = vcombine.high %v2959, %v2959
  %v2968 = vcombine.high %v2966, %v2966
  %v2970 = vunpack.c.l.s4 1966171168
  %v2971 = vunpack.c.0.s8 %v2970
  %v2972 = vlaneseq
  %v2973 = vshrl.u32 %v2972, 7
  %v2974 = vsub.s32 %v2971, %v2973
  %v2975 = vrot.slane %v2959, %v2974
  %v2977 = vunpack.c.l.s4 1966171168
  %v2978 = vunpack.c.0.s8 %v2977
  %v2979 = vlaneseq
  %v2980 = vshrl.u32 %v2979, 7
  %v2981 = vsub.s32 %v2978, %v2980
  %v2982 = vrot.slane %v2966, %v2981
  %v2984 = vunpack.c.l.s4 1966171168
  %v2985 = vunpack.c.0.s8 %v2984
  %v2986 = vlaneseq
  %v2987 = vshrl.u32 %v2986, 7
  %v2988 = vsub.s32 %v2985, %v2987
  %v2989 = vrot.slane %v2967, %v2988
  %v2991 = vunpack.c.l.s4 1966171168
  %v2992 = vunpack.c.0.s8 %v2991
  %v2993 = vlaneseq
  %v2994 = vshrl.u32 %v2993, 7
  %v2995 = vsub.s32 %v2992, %v2994
  %v2996 = vrot.slane %v2968, %v2995
  %v2997 = vcombine.high %v2975, %v2975
  %v2998 = vcombine.high %v2982, %v2982
  %v2999 = vcombine.high %v2989, %v2989
  %v3000 = vcombine.high %v2996, %v2996
  %v3001 = vcombine.high %v2947, %v2947
  %v3003 = vunpack.c.l.s4 1966171168
  %v3004 = vunpack.c.0.s8 %v3003
  %v3005 = vlaneseq
  %v3006 = vshrl.u32 %v3005, 7
  %v3007 = vsub.s32 %v3004, %v3006
  %v3008 = vrot.slane %v2947, %v3007
  %v3010 = vunpack.c.l.s4 1966171168
  %v3011 = vunpack.c.0.s8 %v3010
  %v3012 = vlaneseq
  %v3013 = vshrl.u32 %v3012, 7
  %v3014 = vsub.s32 %v3011, %v3013
  %v3015 = vrot.slane %v3001, %v3014
  %v3016 = vcombine.high %v3008, %v3008
  %v3017 = vcombine.high %v3015, %v3015
  %v3019 = vunpack.c.l.s4 1966171168
  %v3020 = vunpack.c.0.s8 %v3019
  %v3021 = vlaneseq
  %v3022 = vshrl.u32 %v3021, 7
  %v3023 = vsub.s32 %v3020, %v3022
  %v3024 = vrot.slane %v3008, %v3023
  %v3026 = vunpack.c.l.s4 1966171168
  %v3027 = vunpack.c.0.s8 %v3026
  %v3028 = vlaneseq
  %v3029 = vshrl.u32 %v3028, 7
  %v3030 = vsub.s32 %v3027, %v3029
  %v3031 = vrot.slane %v3015, %v3030
  %v3033 = vunpack.c.l.s4 1966171168
  %v3034 = vunpack.c.0.s8 %v3033
  %v3035 = vlaneseq
  %v3036 = vshrl.u32 %v3035, 7
  %v3037 = vsub.s32 %v3034, %v3036
  %v3038 = vrot.slane %v3016, %v3037
  %v3040 = vunpack.c.l.s4 1966171168
  %v3041 = vunpack.c.0.s8 %v3040
  %v3042 = vlaneseq
  %v3043 = vshrl.u32 %v3042, 7
  %v3044 = vsub.s32 %v3041, %v3043
  %v3045 = vrot.slane %v3017, %v3044
  %v3046 = vcombine.high %v3024, %v3024
  %v3047 = vcombine.high %v3038, %v3038
  %v3062 = vadd.f32 %v2670, %v2975
  %v3063 = vadd.f32 %v2671, %v2989
  %v3064 = vadd.f32 %v2672, %v2997
  %v3065 = vadd.f32 %v2673, %v2999
  %v3066 = vadd.f32 %v2674, %v2982
  %v3067 = vadd.f32 %v2675, %v2996
  %v3068 = vadd.f32 %v2676, %v2998
  %v3069 = vadd.f32 %v2677, %v3000
  %v3070 = vadd.f32 %v2678, %v3024
  %v3071 = vadd.f32 %v2679, %v3038
  %v3072 = vadd.f32 %v2680, %v3046
  %v3073 = vadd.f32 %v2681, %v3047
  %v3074 = vadd.f32 %v2682, %v3031
  %v3075 = vadd.f32 %v2683, %v3045
  %v3076 = vadd.f32 %v3062, %v1956
  %v3077 = vadd.f32 %v3063, %v1970
  %v3078 = vadd.f32 %v3064, %v1978
  %v3079 = vadd.f32 %v3065, %v1980
  %v3080 = vadd.f32 %v3066, %v1963
  %v3081 = vadd.f32 %v3067, %v1977
  %v3082 = vadd.f32 %v3068, %v1979
  %v3083 = vadd.f32 %v3069, %v1956
  %v3084 = vadd.f32 %v3070, %v1970
  %v3085 = vadd.f32 %v3071, %v1978
  %v3086 = vadd.f32 %v3072, %v1980
  %v3087 = vadd.f32 %v3073, %v1963
  %v3088 = vadd.f32 %v3074, %v1977
  %v3089 = vadd.f32 %v3075, %v1979
  %v3090 = vld [vmem:[%s7] sm:$0xff]
  %v3091 = vld [vmem:[%s7 + $0x8] sm:$0xff]
  %v3092 = vld [vmem:[%s7 + $0x10] sm:$0xff]
  %v3093 = vld [vmem:[%s7 + $0x18] sm:$0xff]
  %v3094 = vld [vmem:[%s7 + $0x20] sm:$0xff]
  %v3095 = vld [vmem:[%s7 + $0x28] sm:$0xff]
  %v3096 = vld [vmem:[%s7 + $0x30] sm:$0xff]
  %v3097 = vld [vmem:[%s7 + $0x38] sm:$0xff]
  %v3098 = vld [vmem:[%s7 + $0x40] sm:$0xff]
  %v3099 = vld [vmem:[%s7 + $0x48] sm:$0xff]
  %v3100 = vld [vmem:[%s7 + $0x50] sm:$0xff]
  %v3101 = vld [vmem:[%s7 + $0x58] sm:$0xff]
  %v3102 = vld [vmem:[%s7 + $0x60] sm:$0xff]
  %v3103 = vld [vmem:[%s7 + $0x68] sm:$0xff]
  %v3104 = vld [vmem:[%s8] sm:$0xff]
  %v3119 = vcombine.low %v1988, %v1989
  %v3120 = vcombine.low %v1990, %v1991
  %v3121 = vcombine.low %v1992, %v1993
  %v3123 = vunpack.c.l.s4 1966171168
  %v3124 = vunpack.c.0.s8 %v3123
  %v3125 = vlaneseq
  %v3126 = vshrl.u32 %v3125, 7
  %v3127 = vsub.s32 %v3124, %v3126
  %v3128 = vrot.slane %v3119, %v3127
  %v3130 = vunpack.c.l.s4 1966171168
  %v3131 = vunpack.c.0.s8 %v3130
  %v3132 = vlaneseq
  %v3133 = vshrl.u32 %v3132, 7
  %v3134 = vsub.s32 %v3131, %v3133
  %v3135 = vrot.slane %v3120, %v3134
  %v3137 = vunpack.c.l.s4 1966171168
  %v3138 = vunpack.c.0.s8 %v3137
  %v3139 = vlaneseq
  %v3140 = vshrl.u32 %v3139, 7
  %v3141 = vsub.s32 %v3138, %v3140
  %v3142 = vrot.slane %v3121, %v3141
  %v3144 = vunpack.c.l.s4 1966171168
  %v3145 = vunpack.c.0.s8 %v3144
  %v3146 = vlaneseq
  %v3147 = vshrl.u32 %v3146, 7
  %v3148 = vsub.s32 %v3145, %v3147
  %v3149 = vrot.slane %v1994, %v3148
  %v3150 = vcombine.low %v3128, %v3135
  %v3151 = vcombine.low %v3142, %v3149
  %v3153 = vunpack.c.l.s4 1966171168
  %v3154 = vunpack.c.0.s8 %v3153
  %v3155 = vlaneseq
  %v3156 = vshrl.u32 %v3155, 7
  %v3157 = vsub.s32 %v3154, %v3156
  %v3158 = vrot.slane %v3150, %v3157
  %v3160 = vunpack.c.l.s4 1966171168
  %v3161 = vunpack.c.0.s8 %v3160
  %v3162 = vlaneseq
  %v3163 = vshrl.u32 %v3162, 7
  %v3164 = vsub.s32 %v3161, %v3163
  %v3165 = vrot.slane %v3151, %v3164
  %v3166 = vcombine.low %v3158, %v3165
  %v3167 = vcombine.low %v1995, %v1996
  %v3168 = vcombine.low %v1997, %v1998
  %v3169 = vcombine.low %v1999, %v2000
  %v3171 = vunpack.c.l.s4 1966171168
  %v3172 = vunpack.c.0.s8 %v3171
  %v3173 = vlaneseq
  %v3174 = vshrl.u32 %v3173, 7
  %v3175 = vsub.s32 %v3172, %v3174
  %v3176 = vrot.slane %v3167, %v3175
  %v3178 = vunpack.c.l.s4 1966171168
  %v3179 = vunpack.c.0.s8 %v3178
  %v3180 = vlaneseq
  %v3181 = vshrl.u32 %v3180, 7
  %v3182 = vsub.s32 %v3179, %v3181
  %v3183 = vrot.slane %v3168, %v3182
  %v3185 = vunpack.c.l.s4 1966171168
  %v3186 = vunpack.c.0.s8 %v3185
  %v3187 = vlaneseq
  %v3188 = vshrl.u32 %v3187, 7
  %v3189 = vsub.s32 %v3186, %v3188
  %v3190 = vrot.slane %v3169, %v3189
  %v3192 = vunpack.c.l.s4 1966171168
  %v3193 = vunpack.c.0.s8 %v3192
  %v3194 = vlaneseq
  %v3195 = vshrl.u32 %v3194, 7
  %v3196 = vsub.s32 %v3193, %v3195
  %v3197 = vrot.slane %v2001, %v3196
  %v3198 = vcombine.low %v3176, %v3183
  %v3199 = vcombine.low %v3190, %v3197
  %v3201 = vunpack.c.l.s4 1966171168
  %v3202 = vunpack.c.0.s8 %v3201
  %v3203 = vlaneseq
  %v3204 = vshrl.u32 %v3203, 7
  %v3205 = vsub.s32 %v3202, %v3204
  %v3206 = vrot.slane %v3198, %v3205
  %v3208 = vunpack.c.l.s4 1966171168
  %v3209 = vunpack.c.0.s8 %v3208
  %v3210 = vlaneseq
  %v3211 = vshrl.u32 %v3210, 7
  %v3212 = vsub.s32 %v3209, %v3211
  %v3213 = vrot.slane %v3199, %v3212
  %v3214 = vcombine.low %v3206, %v3213
  %vm3217 = vcmask 915456
  %v3218 = vsel %vm3217, %v3166, 0.0
  %v3219 = vsel %vm3217, %v3214, 0.0
  %v3220 = vadd.f32 %v3218, %v3219
  %v3221 = vrot.slane %v3220, 4
  %v3222 = vadd.f32 %v3220, %v3221
  %v3223 = vrot.slane %v3222, 2
  %v3224 = vadd.f32 %v3222, %v3223
  %v3225 = vrot.slane %v3224, 1
  %v3226 = vadd.f32 %v3224, %v3225
  %v3241 = vcombine.low %v3076, %v3077
  %v3242 = vcombine.low %v3078, %v3079
  %v3243 = vcombine.low %v3080, %v3081
  %v3245 = vunpack.c.l.s4 1966171168
  %v3246 = vunpack.c.0.s8 %v3245
  %v3247 = vlaneseq
  %v3248 = vshrl.u32 %v3247, 7
  %v3249 = vsub.s32 %v3246, %v3248
  %v3250 = vrot.slane %v3241, %v3249
  %v3252 = vunpack.c.l.s4 1966171168
  %v3253 = vunpack.c.0.s8 %v3252
  %v3254 = vlaneseq
  %v3255 = vshrl.u32 %v3254, 7
  %v3256 = vsub.s32 %v3253, %v3255
  %v3257 = vrot.slane %v3242, %v3256
  %v3259 = vunpack.c.l.s4 1966171168
  %v3260 = vunpack.c.0.s8 %v3259
  %v3261 = vlaneseq
  %v3262 = vshrl.u32 %v3261, 7
  %v3263 = vsub.s32 %v3260, %v3262
  %v3264 = vrot.slane %v3243, %v3263
  %v3266 = vunpack.c.l.s4 1966171168
  %v3267 = vunpack.c.0.s8 %v3266
  %v3268 = vlaneseq
  %v3269 = vshrl.u32 %v3268, 7
  %v3270 = vsub.s32 %v3267, %v3269
  %v3271 = vrot.slane %v3082, %v3270
  %v3272 = vcombine.low %v3250, %v3257
  %v3273 = vcombine.low %v3264, %v3271
  %v3275 = vunpack.c.l.s4 1966171168
  %v3276 = vunpack.c.0.s8 %v3275
  %v3277 = vlaneseq
  %v3278 = vshrl.u32 %v3277, 7
  %v3279 = vsub.s32 %v3276, %v3278
  %v3280 = vrot.slane %v3272, %v3279
  %v3282 = vunpack.c.l.s4 1966171168
  %v3283 = vunpack.c.0.s8 %v3282
  %v3284 = vlaneseq
  %v3285 = vshrl.u32 %v3284, 7
  %v3286 = vsub.s32 %v3283, %v3285
  %v3287 = vrot.slane %v3273, %v3286
  %v3288 = vcombine.low %v3280, %v3287
  %v3289 = vcombine.low %v3083, %v3084
  %v3290 = vcombine.low %v3085, %v3086
  %v3291 = vcombine.low %v3087, %v3088
  %v3293 = vunpack.c.l.s4 1966171168
  %v3294 = vunpack.c.0.s8 %v3293
  %v3295 = vlaneseq
  %v3296 = vshrl.u32 %v3295, 7
  %v3297 = vsub.s32 %v3294, %v3296
  %v3298 = vrot.slane %v3289, %v3297
  %v3300 = vunpack.c.l.s4 1966171168
  %v3301 = vunpack.c.0.s8 %v3300
  %v3302 = vlaneseq
  %v3303 = vshrl.u32 %v3302, 7
  %v3304 = vsub.s32 %v3301, %v3303
  %v3305 = vrot.slane %v3290, %v3304
  %v3307 = vunpack.c.l.s4 1966171168
  %v3308 = vunpack.c.0.s8 %v3307
  %v3309 = vlaneseq
  %v3310 = vshrl.u32 %v3309, 7
  %v3311 = vsub.s32 %v3308, %v3310
  %v3312 = vrot.slane %v3291, %v3311
  %v3314 = vunpack.c.l.s4 1966171168
  %v3315 = vunpack.c.0.s8 %v3314
  %v3316 = vlaneseq
  %v3317 = vshrl.u32 %v3316, 7
  %v3318 = vsub.s32 %v3315, %v3317
  %v3319 = vrot.slane %v3089, %v3318
  %v3320 = vcombine.low %v3298, %v3305
  %v3321 = vcombine.low %v3312, %v3319
  %v3323 = vunpack.c.l.s4 1966171168
  %v3324 = vunpack.c.0.s8 %v3323
  %v3325 = vlaneseq
  %v3326 = vshrl.u32 %v3325, 7
  %v3327 = vsub.s32 %v3324, %v3326
  %v3328 = vrot.slane %v3320, %v3327
  %v3330 = vunpack.c.l.s4 1966171168
  %v3331 = vunpack.c.0.s8 %v3330
  %v3332 = vlaneseq
  %v3333 = vshrl.u32 %v3332, 7
  %v3334 = vsub.s32 %v3331, %v3333
  %v3335 = vrot.slane %v3321, %v3334
  %v3336 = vcombine.low %v3328, %v3335
  %v3339 = vsel %vm3217, %v3288, 0.0
  %v3340 = vsel %vm3217, %v3336, 0.0
  %v3341 = vadd.f32 %v3339, %v3340
  %v3342 = vrot.slane %v3341, 4
  %v3343 = vadd.f32 %v3341, %v3342
  %v3344 = vrot.slane %v3343, 2
  %v3345 = vadd.f32 %v3343, %v3344
  %v3346 = vrot.slane %v3345, 1
  %v3347 = vadd.f32 %v3345, %v3346
  %v3348 = vadd.f32 %v3226, %v3347
  %vm3349 = vcmask 916480
  %v3351 = vsel %vm3349, %v3348, 0
  %3353 = vmatprep.subr.mxu0 0.0
  %3354 = vmatpush1.msra.mxu0 %v3090
  %3355 = vmatprep.subr.mxu0 0.0
  %3356 = vmatpush1.msra.mxu0 %v3091
  %3357 = vmatprep.subr.mxu0 0.0
  %3358 = vmatpush1.msra.mxu0 %v3092
  %3359 = vmatprep.subr.mxu0 0.0
  %3360 = vmatpush1.msra.mxu0 %v3093
  %3361 = vmatprep.subr.mxu0 0.0
  %3362 = vmatpush1.msra.mxu0 %v3094
  %3363 = vmatprep.subr.mxu0 0.0
  %3364 = vmatpush1.msra.mxu0 %v3095
  %3365 = vmatprep.subr.mxu0 0.0
  %3366 = vmatpush1.msra.mxu0 %v3096
  %3367 = vmatprep.subr.mxu0 0.0
  %3368 = vmatpush1.msra.mxu0 %v3097
  %3369 = vmatprep.subr.mxu0 0.0
  %3370 = vmatpush1.msra.mxu0 %v3098
  %3371 = vmatprep.subr.mxu0 0.0
  %3372 = vmatpush1.msra.mxu0 %v3099
  %3373 = vmatprep.subr.mxu0 0.0
  %3374 = vmatpush1.msra.mxu0 %v3100
  %3375 = vmatprep.subr.mxu0 0.0
  %3376 = vmatpush1.msra.mxu0 %v3101
  %3377 = vmatprep.subr.mxu0 0.0
  %3378 = vmatpush1.msra.mxu0 %v3102
  %3379 = vmatprep.subr.mxu0 0.0
  %3380 = vmatpush1.msra.mxu0 %v3103
  %3381 = vmatprep.subr.mxu0 0.0
  %3382 = vmatpush1.msra.mxu0 0.0
  %3383 = vmatprep.subr.mxu0 0.0
  %3384 = vmatpush1.msra.mxu0 0.0
  %3385 = vmatprep.subr.mxu0 0.0
  %3386 = vmatpush1.msra.mxu0 0.0
  %3387 = vmatprep.subr.mxu0 0.0
  %3388 = vmatpush1.msra.mxu0 0.0
  %3389 = vmatprep.subr.mxu0 0.0
  %3390 = vmatpush1.msra.mxu0 0.0
  %3391 = vmatprep.subr.mxu0 0.0
  %3392 = vmatpush1.msra.mxu0 0.0
  %3393 = vmatprep.subr.mxu0 0.0
  %3394 = vmatpush1.msra.mxu0 0.0
  %3395 = vmatprep.subr.mxu0 0.0
  %3396 = vmatpush1.msra.mxu0 0.0
  %3397 = vmatprep.subr.mxu0 0.0
  %3398 = vmatpush1.msra.mxu0 0.0
  %3399 = vmatprep.subr.mxu0 0.0
  %3400 = vmatpush1.msra.mxu0 0.0
  %3401 = vmatprep.subr.mxu0 0.0
  %3402 = vmatpush1.msra.mxu0 0.0
  %3403 = vmatprep.subr.mxu0 0.0
  %3404 = vmatpush1.msra.mxu0 0.0
  %3405 = vmatprep.subr.mxu0 0.0
  %3406 = vmatpush1.msra.mxu0 0.0
  %3407 = vmatprep.subr.mxu0 0.0
  %3408 = vmatpush1.msra.mxu0 0.0
  %3409 = vmatprep.subr.mxu0 0.0
  %3410 = vmatpush1.msra.mxu0 0.0
  %3411 = vmatprep.subr.mxu0 0.0
  %3412 = vmatpush1.msra.mxu0 0.0
  %3413 = vmatprep.subr.mxu0 0.0
  %3414 = vmatpush1.msra.mxu0 0.0
  %3415 = vmatprep.subr.mxu0 0.0
  %3416 = vmatpush1.msra.mxu0 0.0
  %3417 = vmatprep.mubr.f32.mxu0 0.0
  %3418 = vmatmul.mubr.f32.gmra.mrb[0].mxu0 %v3351
  %v3419 = vpop.f32.mrb[0].mxu0
  %v3420 = vadd.f32 0.0, %v3419
  %v3421 = vpop.f32.mrb[0].mxu0
  %3422 = vdwg.mxu0
  %v3423 = vmul.f32 %v3420, 0.0025510204
  %vm3424 = vcmask 64512
  %v3426 = vsel %vm3424, %v3423, 0
  %3428 = vmatprep.subr.mxu0 0.0
  %3429 = vmatpush1.msra.mxu0 %v3104
  %3430 = vmatprep.subr.mxu0 0.0
  %3431 = vmatpush1.msra.mxu0 0.0
  %3432 = vmatprep.subr.mxu0 0.0
  %3433 = vmatpush1.msra.mxu0 0.0
  %3434 = vmatprep.subr.mxu0 0.0
  %3435 = vmatpush1.msra.mxu0 0.0
  %3436 = vmatprep.subr.mxu0 0.0
  %3437 = vmatpush1.msra.mxu0 0.0
  %3438 = vmatprep.subr.mxu0 0.0
  %3439 = vmatpush1.msra.mxu0 0.0
  %3440 = vmatprep.subr.mxu0 0.0
  %3441 = vmatpush1.msra.mxu0 0.0
  %3442 = vmatprep.subr.mxu0 0.0
  %3443 = vmatpush1.msra.mxu0 0.0
  %3444 = vmatprep.subr.mxu0 0.0
  %3445 = vmatpush1.msra.mxu0 0.0
  %3446 = vmatprep.subr.mxu0 0.0
  %3447 = vmatpush1.msra.mxu0 0.0
  %3448 = vmatprep.subr.mxu0 0.0
  %3449 = vmatpush1.msra.mxu0 0.0
  %3450 = vmatprep.subr.mxu0 0.0
  %3451 = vmatpush1.msra.mxu0 0.0
  %3452 = vmatprep.subr.mxu0 0.0
  %3453 = vmatpush1.msra.mxu0 0.0
  %3454 = vmatprep.subr.mxu0 0.0
  %3455 = vmatpush1.msra.mxu0 0.0
  %3456 = vmatprep.subr.mxu0 0.0
  %3457 = vmatpush1.msra.mxu0 0.0
  %3458 = vmatprep.subr.mxu0 0.0
  %3459 = vmatpush1.msra.mxu0 0.0
  %3460 = vmatprep.subr.mxu0 0.0
  %3461 = vmatpush1.msra.mxu0 0.0
  %3462 = vmatprep.subr.mxu0 0.0
  %3463 = vmatpush1.msra.mxu0 0.0
  %3464 = vmatprep.subr.mxu0 0.0
  %3465 = vmatpush1.msra.mxu0 0.0
  %3466 = vmatprep.subr.mxu0 0.0
  %3467 = vmatpush1.msra.mxu0 0.0
  %3468 = vmatprep.subr.mxu0 0.0
  %3469 = vmatpush1.msra.mxu0 0.0
  %3470 = vmatprep.subr.mxu0 0.0
  %3471 = vmatpush1.msra.mxu0 0.0
  %3472 = vmatprep.subr.mxu0 0.0
  %3473 = vmatpush1.msra.mxu0 0.0
  %3474 = vmatprep.subr.mxu0 0.0
  %3475 = vmatpush1.msra.mxu0 0.0
  %3476 = vmatprep.subr.mxu0 0.0
  %3477 = vmatpush1.msra.mxu0 0.0
  %3478 = vmatprep.subr.mxu0 0.0
  %3479 = vmatpush1.msra.mxu0 0.0
  %3480 = vmatprep.subr.mxu0 0.0
  %3481 = vmatpush1.msra.mxu0 0.0
  %3482 = vmatprep.subr.mxu0 0.0
  %3483 = vmatpush1.msra.mxu0 0.0
  %3484 = vmatprep.subr.mxu0 0.0
  %3485 = vmatpush1.msra.mxu0 0.0
  %3486 = vmatprep.subr.mxu0 0.0
  %3487 = vmatpush1.msra.mxu0 0.0
  %3488 = vmatprep.subr.mxu0 0.0
  %3489 = vmatpush1.msra.mxu0 0.0
  %3490 = vmatprep.subr.mxu0 0.0
  %3491 = vmatpush1.msra.mxu0 0.0
  %3492 = vmatprep.mubr.f32.mxu0 0.0
  %3493 = vmatmul.mubr.f32.gmra.mrb[0].mxu0 %v3426
  %v3494 = vpop.f32.mrb[0].mxu0
  %v3495 = vadd.f32 0.0, %v3494
  %v3496 = vpop.f32.mrb[0].mxu0
  %3497 = vdwg.mxu0
  %v3498 = vlaneseq
  %v3499 = vshrl.u32 %v3498, 7
  %v3500 = vsub.s32 0, %v3499
  %v3501 = vrot.slane %v3495, %v3500
  %v3503 = vcombine.high %v3501, %v3501
  %v3505 = vunpack.c.l.s4 1966171168
  %v3506 = vunpack.c.0.s8 %v3505
  %v3507 = vlaneseq
  %v3508 = vshrl.u32 %v3507, 7
  %v3509 = vsub.s32 %v3506, %v3508
  %v3510 = vrot.slane %v3501, %v3509
  %v3512 = vunpack.c.l.s4 1966171168
  %v3513 = vunpack.c.0.s8 %v3512
  %v3514 = vlaneseq
  %v3515 = vshrl.u32 %v3514, 7
  %v3516 = vsub.s32 %v3513, %v3515
  %v3517 = vrot.slane %v3503, %v3516
  %v3518 = vcombine.high %v3510, %v3510
  %v3519 = vcombine.high %v3517, %v3517
  %v3521 = vunpack.c.l.s4 1966171168
  %v3522 = vunpack.c.0.s8 %v3521
  %v3523 = vlaneseq
  %v3524 = vshrl.u32 %v3523, 7
  %v3525 = vsub.s32 %v3522, %v3524
  %v3526 = vrot.slane %v3510, %v3525
  %v3528 = vunpack.c.l.s4 1966171168
  %v3529 = vunpack.c.0.s8 %v3528
  %v3530 = vlaneseq
  %v3531 = vshrl.u32 %v3530, 7
  %v3532 = vsub.s32 %v3529, %v3531
  %v3533 = vrot.slane %v3517, %v3532
  %v3535 = vunpack.c.l.s4 1966171168
  %v3536 = vunpack.c.0.s8 %v3535
  %v3537 = vlaneseq
  %v3538 = vshrl.u32 %v3537, 7
  %v3539 = vsub.s32 %v3536, %v3538
  %v3540 = vrot.slane %v3518, %v3539
  %v3542 = vunpack.c.l.s4 1966171168
  %v3543 = vunpack.c.0.s8 %v3542
  %v3544 = vlaneseq
  %v3545 = vshrl.u32 %v3544, 7
  %v3546 = vsub.s32 %v3543, %v3545
  %v3547 = vrot.slane %v3519, %v3546
  %v3548 = vcombine.high %v3526, %v3526
  %v3549 = vcombine.high %v3533, %v3533
  %v3550 = vcombine.high %v3540, %v3540
  %v3558 = vsub.f32 %v1988, %v3526
  %v3559 = vsub.f32 %v1989, %v3540
  %v3560 = vsub.f32 %v1990, %v3548
  %v3561 = vsub.f32 %v1991, %v3550
  %v3562 = vsub.f32 %v1992, %v3533
  %v3563 = vsub.f32 %v1993, %v3547
  %v3564 = vsub.f32 %v1994, %v3549
  %v3565 = vsub.f32 %v1995, %v3526
  %v3566 = vsub.f32 %v1996, %v3540
  %v3567 = vsub.f32 %v1997, %v3548
  %v3568 = vsub.f32 %v1998, %v3550
  %v3569 = vsub.f32 %v1999, %v3533
  %v3570 = vsub.f32 %v2000, %v3547
  %v3571 = vsub.f32 %v2001, %v3549
  %v3572 = vsub.f32 %v3076, %v3526
  %v3573 = vsub.f32 %v3077, %v3540
  %v3574 = vsub.f32 %v3078, %v3548
  %v3575 = vsub.f32 %v3079, %v3550
  %v3576 = vsub.f32 %v3080, %v3533
  %v3577 = vsub.f32 %v3081, %v3547
  %v3578 = vsub.f32 %v3082, %v3549
  %v3579 = vsub.f32 %v3083, %v3526
  %v3580 = vsub.f32 %v3084, %v3540
  %v3581 = vsub.f32 %v3085, %v3548
  %v3582 = vsub.f32 %v3086, %v3550
  %v3583 = vsub.f32 %v3087, %v3533
  %v3584 = vsub.f32 %v3088, %v3547
  %v3585 = vsub.f32 %v3089, %v3549
  %v3586 = vmul.f32 %v3558, %v3558
  %v3587 = vmul.f32 %v3559, %v3559
  %v3588 = vmul.f32 %v3560, %v3560
  %v3589 = vmul.f32 %v3561, %v3561
  %v3590 = vmul.f32 %v3562, %v3562
  %v3591 = vmul.f32 %v3563, %v3563
  %v3592 = vmul.f32 %v3564, %v3564
  %v3593 = vmul.f32 %v3565, %v3565
  %v3594 = vmul.f32 %v3566, %v3566
  %v3595 = vmul.f32 %v3567, %v3567
  %v3596 = vmul.f32 %v3568, %v3568
  %v3597 = vmul.f32 %v3569, %v3569
  %v3598 = vmul.f32 %v3570, %v3570
  %v3599 = vmul.f32 %v3571, %v3571
  %v3614 = vcombine.low %v3586, %v3587
  %v3615 = vcombine.low %v3588, %v3589
  %v3616 = vcombine.low %v3590, %v3591
  %v3618 = vunpack.c.l.s4 1966171168
  %v3619 = vunpack.c.0.s8 %v3618
  %v3620 = vlaneseq
  %v3621 = vshrl.u32 %v3620, 7
  %v3622 = vsub.s32 %v3619, %v3621
  %v3623 = vrot.slane %v3614, %v3622
  %v3625 = vunpack.c.l.s4 1966171168
  %v3626 = vunpack.c.0.s8 %v3625
  %v3627 = vlaneseq
  %v3628 = vshrl.u32 %v3627, 7
  %v3629 = vsub.s32 %v3626, %v3628
  %v3630 = vrot.slane %v3615, %v3629
  %v3632 = vunpack.c.l.s4 1966171168
  %v3633 = vunpack.c.0.s8 %v3632
  %v3634 = vlaneseq
  %v3635 = vshrl.u32 %v3634, 7
  %v3636 = vsub.s32 %v3633, %v3635
  %v3637 = vrot.slane %v3616, %v3636
  %v3639 = vunpack.c.l.s4 1966171168
  %v3640 = vunpack.c.0.s8 %v3639
  %v3641 = vlaneseq
  %v3642 = vshrl.u32 %v3641, 7
  %v3643 = vsub.s32 %v3640, %v3642
  %v3644 = vrot.slane %v3592, %v3643
  %v3645 = vcombine.low %v3623, %v3630
  %v3646 = vcombine.low %v3637, %v3644
  %v3648 = vunpack.c.l.s4 1966171168
  %v3649 = vunpack.c.0.s8 %v3648
  %v3650 = vlaneseq
  %v3651 = vshrl.u32 %v3650, 7
  %v3652 = vsub.s32 %v3649, %v3651
  %v3653 = vrot.slane %v3645, %v3652
  %v3655 = vunpack.c.l.s4 1966171168
  %v3656 = vunpack.c.0.s8 %v3655
  %v3657 = vlaneseq
  %v3658 = vshrl.u32 %v3657, 7
  %v3659 = vsub.s32 %v3656, %v3658
  %v3660 = vrot.slane %v3646, %v3659
  %v3661 = vcombine.low %v3653, %v3660
  %v3662 = vcombine.low %v3593, %v3594
  %v3663 = vcombine.low %v3595, %v3596
  %v3664 = vcombine.low %v3597, %v3598
  %v3666 = vunpack.c.l.s4 1966171168
  %v3667 = vunpack.c.0.s8 %v3666
  %v3668 = vlaneseq
  %v3669 = vshrl.u32 %v3668, 7
  %v3670 = vsub.s32 %v3667, %v3669
  %v3671 = vrot.slane %v3662, %v3670
  %v3673 = vunpack.c.l.s4 1966171168
  %v3674 = vunpack.c.0.s8 %v3673
  %v3675 = vlaneseq
  %v3676 = vshrl.u32 %v3675, 7
  %v3677 = vsub.s32 %v3674, %v3676
  %v3678 = vrot.slane %v3663, %v3677
  %v3680 = vunpack.c.l.s4 1966171168
  %v3681 = vunpack.c.0.s8 %v3680
  %v3682 = vlaneseq
  %v3683 = vshrl.u32 %v3682, 7
  %v3684 = vsub.s32 %v3681, %v3683
  %v3685 = vrot.slane %v3664, %v3684
  %v3687 = vunpack.c.l.s4 1966171168
  %v3688 = vunpack.c.0.s8 %v3687
  %v3689 = vlaneseq
  %v3690 = vshrl.u32 %v3689, 7
  %v3691 = vsub.s32 %v3688, %v3690
  %v3692 = vrot.slane %v3599, %v3691
  %v3693 = vcombine.low %v3671, %v3678
  %v3694 = vcombine.low %v3685, %v3692
  %v3696 = vunpack.c.l.s4 1966171168
  %v3697 = vunpack.c.0.s8 %v3696
  %v3698 = vlaneseq
  %v3699 = vshrl.u32 %v3698, 7
  %v3700 = vsub.s32 %v3697, %v3699
  %v3701 = vrot.slane %v3693, %v3700
  %v3703 = vunpack.c.l.s4 1966171168
  %v3704 = vunpack.c.0.s8 %v3703
  %v3705 = vlaneseq
  %v3706 = vshrl.u32 %v3705, 7
  %v3707 = vsub.s32 %v3704, %v3706
  %v3708 = vrot.slane %v3694, %v3707
  %v3709 = vcombine.low %v3701, %v3708
  %v3712 = vsel %vm3217, %v3661, 0.0
  %v3713 = vsel %vm3217, %v3709, 0.0
  %v3714 = vadd.f32 %v3712, %v3713
  %v3715 = vrot.slane %v3714, 4
  %v3716 = vadd.f32 %v3714, %v3715
  %v3717 = vrot.slane %v3716, 2
  %v3718 = vadd.f32 %v3716, %v3717
  %v3719 = vrot.slane %v3718, 1
  %v3720 = vadd.f32 %v3718, %v3719
  %v3721 = vmul.f32 %v3572, %v3572
  %v3722 = vmul.f32 %v3573, %v3573
  %v3723 = vmul.f32 %v3574, %v3574
  %v3724 = vmul.f32 %v3575, %v3575
  %v3725 = vmul.f32 %v3576, %v3576
  %v3726 = vmul.f32 %v3577, %v3577
  %v3727 = vmul.f32 %v3578, %v3578
  %v3728 = vmul.f32 %v3579, %v3579
  %v3729 = vmul.f32 %v3580, %v3580
  %v3730 = vmul.f32 %v3581, %v3581
  %v3731 = vmul.f32 %v3582, %v3582
  %v3732 = vmul.f32 %v3583, %v3583
  %v3733 = vmul.f32 %v3584, %v3584
  %v3734 = vmul.f32 %v3585, %v3585
  %v3749 = vcombine.low %v3721, %v3722
  %v3750 = vcombine.low %v3723, %v3724
  %v3751 = vcombine.low %v3725, %v3726
  %v3753 = vunpack.c.l.s4 1966171168
  %v3754 = vunpack.c.0.s8 %v3753
  %v3755 = vlaneseq
  %v3756 = vshrl.u32 %v3755, 7
  %v3757 = vsub.s32 %v3754, %v3756
  %v3758 = vrot.slane %v3749, %v3757
  %v3760 = vunpack.c.l.s4 1966171168
  %v3761 = vunpack.c.0.s8 %v3760
  %v3762 = vlaneseq
  %v3763 = vshrl.u32 %v3762, 7
  %v3764 = vsub.s32 %v3761, %v3763
  %v3765 = vrot.slane %v3750, %v3764
  %v3767 = vunpack.c.l.s4 1966171168
  %v3768 = vunpack.c.0.s8 %v3767
  %v3769 = vlaneseq
  %v3770 = vshrl.u32 %v3769, 7
  %v3771 = vsub.s32 %v3768, %v3770
  %v3772 = vrot.slane %v3751, %v3771
  %v3774 = vunpack.c.l.s4 1966171168
  %v3775 = vunpack.c.0.s8 %v3774
  %v3776 = vlaneseq
  %v3777 = vshrl.u32 %v3776, 7
  %v3778 = vsub.s32 %v3775, %v3777
  %v3779 = vrot.slane %v3727, %v3778
  %v3780 = vcombine.low %v3758, %v3765
  %v3781 = vcombine.low %v3772, %v3779
  %v3783 = vunpack.c.l.s4 1966171168
  %v3784 = vunpack.c.0.s8 %v3783
  %v3785 = vlaneseq
  %v3786 = vshrl.u32 %v3785, 7
  %v3787 = vsub.s32 %v3784, %v3786
  %v3788 = vrot.slane %v3780, %v3787
  %v3790 = vunpack.c.l.s4 1966171168
  %v3791 = vunpack.c.0.s8 %v3790
  %v3792 = vlaneseq
  %v3793 = vshrl.u32 %v3792, 7
  %v3794 = vsub.s32 %v3791, %v3793
  %v3795 = vrot.slane %v3781, %v3794
  %v3796 = vcombine.low %v3788, %v3795
  %v3797 = vcombine.low %v3728, %v3729
  %v3798 = vcombine.low %v3730, %v3731
  %v3799 = vcombine.low %v3732, %v3733
  %v3801 = vunpack.c.l.s4 1966171168
  %v3802 = vunpack.c.0.s8 %v3801
  %v3803 = vlaneseq
  %v3804 = vshrl.u32 %v3803, 7
  %v3805 = vsub.s32 %v3802, %v3804
  %v3806 = vrot.slane %v3797, %v3805
  %v3808 = vunpack.c.l.s4 1966171168
  %v3809 = vunpack.c.0.s8 %v3808
  %v3810 = vlaneseq
  %v3811 = vshrl.u32 %v3810, 7
  %v3812 = vsub.s32 %v3809, %v3811
  %v3813 = vrot.slane %v3798, %v3812
  %v3815 = vunpack.c.l.s4 1966171168
  %v3816 = vunpack.c.0.s8 %v3815
  %v3817 = vlaneseq
  %v3818 = vshrl.u32 %v3817, 7
  %v3819 = vsub.s32 %v3816, %v3818
  %v3820 = vrot.slane %v3799, %v3819
  %v3822 = vunpack.c.l.s4 1966171168
  %v3823 = vunpack.c.0.s8 %v3822
  %v3824 = vlaneseq
  %v3825 = vshrl.u32 %v3824, 7
  %v3826 = vsub.s32 %v3823, %v3825
  %v3827 = vrot.slane %v3734, %v3826
  %v3828 = vcombine.low %v3806, %v3813
  %v3829 = vcombine.low %v3820, %v3827
  %v3831 = vunpack.c.l.s4 1966171168
  %v3832 = vunpack.c.0.s8 %v3831
  %v3833 = vlaneseq
  %v3834 = vshrl.u32 %v3833, 7
  %v3835 = vsub.s32 %v3832, %v3834
  %v3836 = vrot.slane %v3828, %v3835
  %v3838 = vunpack.c.l.s4 1966171168
  %v3839 = vunpack.c.0.s8 %v3838
  %v3840 = vlaneseq
  %v3841 = vshrl.u32 %v3840, 7
  %v3842 = vsub.s32 %v3839, %v3841
  %v3843 = vrot.slane %v3829, %v3842
  %v3844 = vcombine.low %v3836, %v3843
  %v3847 = vsel %vm3217, %v3796, 0.0
  %v3848 = vsel %vm3217, %v3844, 0.0
  %v3849 = vadd.f32 %v3847, %v3848
  %v3850 = vrot.slane %v3849, 4
  %v3851 = vadd.f32 %v3849, %v3850
  %v3852 = vrot.slane %v3851, 2
  %v3853 = vadd.f32 %v3851, %v3852
  %v3854 = vrot.slane %v3853, 1
  %v3855 = vadd.f32 %v3853, %v3854
  %v3856 = vadd.f32 %v3720, %v3855
  %v3858 = vsel %vm3349, %v3856, 0
  %3860 = vmatprep.subr.mxu0 0.0
  %3861 = vmatpush1.msra.mxu0 %v3090
  %3862 = vmatprep.subr.mxu0 0.0
  %3863 = vmatpush1.msra.mxu0 %v3091
  %3864 = vmatprep.subr.mxu0 0.0
  %3865 = vmatpush1.msra.mxu0 %v3092
  %3866 = vmatprep.subr.mxu0 0.0
  %3867 = vmatpush1.msra.mxu0 %v3093
  %3868 = vmatprep.subr.mxu0 0.0
  %3869 = vmatpush1.msra.mxu0 %v3094
  %3870 = vmatprep.subr.mxu0 0.0
  %3871 = vmatpush1.msra.mxu0 %v3095
  %3872 = vmatprep.subr.mxu0 0.0
  %3873 = vmatpush1.msra.mxu0 %v3096
  %3874 = vmatprep.subr.mxu0 0.0
  %3875 = vmatpush1.msra.mxu0 %v3097
  %3876 = vmatprep.subr.mxu0 0.0
  %3877 = vmatpush1.msra.mxu0 %v3098
  %3878 = vmatprep.subr.mxu0 0.0
  %3879 = vmatpush1.msra.mxu0 %v3099
  %3880 = vmatprep.subr.mxu0 0.0
  %3881 = vmatpush1.msra.mxu0 %v3100
  %3882 = vmatprep.subr.mxu0 0.0
  %3883 = vmatpush1.msra.mxu0 %v3101
  %3884 = vmatprep.subr.mxu0 0.0
  %3885 = vmatpush1.msra.mxu0 %v3102
  %3886 = vmatprep.subr.mxu0 0.0
  %3887 = vmatpush1.msra.mxu0 %v3103
  %3888 = vmatprep.subr.mxu0 0.0
  %3889 = vmatpush1.msra.mxu0 0.0
  %3890 = vmatprep.subr.mxu0 0.0
  %3891 = vmatpush1.msra.mxu0 0.0
  %3892 = vmatprep.subr.mxu0 0.0
  %3893 = vmatpush1.msra.mxu0 0.0
  %3894 = vmatprep.subr.mxu0 0.0
  %3895 = vmatpush1.msra.mxu0 0.0
  %3896 = vmatprep.subr.mxu0 0.0
  %3897 = vmatpush1.msra.mxu0 0.0
  %3898 = vmatprep.subr.mxu0 0.0
  %3899 = vmatpush1.msra.mxu0 0.0
  %3900 = vmatprep.subr.mxu0 0.0
  %3901 = vmatpush1.msra.mxu0 0.0
  %3902 = vmatprep.subr.mxu0 0.0
  %3903 = vmatpush1.msra.mxu0 0.0
  %3904 = vmatprep.subr.mxu0 0.0
  %3905 = vmatpush1.msra.mxu0 0.0
  %3906 = vmatprep.subr.mxu0 0.0
  %3907 = vmatpush1.msra.mxu0 0.0
  %3908 = vmatprep.subr.mxu0 0.0
  %3909 = vmatpush1.msra.mxu0 0.0
  %3910 = vmatprep.subr.mxu0 0.0
  %3911 = vmatpush1.msra.mxu0 0.0
  %3912 = vmatprep.subr.mxu0 0.0
  %3913 = vmatpush1.msra.mxu0 0.0
  %3914 = vmatprep.subr.mxu0 0.0
  %3915 = vmatpush1.msra.mxu0 0.0
  %3916 = vmatprep.subr.mxu0 0.0
  %3917 = vmatpush1.msra.mxu0 0.0
  %3918 = vmatprep.subr.mxu0 0.0
  %3919 = vmatpush1.msra.mxu0 0.0
  %3920 = vmatprep.subr.mxu0 0.0
  %3921 = vmatpush1.msra.mxu0 0.0
  %3922 = vmatprep.subr.mxu0 0.0
  %3923 = vmatpush1.msra.mxu0 0.0
  %3924 = vmatprep.mubr.f32.mxu0 0.0
  %3925 = vmatmul.mubr.f32.gmra.mrb[0].mxu0 %v3858
  %v3926 = vpop.f32.mrb[0].mxu0
  %v3927 = vadd.f32 0.0, %v3926
  %v3928 = vpop.f32.mrb[0].mxu0
  %3929 = vdwg.mxu0
  %v3930 = vmul.f32 %v3927, 0.0025510204
  %v3931 = vld [vmem:[%s5] sm:$0x1]
  %v3932 = vadd.f32 %v3930, 1e-05
  %v3933 = vrsqrt.pop %v3932
  %v3934 = vmul.f32 %v3931, %v3933
  %v3935 = vld [vmem:[%s6] sm:$0x1]
  %v3936 = vmul.f32 %v3423, %v3934
  %v3937 = vsub.f32 %v3935, %v3936
  %v3939 = vsel %vm3424, %v3934, 0
  %3941 = vmatprep.subr.mxu0 0.0
  %3942 = vmatpush1.msra.mxu0 %v3104
  %3943 = vmatprep.subr.mxu0 0.0
  %3944 = vmatpush1.msra.mxu0 0.0
  %3945 = vmatprep.subr.mxu0 0.0
  %3946 = vmatpush1.msra.mxu0 0.0
  %3947 = vmatprep.subr.mxu0 0.0
  %3948 = vmatpush1.msra.mxu0 0.0
  %3949 = vmatprep.subr.mxu0 0.0
  %3950 = vmatpush1.msra.mxu0 0.0
  %3951 = vmatprep.subr.mxu0 0.0
  %3952 = vmatpush1.msra.mxu0 0.0
  %3953 = vmatprep.subr.mxu0 0.0
  %3954 = vmatpush1.msra.mxu0 0.0
  %3955 = vmatprep.subr.mxu0 0.0
  %3956 = vmatpush1.msra.mxu0 0.0
  %3957 = vmatprep.subr.mxu0 0.0
  %3958 = vmatpush1.msra.mxu0 0.0
  %3959 = vmatprep.subr.mxu0 0.0
  %3960 = vmatpush1.msra.mxu0 0.0
  %3961 = vmatprep.subr.mxu0 0.0
  %3962 = vmatpush1.msra.mxu0 0.0
  %3963 = vmatprep.subr.mxu0 0.0
  %3964 = vmatpush1.msra.mxu0 0.0
  %3965 = vmatprep.subr.mxu0 0.0
  %3966 = vmatpush1.msra.mxu0 0.0
  %3967 = vmatprep.subr.mxu0 0.0
  %3968 = vmatpush1.msra.mxu0 0.0
  %3969 = vmatprep.subr.mxu0 0.0
  %3970 = vmatpush1.msra.mxu0 0.0
  %3971 = vmatprep.subr.mxu0 0.0
  %3972 = vmatpush1.msra.mxu0 0.0
  %3973 = vmatprep.subr.mxu0 0.0
  %3974 = vmatpush1.msra.mxu0 0.0
  %3975 = vmatprep.subr.mxu0 0.0
  %3976 = vmatpush1.msra.mxu0 0.0
  %3977 = vmatprep.subr.mxu0 0.0
  %3978 = vmatpush1.msra.mxu0 0.0
  %3979 = vmatprep.subr.mxu0 0.0
  %3980 = vmatpush1.msra.mxu0 0.0
  %3981 = vmatprep.subr.mxu0 0.0
  %3982 = vmatpush1.msra.mxu0 0.0
  %3983 = vmatprep.subr.mxu0 0.0
  %3984 = vmatpush1.msra.mxu0 0.0
  %3985 = vmatprep.subr.mxu0 0.0
  %3986 = vmatpush1.msra.mxu0 0.0
  %3987 = vmatprep.subr.mxu0 0.0
  %3988 = vmatpush1.msra.mxu0 0.0
  %3989 = vmatprep.subr.mxu0 0.0
  %3990 = vmatpush1.msra.mxu0 0.0
  %3991 = vmatprep.subr.mxu0 0.0
  %3992 = vmatpush1.msra.mxu0 0.0
  %3993 = vmatprep.subr.mxu0 0.0
  %3994 = vmatpush1.msra.mxu0 0.0
  %3995 = vmatprep.subr.mxu0 0.0
  %3996 = vmatpush1.msra.mxu0 0.0
  %3997 = vmatprep.subr.mxu0 0.0
  %3998 = vmatpush1.msra.mxu0 0.0
  %3999 = vmatprep.subr.mxu0 0.0
  %4000 = vmatpush1.msra.mxu0 0.0
  %4001 = vmatprep.subr.mxu0 0.0
  %4002 = vmatpush1.msra.mxu0 0.0
  %4003 = vmatprep.subr.mxu0 0.0
  %4004 = vmatpush1.msra.mxu0 0.0
  %4005 = vmatprep.mubr.f32.mxu0 0.0
  %4006 = vmatmul.mubr.f32.gmra.mrb[0].mxu0 %v3939
  %v4007 = vpop.f32.mrb[0].mxu0
  %v4008 = vadd.f32 0.0, %v4007
  %v4009 = vpop.f32.mrb[0].mxu0
  %4010 = vdwg.mxu0
  %v4012 = vsel %vm3424, %v3937, 0
  %4014 = vmatprep.subr.mxu0 0.0
  %4015 = vmatpush1.msra.mxu0 %v3104
  %4016 = vmatprep.subr.mxu0 0.0
  %4017 = vmatpush1.msra.mxu0 0.0
  %4018 = vmatprep.subr.mxu0 0.0
  %4019 = vmatpush1.msra.mxu0 0.0
  %4020 = vmatprep.subr.mxu0 0.0
  %4021 = vmatpush1.msra.mxu0 0.0
  %4022 = vmatprep.subr.mxu0 0.0
  %4023 = vmatpush1.msra.mxu0 0.0
  %4024 = vmatprep.subr.mxu0 0.0
  %4025 = vmatpush1.msra.mxu0 0.0
  %4026 = vmatprep.subr.mxu0 0.0
  %4027 = vmatpush1.msra.mxu0 0.0
  %4028 = vmatprep.subr.mxu0 0.0
  %4029 = vmatpush1.msra.mxu0 0.0
  %4030 = vmatprep.subr.mxu0 0.0
  %4031 = vmatpush1.msra.mxu0 0.0
  %4032 = vmatprep.subr.mxu0 0.0
  %4033 = vmatpush1.msra.mxu0 0.0
  %4034 = vmatprep.subr.mxu0 0.0
  %4035 = vmatpush1.msra.mxu0 0.0
  %4036 = vmatprep.subr.mxu0 0.0
  %4037 = vmatpush1.msra.mxu0 0.0
  %4038 = vmatprep.subr.mxu0 0.0
  %4039 = vmatpush1.msra.mxu0 0.0
  %4040 = vmatprep.subr.mxu0 0.0
  %4041 = vmatpush1.msra.mxu0 0.0
  %4042 = vmatprep.subr.mxu0 0.0
  %4043 = vmatpush1.msra.mxu0 0.0
  %4044 = vmatprep.subr.mxu0 0.0
  %4045 = vmatpush1.msra.mxu0 0.0
  %4046 = vmatprep.subr.mxu0 0.0
  %4047 = vmatpush1.msra.mxu0 0.0
  %4048 = vmatprep.subr.mxu0 0.0
  %4049 = vmatpush1.msra.mxu0 0.0
  %4050 = vmatprep.subr.mxu0 0.0
  %4051 = vmatpush1.msra.mxu0 0.0
  %4052 = vmatprep.subr.mxu0 0.0
  %4053 = vmatpush1.msra.mxu0 0.0
  %4054 = vmatprep.subr.mxu0 0.0
  %4055 = vmatpush1.msra.mxu0 0.0
  %4056 = vmatprep.subr.mxu0 0.0
  %4057 = vmatpush1.msra.mxu0 0.0
  %4058 = vmatprep.subr.mxu0 0.0
  %4059 = vmatpush1.msra.mxu0 0.0
  %4060 = vmatprep.subr.mxu0 0.0
  %4061 = vmatpush1.msra.mxu0 0.0
  %4062 = vmatprep.subr.mxu0 0.0
  %4063 = vmatpush1.msra.mxu0 0.0
  %4064 = vmatprep.subr.mxu0 0.0
  %4065 = vmatpush1.msra.mxu0 0.0
  %4066 = vmatprep.subr.mxu0 0.0
  %4067 = vmatpush1.msra.mxu0 0.0
  %4068 = vmatprep.subr.mxu0 0.0
  %4069 = vmatpush1.msra.mxu0 0.0
  %4070 = vmatprep.subr.mxu0 0.0
  %4071 = vmatpush1.msra.mxu0 0.0
  %4072 = vmatprep.subr.mxu0 0.0
  %4073 = vmatpush1.msra.mxu0 0.0
  %4074 = vmatprep.subr.mxu0 0.0
  %4075 = vmatpush1.msra.mxu0 0.0
  %4076 = vmatprep.subr.mxu0 0.0
  %4077 = vmatpush1.msra.mxu0 0.0
  %4078 = vmatprep.mubr.f32.mxu0 0.0
  %4079 = vmatmul.mubr.f32.gmra.mrb[0].mxu0 %v4012
  %v4080 = vpop.f32.mrb[0].mxu0
  %v4081 = vadd.f32 0.0, %v4080
  %v4082 = vpop.f32.mrb[0].mxu0
  %4083 = vdwg.mxu0
  %v4084 = vlaneseq
  %v4085 = vshrl.u32 %v4084, 7
  %v4086 = vsub.s32 0, %v4085
  %v4087 = vrot.slane %v4008, %v4086
  %v4089 = vcombine.high %v4087, %v4087
  %v4091 = vunpack.c.l.s4 1966171168
  %v4092 = vunpack.c.0.s8 %v4091
  %v4093 = vlaneseq
  %v4094 = vshrl.u32 %v4093, 7
  %v4095 = vsub.s32 %v4092, %v4094
  %v4096 = vrot.slane %v4087, %v4095
  %v4098 = vunpack.c.l.s4 1966171168
  %v4099 = vunpack.c.0.s8 %v4098
  %v4100 = vlaneseq
  %v4101 = vshrl.u32 %v4100, 7
  %v4102 = vsub.s32 %v4099, %v4101
  %v4103 = vrot.slane %v4089, %v4102
  %v4104 = vcombine.high %v4096, %v4096
  %v4105 = vcombine.high %v4103, %v4103
  %v4107 = vunpack.c.l.s4 1966171168
  %v4108 = vunpack.c.0.s8 %v4107
  %v4109 = vlaneseq
  %v4110 = vshrl.u32 %v4109, 7
  %v4111 = vsub.s32 %v4108, %v4110
  %v4112 = vrot.slane %v4096, %v4111
  %v4114 = vunpack.c.l.s4 1966171168
  %v4115 = vunpack.c.0.s8 %v4114
  %v4116 = vlaneseq
  %v4117 = vshrl.u32 %v4116, 7
  %v4118 = vsub.s32 %v4115, %v4117
  %v4119 = vrot.slane %v4103, %v4118
  %v4121 = vunpack.c.l.s4 1966171168
  %v4122 = vunpack.c.0.s8 %v4121
  %v4123 = vlaneseq
  %v4124 = vshrl.u32 %v4123, 7
  %v4125 = vsub.s32 %v4122, %v4124
  %v4126 = vrot.slane %v4104, %v4125
  %v4128 = vunpack.c.l.s4 1966171168
  %v4129 = vunpack.c.0.s8 %v4128
  %v4130 = vlaneseq
  %v4131 = vshrl.u32 %v4130, 7
  %v4132 = vsub.s32 %v4129, %v4131
  %v4133 = vrot.slane %v4105, %v4132
  %v4134 = vcombine.high %v4112, %v4112
  %v4135 = vcombine.high %v4119, %v4119
  %v4136 = vcombine.high %v4126, %v4126
  %v4144 = vmul.f32 %v1988, %v4112
  %v4145 = vmul.f32 %v1989, %v4126
  %v4146 = vmul.f32 %v1990, %v4134
  %v4147 = vmul.f32 %v1991, %v4136
  %v4148 = vmul.f32 %v1992, %v4119
  %v4149 = vmul.f32 %v1993, %v4133
  %v4150 = vmul.f32 %v1994, %v4135
  %v4151 = vmul.f32 %v1995, %v4112
  %v4152 = vmul.f32 %v1996, %v4126
  %v4153 = vmul.f32 %v1997, %v4134
  %v4154 = vmul.f32 %v1998, %v4136
  %v4155 = vmul.f32 %v1999, %v4119
  %v4156 = vmul.f32 %v2000, %v4133
  %v4157 = vmul.f32 %v2001, %v4135
  %v4158 = vlaneseq
  %v4159 = vshrl.u32 %v4158, 7
  %v4160 = vsub.s32 0, %v4159
  %v4161 = vrot.slane %v4081, %v4160
  %v4163 = vcombine.high %v4161, %v4161
  %v4165 = vunpack.c.l.s4 1966171168
  %v4166 = vunpack.c.0.s8 %v4165
  %v4167 = vlaneseq
  %v4168 = vshrl.u32 %v4167, 7
  %v4169 = vsub.s32 %v4166, %v4168
  %v4170 = vrot.slane %v4161, %v4169
  %v4172 = vunpack.c.l.s4 1966171168
  %v4173 = vunpack.c.0.s8 %v4172
  %v4174 = vlaneseq
  %v4175 = vshrl.u32 %v4174, 7
  %v4176 = vsub.s32 %v4173, %v4175
  %v4177 = vrot.slane %v4163, %v4176
  %v4178 = vcombine.high %v4170, %v4170
  %v4179 = vcombine.high %v4177, %v4177
  %v4181 = vunpack.c.l.s4 1966171168
  %v4182 = vunpack.c.0.s8 %v4181
  %v4183 = vlaneseq
  %v4184 = vshrl.u32 %v4183, 7
  %v4185 = vsub.s32 %v4182, %v4184
  %v4186 = vrot.slane %v4170, %v4185
  %v4188 = vunpack.c.l.s4 1966171168
  %v4189 = vunpack.c.0.s8 %v4188
  %v4190 = vlaneseq
  %v4191 = vshrl.u32 %v4190, 7
  %v4192 = vsub.s32 %v4189, %v4191
  %v4193 = vrot.slane %v4177, %v4192
  %v4195 = vunpack.c.l.s4 1966171168
  %v4196 = vunpack.c.0.s8 %v4195
  %v4197 = vlaneseq
  %v4198 = vshrl.u32 %v4197, 7
  %v4199 = vsub.s32 %v4196, %v4198
  %v4200 = vrot.slane %v4178, %v4199
  %v4202 = vunpack.c.l.s4 1966171168
  %v4203 = vunpack.c.0.s8 %v4202
  %v4204 = vlaneseq
  %v4205 = vshrl.u32 %v4204, 7
  %v4206 = vsub.s32 %v4203, %v4205
  %v4207 = vrot.slane %v4179, %v4206
  %v4208 = vcombine.high %v4186, %v4186
  %v4209 = vcombine.high %v4193, %v4193
  %v4210 = vcombine.high %v4200, %v4200
  %v4218 = vadd.f32 %v4144, %v4186
  %v4219 = vadd.f32 %v4145, %v4200
  %v4220 = vadd.f32 %v4146, %v4208
  %v4221 = vadd.f32 %v4147, %v4210
  %v4222 = vadd.f32 %v4148, %v4193
  %v4223 = vadd.f32 %v4149, %v4207
  %v4224 = vadd.f32 %v4150, %v4209
  %v4225 = vadd.f32 %v4151, %v4186
  %v4226 = vadd.f32 %v4152, %v4200
  %v4227 = vadd.f32 %v4153, %v4208
  %v4228 = vadd.f32 %v4154, %v4210
  %v4229 = vadd.f32 %v4155, %v4193
  %v4230 = vadd.f32 %v4156, %v4207
  %v4231 = vadd.f32 %v4157, %v4209
  %v4232 = vmax.f32 %v4218, 0.0
  %v4233 = vmax.f32 %v4219, 0.0
  %v4234 = vmax.f32 %v4220, 0.0
  %v4235 = vmax.f32 %v4221, 0.0
  %v4236 = vmax.f32 %v4222, 0.0
  %v4237 = vmax.f32 %v4223, 0.0
  %v4238 = vmax.f32 %v4224, 0.0
  %v4239 = vmax.f32 %v4225, 0.0
  %v4240 = vmax.f32 %v4226, 0.0
  %v4241 = vmax.f32 %v4227, 0.0
  %v4242 = vmax.f32 %v4228, 0.0
  %v4243 = vmax.f32 %v4229, 0.0
  %v4244 = vmax.f32 %v4230, 0.0
  %v4245 = vmax.f32 %v4231, 0.0
  %v4246 = vmul.f32 %v3076, %v4112
  %v4247 = vmul.f32 %v3077, %v4126
  %v4248 = vmul.f32 %v3078, %v4134
  %v4249 = vmul.f32 %v3079, %v4136
  %v4250 = vmul.f32 %v3080, %v4119
  %v4251 = vmul.f32 %v3081, %v4133
  %v4252 = vmul.f32 %v3082, %v4135
  %v4253 = vmul.f32 %v3083, %v4112
  %v4254 = vmul.f32 %v3084, %v4126
  %v4255 = vmul.f32 %v3085, %v4134
  %v4256 = vmul.f32 %v3086, %v4136
  %v4257 = vmul.f32 %v3087, %v4119
  %v4258 = vmul.f32 %v3088, %v4133
  %v4259 = vmul.f32 %v3089, %v4135
  %v4260 = vadd.f32 %v4246, %v4186
  %v4261 = vadd.f32 %v4247, %v4200
  %v4262 = vadd.f32 %v4248, %v4208
  %v4263 = vadd.f32 %v4249, %v4210
  %v4264 = vadd.f32 %v4250, %v4193
  %v4265 = vadd.f32 %v4251, %v4207
  %v4266 = vadd.f32 %v4252, %v4209
  %v4267 = vadd.f32 %v4253, %v4186
  %v4268 = vadd.f32 %v4254, %v4200
  %v4269 = vadd.f32 %v4255, %v4208
  %v4270 = vadd.f32 %v4256, %v4210
  %v4271 = vadd.f32 %v4257, %v4193
  %v4272 = vadd.f32 %v4258, %v4207
  %v4273 = vadd.f32 %v4259, %v4209
  %v4274 = vmax.f32 %v4260, 0.0
  %v4275 = vmax.f32 %v4261, 0.0
  %v4276 = vmax.f32 %v4262, 0.0
  %v4277 = vmax.f32 %v4263, 0.0
  %v4278 = vmax.f32 %v4264, 0.0
  %v4279 = vmax.f32 %v4265, 0.0
  %v4280 = vmax.f32 %v4266, 0.0
  %v4281 = vmax.f32 %v4267, 0.0
  %v4282 = vmax.f32 %v4268, 0.0
  %v4283 = vmax.f32 %v4269, 0.0
  %v4284 = vmax.f32 %v4270, 0.0
  %v4285 = vmax.f32 %v4271, 0.0
  %v4286 = vmax.f32 %v4272, 0.0
  %v4287 = vmax.f32 %v4273, 0.0
  %v4302 = vcombine.low %v4232, %v4233
  %v4303 = vcombine.low %v4234, %v4235
  %v4304 = vcombine.low %v4236, %v4237
  %v4306 = vunpack.c.l.s4 1966171168
  %v4307 = vunpack.c.0.s8 %v4306
  %v4308 = vlaneseq
  %v4309 = vshrl.u32 %v4308, 7
  %v4310 = vsub.s32 %v4307, %v4309
  %v4311 = vrot.slane %v4302, %v4310
  %v4313 = vunpack.c.l.s4 1966171168
  %v4314 = vunpack.c.0.s8 %v4313
  %v4315 = vlaneseq
  %v4316 = vshrl.u32 %v4315, 7
  %v4317 = vsub.s32 %v4314, %v4316
  %v4318 = vrot.slane %v4303, %v4317
  %v4320 = vunpack.c.l.s4 1966171168
  %v4321 = vunpack.c.0.s8 %v4320
  %v4322 = vlaneseq
  %v4323 = vshrl.u32 %v4322, 7
  %v4324 = vsub.s32 %v4321, %v4323
  %v4325 = vrot.slane %v4304, %v4324
  %v4327 = vunpack.c.l.s4 1966171168
  %v4328 = vunpack.c.0.s8 %v4327
  %v4329 = vlaneseq
  %v4330 = vshrl.u32 %v4329, 7
  %v4331 = vsub.s32 %v4328, %v4330
  %v4332 = vrot.slane %v4238, %v4331
  %v4333 = vcombine.low %v4311, %v4318
  %v4334 = vcombine.low %v4325, %v4332
  %v4336 = vunpack.c.l.s4 1966171168
  %v4337 = vunpack.c.0.s8 %v4336
  %v4338 = vlaneseq
  %v4339 = vshrl.u32 %v4338, 7
  %v4340 = vsub.s32 %v4337, %v4339
  %v4341 = vrot.slane %v4333, %v4340
  %v4343 = vunpack.c.l.s4 1966171168
  %v4344 = vunpack.c.0.s8 %v4343
  %v4345 = vlaneseq
  %v4346 = vshrl.u32 %v4345, 7
  %v4347 = vsub.s32 %v4344, %v4346
  %v4348 = vrot.slane %v4334, %v4347
  %v4349 = vcombine.low %v4341, %v4348
  %v4350 = vcombine.low %v4239, %v4240
  %v4351 = vcombine.low %v4241, %v4242
  %v4352 = vcombine.low %v4243, %v4244
  %v4354 = vunpack.c.l.s4 1966171168
  %v4355 = vunpack.c.0.s8 %v4354
  %v4356 = vlaneseq
  %v4357 = vshrl.u32 %v4356, 7
  %v4358 = vsub.s32 %v4355, %v4357
  %v4359 = vrot.slane %v4350, %v4358
  %v4361 = vunpack.c.l.s4 1966171168
  %v4362 = vunpack.c.0.s8 %v4361
  %v4363 = vlaneseq
  %v4364 = vshrl.u32 %v4363, 7
  %v4365 = vsub.s32 %v4362, %v4364
  %v4366 = vrot.slane %v4351, %v4365
  %v4368 = vunpack.c.l.s4 1966171168
  %v4369 = vunpack.c.0.s8 %v4368
  %v4370 = vlaneseq
  %v4371 = vshrl.u32 %v4370, 7
  %v4372 = vsub.s32 %v4369, %v4371
  %v4373 = vrot.slane %v4352, %v4372
  %v4375 = vunpack.c.l.s4 1966171168
  %v4376 = vunpack.c.0.s8 %v4375
  %v4377 = vlaneseq
  %v4378 = vshrl.u32 %v4377, 7
  %v4379 = vsub.s32 %v4376, %v4378
  %v4380 = vrot.slane %v4245, %v4379
  %v4381 = vcombine.low %v4359, %v4366
  %v4382 = vcombine.low %v4373, %v4380
  %v4384 = vunpack.c.l.s4 1966171168
  %v4385 = vunpack.c.0.s8 %v4384
  %v4386 = vlaneseq
  %v4387 = vshrl.u32 %v4386, 7
  %v4388 = vsub.s32 %v4385, %v4387
  %v4389 = vrot.slane %v4381, %v4388
  %v4391 = vunpack.c.l.s4 1966171168
  %v4392 = vunpack.c.0.s8 %v4391
  %v4393 = vlaneseq
  %v4394 = vshrl.u32 %v4393, 7
  %v4395 = vsub.s32 %v4392, %v4394
  %v4396 = vrot.slane %v4382, %v4395
  %v4397 = vcombine.low %v4389, %v4396
  %4400 = vst.msk [vmem:[#allocation2] sm:$0x7f] %vm3217, %v4349
  %4401 = vst.msk [vmem:[#allocation2 + $0x8] sm:$0x7f] %vm3217, %v4397
  %v4416 = vcombine.low %v4274, %v4275
  %v4417 = vcombine.low %v4276, %v4277
  %v4418 = vcombine.low %v4278, %v4279
  %v4420 = vunpack.c.l.s4 1966171168
  %v4421 = vunpack.c.0.s8 %v4420
  %v4422 = vlaneseq
  %v4423 = vshrl.u32 %v4422, 7
  %v4424 = vsub.s32 %v4421, %v4423
  %v4425 = vrot.slane %v4416, %v4424
  %v4427 = vunpack.c.l.s4 1966171168
  %v4428 = vunpack.c.0.s8 %v4427
  %v4429 = vlaneseq
  %v4430 = vshrl.u32 %v4429, 7
  %v4431 = vsub.s32 %v4428, %v4430
  %v4432 = vrot.slane %v4417, %v4431
  %v4434 = vunpack.c.l.s4 1966171168
  %v4435 = vunpack.c.0.s8 %v4434
  %v4436 = vlaneseq
  %v4437 = vshrl.u32 %v4436, 7
  %v4438 = vsub.s32 %v4435, %v4437
  %v4439 = vrot.slane %v4418, %v4438
  %v4441 = vunpack.c.l.s4 1966171168
  %v4442 = vunpack.c.0.s8 %v4441
  %v4443 = vlaneseq
  %v4444 = vshrl.u32 %v4443, 7
  %v4445 = vsub.s32 %v4442, %v4444
  %v4446 = vrot.slane %v4280, %v4445
  %v4447 = vcombine.low %v4425, %v4432
  %v4448 = vcombine.low %v4439, %v4446
  %v4450 = vunpack.c.l.s4 1966171168
  %v4451 = vunpack.c.0.s8 %v4450
  %v4452 = vlaneseq
  %v4453 = vshrl.u32 %v4452, 7
  %v4454 = vsub.s32 %v4451, %v4453
  %v4455 = vrot.slane %v4447, %v4454
  %v4457 = vunpack.c.l.s4 1966171168
  %v4458 = vunpack.c.0.s8 %v4457
  %v4459 = vlaneseq
  %v4460 = vshrl.u32 %v4459, 7
  %v4461 = vsub.s32 %v4458, %v4460
  %v4462 = vrot.slane %v4448, %v4461
  %v4463 = vcombine.low %v4455, %v4462
  %v4464 = vcombine.low %v4281, %v4282
  %v4465 = vcombine.low %v4283, %v4284
  %v4466 = vcombine.low %v4285, %v4286
  %v4468 = vunpack.c.l.s4 1966171168
  %v4469 = vunpack.c.0.s8 %v4468
  %v4470 = vlaneseq
  %v4471 = vshrl.u32 %v4470, 7
  %v4472 = vsub.s32 %v4469, %v4471
  %v4473 = vrot.slane %v4464, %v4472
  %v4475 = vunpack.c.l.s4 1966171168
  %v4476 = vunpack.c.0.s8 %v4475
  %v4477 = vlaneseq
  %v4478 = vshrl.u32 %v4477, 7
  %v4479 = vsub.s32 %v4476, %v4478
  %v4480 = vrot.slane %v4465, %v4479
  %v4482 = vunpack.c.l.s4 1966171168
  %v4483 = vunpack.c.0.s8 %v4482
  %v4484 = vlaneseq
  %v4485 = vshrl.u32 %v4484, 7
  %v4486 = vsub.s32 %v4483, %v4485
  %v4487 = vrot.slane %v4466, %v4486
  %v4489 = vunpack.c.l.s4 1966171168
  %v4490 = vunpack.c.0.s8 %v4489
  %v4491 = vlaneseq
  %v4492 = vshrl.u32 %v4491, 7
  %v4493 = vsub.s32 %v4490, %v4492
  %v4494 = vrot.slane %v4287, %v4493
  %v4495 = vcombine.low %v4473, %v4480
  %v4496 = vcombine.low %v4487, %v4494
  %v4498 = vunpack.c.l.s4 1966171168
  %v4499 = vunpack.c.0.s8 %v4498
  %v4500 = vlaneseq
  %v4501 = vshrl.u32 %v4500, 7
  %v4502 = vsub.s32 %v4499, %v4501
  %v4503 = vrot.slane %v4495, %v4502
  %v4505 = vunpack.c.l.s4 1966171168
  %v4506 = vunpack.c.0.s8 %v4505
  %v4507 = vlaneseq
  %v4508 = vshrl.u32 %v4507, 7
  %v4509 = vsub.s32 %v4506, %v4508
  %v4510 = vrot.slane %v4496, %v4509
  %v4511 = vcombine.low %v4503, %v4510
  %4514 = vst.msk [vmem:[#allocation3] sm:$0x7f] %vm3217, %v4463
  %4515 = vst.msk [vmem:[#allocation3 + $0x8] sm:$0x7f] %vm3217, %v4511
  %v4516 = vld [vmem:[#allocation2] sm:$0x3f]
  %v4517 = vld [vmem:[#allocation2 + $0x8] sm:$0x3f]
  %v4518 = vld [vmem:[#allocation2 + $0x1] sm:$0x3f]
  %v4519 = vld [vmem:[#allocation2 + $0x9] sm:$0x3f]
  %v4520 = vld [vmem:[#allocation3] sm:$0x3f]
  %v4521 = vld [vmem:[#allocation3 + $0x8] sm:$0x3f]
  %v4522 = vld [vmem:[#allocation3 + $0x1] sm:$0x3f]
  %v4523 = vld [vmem:[#allocation3 + $0x9] sm:$0x3f]
  %v4524 = vld [vmem:[%s10] sm:$0x1]
  %v4525 = vld [vmem:[%s9] sm:$0xff]
  %v4526 = vld [vmem:[%s9 + $0x8] sm:$0xff]
  %v4527 = vld [vmem:[%s9 + $0x10] sm:$0xff]
  %v4528 = vld [vmem:[%s9 + $0x18] sm:$0xff]
  %v4529 = vld [vmem:[%s9 + $0x20] sm:$0xff]
  %v4530 = vld [vmem:[%s9 + $0x28] sm:$0xff]
  %v4531 = vld [vmem:[%s9 + $0x30] sm:$0xff]
  %v4532 = vld [vmem:[%s9 + $0x38] sm:$0xff]
  %v4533 = vld [vmem:[%s9 + $0x40] sm:$0xff]
  %v4534 = vld [vmem:[%s9 + $0x48] sm:$0xff]
  %v4535 = vld [vmem:[%s9 + $0x50] sm:$0xff]
  %v4536 = vld [vmem:[%s9 + $0x58] sm:$0xff]
  %v4537 = vld [vmem:[%s9 + $0x60] sm:$0xff]
  %v4538 = vld [vmem:[%s9 + $0x68] sm:$0xff]
  %s4539 = scalar_lea.vmem %s9, 112
  %v4540 = vld [vmem:[%s4539] sm:$0xff]
  %v4541 = vld [vmem:[%s4539 + $0x8] sm:$0xff]
  %v4542 = vld [vmem:[%s4539 + $0x10] sm:$0xff]
  %v4543 = vld [vmem:[%s4539 + $0x18] sm:$0xff]
  %v4544 = vld [vmem:[%s4539 + $0x20] sm:$0xff]
  %v4545 = vld [vmem:[%s4539 + $0x28] sm:$0xff]
  %v4546 = vld [vmem:[%s4539 + $0x30] sm:$0xff]
  %v4547 = vld [vmem:[%s4539 + $0x38] sm:$0xff]
  %v4548 = vld [vmem:[%s4539 + $0x40] sm:$0xff]
  %v4549 = vld [vmem:[%s4539 + $0x48] sm:$0xff]
  %v4550 = vld [vmem:[%s4539 + $0x50] sm:$0xff]
  %v4551 = vld [vmem:[%s4539 + $0x58] sm:$0xff]
  %v4552 = vld [vmem:[%s4539 + $0x60] sm:$0xff]
  %v4553 = vld [vmem:[%s4539 + $0x68] sm:$0xff]
  %v4556 = vcombine.high %v4520, %v4520
  %v4558 = vunpack.c.l.s4 1983009808
  %v4559 = vunpack.c.0.s8 %v4558
  %v4560 = vlaneseq
  %v4561 = vshrl.u32 %v4560, 7
  %v4562 = vsub.s32 %v4559, %v4561
  %v4563 = vrot.slane %v4520, %v4562
  %v4565 = vunpack.c.l.s4 1983009808
  %v4566 = vunpack.c.0.s8 %v4565
  %v4567 = vlaneseq
  %v4568 = vshrl.u32 %v4567, 7
  %v4569 = vsub.s32 %v4566, %v4568
  %v4570 = vrot.slane %v4556, %v4569
  %v4571 = vcombine.high %v4563, %v4563
  %v4572 = vcombine.high %v4521, %v4521
  %v4574 = vunpack.c.l.s4 1983009808
  %v4575 = vunpack.c.0.s8 %v4574
  %v4576 = vlaneseq
  %v4577 = vshrl.u32 %v4576, 7
  %v4578 = vsub.s32 %v4575, %v4577
  %v4579 = vrot.slane %v4521, %v4578
  %v4581 = vunpack.c.l.s4 1983009808
  %v4582 = vunpack.c.0.s8 %v4581
  %v4583 = vlaneseq
  %v4584 = vshrl.u32 %v4583, 7
  %v4585 = vsub.s32 %v4582, %v4584
  %v4586 = vrot.slane %v4572, %v4585
  %v4587 = vcombine.high %v4579, %v4579
  %v4588 = vcombine.low %v4563, %v4571
  %v4589 = vcombine.low %v4570, %v4579
  %v4591 = vunpack.c.l.s4 1983009808
  %v4592 = vunpack.c.0.s8 %v4591
  %v4593 = vlaneseq
  %v4594 = vshrl.u32 %v4593, 7
  %v4595 = vsub.s32 %v4592, %v4594
  %v4596 = vrot.slane %v4588, %v4595
  %v4598 = vunpack.c.l.s4 1983009808
  %v4599 = vunpack.c.0.s8 %v4598
  %v4600 = vlaneseq
  %v4601 = vshrl.u32 %v4600, 7
  %v4602 = vsub.s32 %v4599, %v4601
  %v4603 = vrot.slane %v4589, %v4602
  %v4604 = vcombine.low %v4596, %v4603
  %v4605 = vcombine.low %v4587, %v4586
  %v4607 = vunpack.c.l.s4 1983009808
  %v4608 = vunpack.c.0.s8 %v4607
  %v4609 = vlaneseq
  %v4610 = vshrl.u32 %v4609, 7
  %v4611 = vsub.s32 %v4608, %v4610
  %v4612 = vrot.slane %v4605, %v4611
  %v4613 = vsel %vm3349, %v4604, 0
  %v4615 = vsel %vm3349, %v4612, 0
  %4617 = vmatprep.subr.mxu0 0.0
  %4618 = vmatpush1.msra.mxu0 %v4540
  %4619 = vmatprep.subr.mxu0 0.0
  %4620 = vmatpush1.msra.mxu0 %v4541
  %4621 = vmatprep.subr.mxu0 0.0
  %4622 = vmatpush1.msra.mxu0 %v4542
  %4623 = vmatprep.subr.mxu0 0.0
  %4624 = vmatpush1.msra.mxu0 %v4543
  %4625 = vmatprep.subr.mxu0 0.0
  %4626 = vmatpush1.msra.mxu0 %v4544
  %4627 = vmatprep.subr.mxu0 0.0
  %4628 = vmatpush1.msra.mxu0 %v4545
  %4629 = vmatprep.subr.mxu0 0.0
  %4630 = vmatpush1.msra.mxu0 %v4546
  %4631 = vmatprep.subr.mxu0 0.0
  %4632 = vmatpush1.msra.mxu0 %v4547
  %4633 = vmatprep.subr.mxu0 0.0
  %4634 = vmatpush1.msra.mxu0 %v4548
  %4635 = vmatprep.subr.mxu0 0.0
  %4636 = vmatpush1.msra.mxu0 %v4549
  %4637 = vmatprep.subr.mxu0 0.0
  %4638 = vmatpush1.msra.mxu0 %v4550
  %4639 = vmatprep.subr.mxu0 0.0
  %4640 = vmatpush1.msra.mxu0 %v4551
  %4641 = vmatprep.subr.mxu0 0.0
  %4642 = vmatpush1.msra.mxu0 %v4552
  %4643 = vmatprep.subr.mxu0 0.0
  %4644 = vmatpush1.msra.mxu0 %v4553
  %4645 = vmatprep.subr.mxu0 0.0
  %4646 = vmatpush1.msra.mxu0 0.0
  %4647 = vmatprep.subr.mxu0 0.0
  %4648 = vmatpush1.msra.mxu0 0.0
  %4649 = vmatprep.subr.mxu0 0.0
  %4650 = vmatpush1.msra.mxu0 0.0
  %4651 = vmatprep.subr.mxu0 0.0
  %4652 = vmatpush1.msra.mxu0 0.0
  %4653 = vmatprep.subr.mxu0 0.0
  %4654 = vmatpush1.msra.mxu0 0.0
  %4655 = vmatprep.subr.mxu0 0.0
  %4656 = vmatpush1.msra.mxu0 0.0
  %4657 = vmatprep.subr.mxu0 0.0
  %4658 = vmatpush1.msra.mxu0 0.0
  %4659 = vmatprep.subr.mxu0 0.0
  %4660 = vmatpush1.msra.mxu0 0.0
  %4661 = vmatprep.subr.mxu0 0.0
  %4662 = vmatpush1.msra.mxu0 0.0
  %4663 = vmatprep.subr.mxu0 0.0
  %4664 = vmatpush1.msra.mxu0 0.0
  %4665 = vmatprep.subr.mxu0 0.0
  %4666 = vmatpush1.msra.mxu0 0.0
  %4667 = vmatprep.subr.mxu0 0.0
  %4668 = vmatpush1.msra.mxu0 0.0
  %4669 = vmatprep.subr.mxu0 0.0
  %4670 = vmatpush1.msra.mxu0 0.0
  %4671 = vmatprep.subr.mxu0 0.0
  %4672 = vmatpush1.msra.mxu0 0.0
  %4673 = vmatprep.subr.mxu0 0.0
  %4674 = vmatpush1.msra.mxu0 0.0
  %4675 = vmatprep.subr.mxu0 0.0
  %4676 = vmatpush1.msra.mxu0 0.0
  %4677 = vmatprep.subr.mxu0 0.0
  %4678 = vmatpush1.msra.mxu0 0.0
  %4679 = vmatprep.subr.mxu0 0.0
  %4680 = vmatpush1.msra.mxu0 0.0
  %4681 = vmatprep.mubr.f32.mxu0 0.0
  %4682 = vmatmul.mubr.f32.gmra.mrb[0].mxu0 %v4613
  %v4683 = vpop.f32.mrb[0].mxu0
  %v4684 = vadd.f32 0.0, %v4683
  %v4685 = vpop.f32.mrb[0].mxu0
  %4686 = vmatprep.mubr.f32.mxu0 0.0
  %4687 = vmatmul.mubr.f32.gmra.mrb[0].mxu0 %v4615
  %v4688 = vpop.f32.mrb[0].mxu0
  %v4689 = vadd.f32 0.0, %v4688
  %v4690 = vpop.f32.mrb[0].mxu0
  %4691 = vdwg.mxu0
  %v4694 = vcombine.high %v4516, %v4516
  %v4696 = vunpack.c.l.s4 1983009808
  %v4697 = vunpack.c.0.s8 %v4696
  %v4698 = vlaneseq
  %v4699 = vshrl.u32 %v4698, 7
  %v4700 = vsub.s32 %v4697, %v4699
  %v4701 = vrot.slane %v4516, %v4700
  %v4703 = vunpack.c.l.s4 1983009808
  %v4704 = vunpack.c.0.s8 %v4703
  %v4705 = vlaneseq
  %v4706 = vshrl.u32 %v4705, 7
  %v4707 = vsub.s32 %v4704, %v4706
  %v4708 = vrot.slane %v4694, %v4707
  %v4709 = vcombine.high %v4701, %v4701
  %v4710 = vcombine.high %v4517, %v4517
  %v4712 = vunpack.c.l.s4 1983009808
  %v4713 = vunpack.c.0.s8 %v4712
  %v4714 = vlaneseq
  %v4715 = vshrl.u32 %v4714, 7
  %v4716 = vsub.s32 %v4713, %v4715
  %v4717 = vrot.slane %v4517, %v4716
  %v4719 = vunpack.c.l.s4 1983009808
  %v4720 = vunpack.c.0.s8 %v4719
  %v4721 = vlaneseq
  %v4722 = vshrl.u32 %v4721, 7
  %v4723 = vsub.s32 %v4720, %v4722
  %v4724 = vrot.slane %v4710, %v4723
  %v4725 = vcombine.high %v4717, %v4717
  %v4726 = vcombine.low %v4701, %v4709
  %v4727 = vcombine.low %v4708, %v4717
  %v4729 = vunpack.c.l.s4 1983009808
  %v4730 = vunpack.c.0.s8 %v4729
  %v4731 = vlaneseq
  %v4732 = vshrl.u32 %v4731, 7
  %v4733 = vsub.s32 %v4730, %v4732
  %v4734 = vrot.slane %v4726, %v4733
  %v4736 = vunpack.c.l.s4 1983009808
  %v4737 = vunpack.c.0.s8 %v4736
  %v4738 = vlaneseq
  %v4739 = vshrl.u32 %v4738, 7
  %v4740 = vsub.s32 %v4737, %v4739
  %v4741 = vrot.slane %v4727, %v4740
  %v4742 = vcombine.low %v4734, %v4741
  %v4743 = vcombine.low %v4725, %v4724
  %v4745 = vunpack.c.l.s4 1983009808
  %v4746 = vunpack.c.0.s8 %v4745
  %v4747 = vlaneseq
  %v4748 = vshrl.u32 %v4747, 7
  %v4749 = vsub.s32 %v4746, %v4748
  %v4750 = vrot.slane %v4743, %v4749
  %v4751 = vsel %vm3349, %v4742, 0
  %v4753 = vsel %vm3349, %v4750, 0
  %4755 = vmatprep.subr.mxu0 0.0
  %4756 = vmatpush1.msra.mxu0 %v4525
  %4757 = vmatprep.subr.mxu0 0.0
  %4758 = vmatpush1.msra.mxu0 %v4526
  %4759 = vmatprep.subr.mxu0 0.0
  %4760 = vmatpush1.msra.mxu0 %v4527
  %4761 = vmatprep.subr.mxu0 0.0
  %4762 = vmatpush1.msra.mxu0 %v4528
  %4763 = vmatprep.subr.mxu0 0.0
  %4764 = vmatpush1.msra.mxu0 %v4529
  %4765 = vmatprep.subr.mxu0 0.0
  %4766 = vmatpush1.msra.mxu0 %v4530
  %4767 = vmatprep.subr.mxu0 0.0
  %4768 = vmatpush1.msra.mxu0 %v4531
  %4769 = vmatprep.subr.mxu0 0.0
  %4770 = vmatpush1.msra.mxu0 %v4532
  %4771 = vmatprep.subr.mxu0 0.0
  %4772 = vmatpush1.msra.mxu0 %v4533
  %4773 = vmatprep.subr.mxu0 0.0
  %4774 = vmatpush1.msra.mxu0 %v4534
  %4775 = vmatprep.subr.mxu0 0.0
  %4776 = vmatpush1.msra.mxu0 %v4535
  %4777 = vmatprep.subr.mxu0 0.0
  %4778 = vmatpush1.msra.mxu0 %v4536
  %4779 = vmatprep.subr.mxu0 0.0
  %4780 = vmatpush1.msra.mxu0 %v4537
  %4781 = vmatprep.subr.mxu0 0.0
  %4782 = vmatpush1.msra.mxu0 %v4538
  %4783 = vmatprep.subr.mxu0 0.0
  %4784 = vmatpush1.msra.mxu0 0.0
  %4785 = vmatprep.subr.mxu0 0.0
  %4786 = vmatpush1.msra.mxu0 0.0
  %4787 = vmatprep.subr.mxu0 0.0
  %4788 = vmatpush1.msra.mxu0 0.0
  %4789 = vmatprep.subr.mxu0 0.0
  %4790 = vmatpush1.msra.mxu0 0.0
  %4791 = vmatprep.subr.mxu0 0.0
  %4792 = vmatpush1.msra.mxu0 0.0
  %4793 = vmatprep.subr.mxu0 0.0
  %4794 = vmatpush1.msra.mxu0 0.0
  %4795 = vmatprep.subr.mxu0 0.0
  %4796 = vmatpush1.msra.mxu0 0.0
  %4797 = vmatprep.subr.mxu0 0.0
  %4798 = vmatpush1.msra.mxu0 0.0
  %4799 = vmatprep.subr.mxu0 0.0
  %4800 = vmatpush1.msra.mxu0 0.0
  %4801 = vmatprep.subr.mxu0 0.0
  %4802 = vmatpush1.msra.mxu0 0.0
  %4803 = vmatprep.subr.mxu0 0.0
  %4804 = vmatpush1.msra.mxu0 0.0
  %4805 = vmatprep.subr.mxu0 0.0
  %4806 = vmatpush1.msra.mxu0 0.0
  %4807 = vmatprep.subr.mxu0 0.0
  %4808 = vmatpush1.msra.mxu0 0.0
  %4809 = vmatprep.subr.mxu0 0.0
  %4810 = vmatpush1.msra.mxu0 0.0
  %4811 = vmatprep.subr.mxu0 0.0
  %4812 = vmatpush1.msra.mxu0 0.0
  %4813 = vmatprep.subr.mxu0 0.0
  %4814 = vmatpush1.msra.mxu0 0.0
  %4815 = vmatprep.subr.mxu0 0.0
  %4816 = vmatpush1.msra.mxu0 0.0
  %4817 = vmatprep.subr.mxu0 0.0
  %4818 = vmatpush1.msra.mxu0 0.0
  %4819 = vmatprep.mubr.f32.mxu0 0.0
  %4820 = vmatmul.mubr.f32.gmra.mrb[0].mxu0 %v4751
  %v4821 = vpop.f32.mrb[0].mxu0
  %v4822 = vadd.f32 %v4684, %v4821
  %v4823 = vpop.f32.mrb[0].mxu0
  %4824 = vmatprep.mubr.f32.mxu0 0.0
  %4825 = vmatmul.mubr.f32.gmra.mrb[0].mxu0 %v4753
  %v4826 = vpop.f32.mrb[0].mxu0
  %v4827 = vadd.f32 %v4689, %v4826
  %v4828 = vpop.f32.mrb[0].mxu0
  %4829 = vdwg.mxu0
  %v4832 = vcombine.high %v4822, %v4822
  %v4834 = vunpack.c.l.s4 1983009808
  %v4835 = vunpack.c.0.s8 %v4834
  %v4836 = vlaneseq
  %v4837 = vshrl.u32 %v4836, 7
  %v4838 = vsub.s32 %v4835, %v4837
  %v4839 = vrot.slane %v4822, %v4838
  %v4841 = vunpack.c.l.s4 1983009808
  %v4842 = vunpack.c.0.s8 %v4841
  %v4843 = vlaneseq
  %v4844 = vshrl.u32 %v4843, 7
  %v4845 = vsub.s32 %v4842, %v4844
  %v4846 = vrot.slane %v4832, %v4845
  %v4847 = vcombine.high %v4839, %v4839
  %v4848 = vcombine.high %v4846, %v4846
  %v4850 = vunpack.c.l.s4 1983009808
  %v4851 = vunpack.c.0.s8 %v4850
  %v4852 = vlaneseq
  %v4853 = vshrl.u32 %v4852, 7
  %v4854 = vsub.s32 %v4851, %v4853
  %v4855 = vrot.slane %v4827, %v4854
  %v4856 = vcombine.high %v4855, %v4855
  %s4863 = scalar_lea.vmem %s9, 224
  %v4864 = vld [vmem:[%s4863] sm:$0xff]
  %v4865 = vld [vmem:[%s4863 + $0x8] sm:$0xff]
  %v4866 = vld [vmem:[%s4863 + $0x10] sm:$0xff]
  %v4867 = vld [vmem:[%s4863 + $0x18] sm:$0xff]
  %v4868 = vld [vmem:[%s4863 + $0x20] sm:$0xff]
  %v4869 = vld [vmem:[%s4863 + $0x28] sm:$0xff]
  %v4870 = vld [vmem:[%s4863 + $0x30] sm:$0xff]
  %v4871 = vld [vmem:[%s4863 + $0x38] sm:$0xff]
  %v4872 = vld [vmem:[%s4863 + $0x40] sm:$0xff]
  %v4873 = vld [vmem:[%s4863 + $0x48] sm:$0xff]
  %v4874 = vld [vmem:[%s4863 + $0x50] sm:$0xff]
  %v4875 = vld [vmem:[%s4863 + $0x58] sm:$0xff]
  %v4876 = vld [vmem:[%s4863 + $0x60] sm:$0xff]
  %v4877 = vld [vmem:[%s4863 + $0x68] sm:$0xff]
  %v4880 = vcombine.high %v4518, %v4518
  %v4882 = vunpack.c.l.s4 1983009808
  %v4883 = vunpack.c.0.s8 %v4882
  %v4884 = vlaneseq
  %v4885 = vshrl.u32 %v4884, 7
  %v4886 = vsub.s32 %v4883, %v4885
  %v4887 = vrot.slane %v4518, %v4886
  %v4889 = vunpack.c.l.s4 1983009808
  %v4890 = vunpack.c.0.s8 %v4889
  %v4891 = vlaneseq
  %v4892 = vshrl.u32 %v4891, 7
  %v4893 = vsub.s32 %v4890, %v4892
  %v4894 = vrot.slane %v4880, %v4893
  %v4895 = vcombine.high %v4887, %v4887
  %v4896 = vcombine.high %v4519, %v4519
  %v4898 = vunpack.c.l.s4 1983009808
  %v4899 = vunpack.c.0.s8 %v4898
  %v4900 = vlaneseq
  %v4901 = vshrl.u32 %v4900, 7
  %v4902 = vsub.s32 %v4899, %v4901
  %v4903 = vrot.slane %v4519, %v4902
  %v4905 = vunpack.c.l.s4 1983009808
  %v4906 = vunpack.c.0.s8 %v4905
  %v4907 = vlaneseq
  %v4908 = vshrl.u32 %v4907, 7
  %v4909 = vsub.s32 %v4906, %v4908
  %v4910 = vrot.slane %v4896, %v4909
  %v4911 = vcombine.high %v4903, %v4903
  %v4912 = vcombine.low %v4887, %v4895
  %v4913 = vcombine.low %v4894, %v4903
  %v4915 = vunpack.c.l.s4 1983009808
  %v4916 = vunpack.c.0.s8 %v4915
  %v4917 = vlaneseq
  %v4918 = vshrl.u32 %v4917, 7
  %v4919 = vsub.s32 %v4916, %v4918
  %v4920 = vrot.slane %v4912, %v4919
  %v4922 = vunpack.c.l.s4 1983009808
  %v4923 = vunpack.c.0.s8 %v4922
  %v4924 = vlaneseq
  %v4925 = vshrl.u32 %v4924, 7
  %v4926 = vsub.s32 %v4923, %v4925
  %v4927 = vrot.slane %v4913, %v4926
  %v4928 = vcombine.low %v4920, %v4927
  %v4929 = vcombine.low %v4911, %v4910
  %v4931 = vunpack.c.l.s4 1983009808
  %v4932 = vunpack.c.0.s8 %v4931
  %v4933 = vlaneseq
  %v4934 = vshrl.u32 %v4933, 7
  %v4935 = vsub.s32 %v4932, %v4934
  %v4936 = vrot.slane %v4929, %v4935
  %v4937 = vsel %vm3349, %v4928, 0
  %v4939 = vsel %vm3349, %v4936, 0
  %4941 = vmatprep.subr.mxu0 0.0
  %4942 = vmatpush1.msra.mxu0 %v4864
  %4943 = vmatprep.subr.mxu0 0.0
  %4944 = vmatpush1.msra.mxu0 %v4865
  %4945 = vmatprep.subr.mxu0 0.0
  %4946 = vmatpush1.msra.mxu0 %v4866
  %4947 = vmatprep.subr.mxu0 0.0
  %4948 = vmatpush1.msra.mxu0 %v4867
  %4949 = vmatprep.subr.mxu0 0.0
  %4950 = vmatpush1.msra.mxu0 %v4868
  %4951 = vmatprep.subr.mxu0 0.0
  %4952 = vmatpush1.msra.mxu0 %v4869
  %4953 = vmatprep.subr.mxu0 0.0
  %4954 = vmatpush1.msra.mxu0 %v4870
  %4955 = vmatprep.subr.mxu0 0.0
  %4956 = vmatpush1.msra.mxu0 %v4871
  %4957 = vmatprep.subr.mxu0 0.0
  %4958 = vmatpush1.msra.mxu0 %v4872
  %4959 = vmatprep.subr.mxu0 0.0
  %4960 = vmatpush1.msra.mxu0 %v4873
  %4961 = vmatprep.subr.mxu0 0.0
  %4962 = vmatpush1.msra.mxu0 %v4874
  %4963 = vmatprep.subr.mxu0 0.0
  %4964 = vmatpush1.msra.mxu0 %v4875
  %4965 = vmatprep.subr.mxu0 0.0
  %4966 = vmatpush1.msra.mxu0 %v4876
  %4967 = vmatprep.subr.mxu0 0.0
  %4968 = vmatpush1.msra.mxu0 %v4877
  %4969 = vmatprep.subr.mxu0 0.0
  %4970 = vmatpush1.msra.mxu0 0.0
  %4971 = vmatprep.subr.mxu0 0.0
  %4972 = vmatpush1.msra.mxu0 0.0
  %4973 = vmatprep.subr.mxu0 0.0
  %4974 = vmatpush1.msra.mxu0 0.0
  %4975 = vmatprep.subr.mxu0 0.0
  %4976 = vmatpush1.msra.mxu0 0.0
  %4977 = vmatprep.subr.mxu0 0.0
  %4978 = vmatpush1.msra.mxu0 0.0
  %4979 = vmatprep.subr.mxu0 0.0
  %4980 = vmatpush1.msra.mxu0 0.0
  %4981 = vmatprep.subr.mxu0 0.0
  %4982 = vmatpush1.msra.mxu0 0.0
  %4983 = vmatprep.subr.mxu0 0.0
  %4984 = vmatpush1.msra.mxu0 0.0
  %4985 = vmatprep.subr.mxu0 0.0
  %4986 = vmatpush1.msra.mxu0 0.0
  %4987 = vmatprep.subr.mxu0 0.0
  %4988 = vmatpush1.msra.mxu0 0.0
  %4989 = vmatprep.subr.mxu0 0.0
  %4990 = vmatpush1.msra.mxu0 0.0
  %4991 = vmatprep.subr.mxu0 0.0
  %4992 = vmatpush1.msra.mxu0 0.0
  %4993 = vmatprep.subr.mxu0 0.0
  %4994 = vmatpush1.msra.mxu0 0.0
  %4995 = vmatprep.subr.mxu0 0.0
  %4996 = vmatpush1.msra.mxu0 0.0
  %4997 = vmatprep.subr.mxu0 0.0
  %4998 = vmatpush1.msra.mxu0 0.0
  %4999 = vmatprep.subr.mxu0 0.0
  %5000 = vmatpush1.msra.mxu0 0.0
  %5001 = vmatprep.subr.mxu0 0.0
  %5002 = vmatpush1.msra.mxu0 0.0
  %5003 = vmatprep.subr.mxu0 0.0
  %5004 = vmatpush1.msra.mxu0 0.0
  %5005 = vmatprep.mubr.f32.mxu0 0.0
  %5006 = vmatmul.mubr.f32.gmra.mrb[0].mxu0 %v4937
  %v5007 = vpop.f32.mrb[0].mxu0
  %v5008 = vadd.f32 0.0, %v5007
  %v5009 = vpop.f32.mrb[0].mxu0
  %5010 = vmatprep.mubr.f32.mxu0 0.0
  %5011 = vmatmul.mubr.f32.gmra.mrb[0].mxu0 %v4939
  %v5012 = vpop.f32.mrb[0].mxu0
  %v5013 = vadd.f32 0.0, %v5012
  %v5014 = vpop.f32.mrb[0].mxu0
  %5015 = vdwg.mxu0
  %v5018 = vcombine.high %v5008, %v5008
  %v5020 = vunpack.c.l.s4 1983009808
  %v5021 = vunpack.c.0.s8 %v5020
  %v5022 = vlaneseq
  %v5023 = vshrl.u32 %v5022, 7
  %v5024 = vsub.s32 %v5021, %v5023
  %v5025 = vrot.slane %v5008, %v5024
  %v5027 = vunpack.c.l.s4 1983009808
  %v5028 = vunpack.c.0.s8 %v5027
  %v5029 = vlaneseq
  %v5030 = vshrl.u32 %v5029, 7
  %v5031 = vsub.s32 %v5028, %v5030
  %v5032 = vrot.slane %v5018, %v5031
  %v5033 = vcombine.high %v5025, %v5025
  %v5034 = vcombine.high %v5032, %v5032
  %v5036 = vunpack.c.l.s4 1983009808
  %v5037 = vunpack.c.0.s8 %v5036
  %v5038 = vlaneseq
  %v5039 = vshrl.u32 %v5038, 7
  %v5040 = vsub.s32 %v5037, %v5039
  %v5041 = vrot.slane %v5013, %v5040
  %v5042 = vcombine.high %v5041, %v5041
  %v5049 = vadd.f32 %v4839, %v5025
  %v5050 = vadd.f32 %v4847, %v5033
  %v5051 = vadd.f32 %v4846, %v5032
  %v5052 = vadd.f32 %v4848, %v5034
  %v5053 = vadd.f32 %v4855, %v5041
  %v5054 = vadd.f32 %v4856, %v5042
  %v5056 = vlaneseq
  %v5057 = vshrl.u32 %v5056, 7
  %v5058 = vsub.s32 0, %v5057
  %v5059 = vrot.slane %v4524, %v5058
  %v5060 = vcombine.high %v5059, %v5059
  %v5062 = vunpack.c.l.s4 1983009808
  %v5063 = vunpack.c.0.s8 %v5062
  %v5064 = vlaneseq
  %v5065 = vshrl.u32 %v5064, 7
  %v5066 = vsub.s32 %v5063, %v5065
  %v5067 = vrot.slane %v5059, %v5066
  %v5069 = vunpack.c.l.s4 1983009808
  %v5070 = vunpack.c.0.s8 %v5069
  %v5071 = vlaneseq
  %v5072 = vshrl.u32 %v5071, 7
  %v5073 = vsub.s32 %v5070, %v5072
  %v5074 = vrot.slane %v5060, %v5073
  %v5075 = vcombine.high %v5067, %v5067
  %v5079 = vadd.f32 %v5049, %v5067
  %v5080 = vadd.f32 %v5050, %v5075
  %v5081 = vadd.f32 %v5051, %v5074
  %v5082 = vadd.f32 %v5052, %v5067
  %v5083 = vadd.f32 %v5053, %v5075
  %v5084 = vadd.f32 %v5054, %v5074
  %5085 = vmatprep.subr.mxu0 0.0
  %5086 = vmatpush1.msra.mxu0 %v4540
  %5087 = vmatprep.subr.mxu0 0.0
  %5088 = vmatpush1.msra.mxu0 %v4541
  %5089 = vmatprep.subr.mxu0 0.0
  %5090 = vmatpush1.msra.mxu0 %v4542
  %5091 = vmatprep.subr.mxu0 0.0
  %5092 = vmatpush1.msra.mxu0 %v4543
  %5093 = vmatprep.subr.mxu0 0.0
  %5094 = vmatpush1.msra.mxu0 %v4544
  %5095 = vmatprep.subr.mxu0 0.0
  %5096 = vmatpush1.msra.mxu0 %v4545
  %5097 = vmatprep.subr.mxu0 0.0
  %5098 = vmatpush1.msra.mxu0 %v4546
  %5099 = vmatprep.subr.mxu0 0.0
  %5100 = vmatpush1.msra.mxu0 %v4547
  %5101 = vmatprep.subr.mxu0 0.0
  %5102 = vmatpush1.msra.mxu0 %v4548
  %5103 = vmatprep.subr.mxu0 0.0
  %5104 = vmatpush1.msra.mxu0 %v4549
  %5105 = vmatprep.subr.mxu0 0.0
  %5106 = vmatpush1.msra.mxu0 %v4550
  %5107 = vmatprep.subr.mxu0 0.0
  %5108 = vmatpush1.msra.mxu0 %v4551
  %5109 = vmatprep.subr.mxu0 0.0
  %5110 = vmatpush1.msra.mxu0 %v4552
  %5111 = vmatprep.subr.mxu0 0.0
  %5112 = vmatpush1.msra.mxu0 %v4553
  %5113 = vmatprep.subr.mxu0 0.0
  %5114 = vmatpush1.msra.mxu0 0.0
  %5115 = vmatprep.subr.mxu0 0.0
  %5116 = vmatpush1.msra.mxu0 0.0
  %5117 = vmatprep.subr.mxu0 0.0
  %5118 = vmatpush1.msra.mxu0 0.0
  %5119 = vmatprep.subr.mxu0 0.0
  %5120 = vmatpush1.msra.mxu0 0.0
  %5121 = vmatprep.subr.mxu0 0.0
  %5122 = vmatpush1.msra.mxu0 0.0
  %5123 = vmatprep.subr.mxu0 0.0
  %5124 = vmatpush1.msra.mxu0 0.0
  %5125 = vmatprep.subr.mxu0 0.0
  %5126 = vmatpush1.msra.mxu0 0.0
  %5127 = vmatprep.subr.mxu0 0.0
  %5128 = vmatpush1.msra.mxu0 0.0
  %5129 = vmatprep.subr.mxu0 0.0
  %5130 = vmatpush1.msra.mxu0 0.0
  %5131 = vmatprep.subr.mxu0 0.0
  %5132 = vmatpush1.msra.mxu0 0.0
  %5133 = vmatprep.subr.mxu0 0.0
  %5134 = vmatpush1.msra.mxu0 0.0
  %5135 = vmatprep.subr.mxu0 0.0
  %5136 = vmatpush1.msra.mxu0 0.0
  %5137 = vmatprep.subr.mxu0 0.0
  %5138 = vmatpush1.msra.mxu0 0.0
  %5139 = vmatprep.subr.mxu0 0.0
  %5140 = vmatpush1.msra.mxu0 0.0
  %5141 = vmatprep.subr.mxu0 0.0
  %5142 = vmatpush1.msra.mxu0 0.0
  %5143 = vmatprep.subr.mxu0 0.0
  %5144 = vmatpush1.msra.mxu0 0.0
  %5145 = vmatprep.subr.mxu0 0.0
  %5146 = vmatpush1.msra.mxu0 0.0
  %5147 = vmatprep.subr.mxu0 0.0
  %5148 = vmatpush1.msra.mxu0 0.0
  %5149 = vmatprep.mubr.f32.mxu0 0.0
  %5150 = vmatmul.mubr.f32.gmra.mrb[0].mxu0 %v4937
  %v5151 = vpop.f32.mrb[0].mxu0
  %v5152 = vadd.f32 0.0, %v5151
  %v5153 = vpop.f32.mrb[0].mxu0
  %5154 = vmatprep.mubr.f32.mxu0 0.0
  %5155 = vmatmul.mubr.f32.gmra.mrb[0].mxu0 %v4939
  %v5156 = vpop.f32.mrb[0].mxu0
  %v5157 = vadd.f32 0.0, %v5156
  %v5158 = vpop.f32.mrb[0].mxu0
  %5159 = vdwg.mxu0
  %5160 = vmatprep.subr.mxu0 0.0
  %5161 = vmatpush1.msra.mxu0 %v4525
  %5162 = vmatprep.subr.mxu0 0.0
  %5163 = vmatpush1.msra.mxu0 %v4526
  %5164 = vmatprep.subr.mxu0 0.0
  %5165 = vmatpush1.msra.mxu0 %v4527
  %5166 = vmatprep.subr.mxu0 0.0
  %5167 = vmatpush1.msra.mxu0 %v4528
  %5168 = vmatprep.subr.mxu0 0.0
  %5169 = vmatpush1.msra.mxu0 %v4529
  %5170 = vmatprep.subr.mxu0 0.0
  %5171 = vmatpush1.msra.mxu0 %v4530
  %5172 = vmatprep.subr.mxu0 0.0
  %5173 = vmatpush1.msra.mxu0 %v4531
  %5174 = vmatprep.subr.mxu0 0.0
  %5175 = vmatpush1.msra.mxu0 %v4532
  %5176 = vmatprep.subr.mxu0 0.0
  %5177 = vmatpush1.msra.mxu0 %v4533
  %5178 = vmatprep.subr.mxu0 0.0
  %5179 = vmatpush1.msra.mxu0 %v4534
  %5180 = vmatprep.subr.mxu0 0.0
  %5181 = vmatpush1.msra.mxu0 %v4535
  %5182 = vmatprep.subr.mxu0 0.0
  %5183 = vmatpush1.msra.mxu0 %v4536
  %5184 = vmatprep.subr.mxu0 0.0
  %5185 = vmatpush1.msra.mxu0 %v4537
  %5186 = vmatprep.subr.mxu0 0.0
  %5187 = vmatpush1.msra.mxu0 %v4538
  %5188 = vmatprep.subr.mxu0 0.0
  %5189 = vmatpush1.msra.mxu0 0.0
  %5190 = vmatprep.subr.mxu0 0.0
  %5191 = vmatpush1.msra.mxu0 0.0
  %5192 = vmatprep.subr.mxu0 0.0
  %5193 = vmatpush1.msra.mxu0 0.0
  %5194 = vmatprep.subr.mxu0 0.0
  %5195 = vmatpush1.msra.mxu0 0.0
  %5196 = vmatprep.subr.mxu0 0.0
  %5197 = vmatpush1.msra.mxu0 0.0
  %5198 = vmatprep.subr.mxu0 0.0
  %5199 = vmatpush1.msra.mxu0 0.0
  %5200 = vmatprep.subr.mxu0 0.0
  %5201 = vmatpush1.msra.mxu0 0.0
  %5202 = vmatprep.subr.mxu0 0.0
  %5203 = vmatpush1.msra.mxu0 0.0
  %5204 = vmatprep.subr.mxu0 0.0
  %5205 = vmatpush1.msra.mxu0 0.0
  %5206 = vmatprep.subr.mxu0 0.0
  %5207 = vmatpush1.msra.mxu0 0.0
  %5208 = vmatprep.subr.mxu0 0.0
  %5209 = vmatpush1.msra.mxu0 0.0
  %5210 = vmatprep.subr.mxu0 0.0
  %5211 = vmatpush1.msra.mxu0 0.0
  %5212 = vmatprep.subr.mxu0 0.0
  %5213 = vmatpush1.msra.mxu0 0.0
  %5214 = vmatprep.subr.mxu0 0.0
  %5215 = vmatpush1.msra.mxu0 0.0
  %5216 = vmatprep.subr.mxu0 0.0
  %5217 = vmatpush1.msra.mxu0 0.0
  %5218 = vmatprep.subr.mxu0 0.0
  %5219 = vmatpush1.msra.mxu0 0.0
  %5220 = vmatprep.subr.mxu0 0.0
  %5221 = vmatpush1.msra.mxu0 0.0
  %5222 = vmatprep.subr.mxu0 0.0
  %5223 = vmatpush1.msra.mxu0 0.0
  %5224 = vmatprep.mubr.f32.mxu0 0.0
  %5225 = vmatmul.mubr.f32.gmra.mrb[0].mxu0 %v4613
  %v5226 = vpop.f32.mrb[0].mxu0
  %v5227 = vadd.f32 %v5152, %v5226
  %v5228 = vpop.f32.mrb[0].mxu0
  %5229 = vmatprep.mubr.f32.mxu0 0.0
  %5230 = vmatmul.mubr.f32.gmra.mrb[0].mxu0 %v4615
  %v5231 = vpop.f32.mrb[0].mxu0
  %v5232 = vadd.f32 %v5157, %v5231
  %v5233 = vpop.f32.mrb[0].mxu0
  %5234 = vdwg.mxu0
  %v5237 = vcombine.high %v5227, %v5227
  %v5239 = vunpack.c.l.s4 1983009808
  %v5240 = vunpack.c.0.s8 %v5239
  %v5241 = vlaneseq
  %v5242 = vshrl.u32 %v5241, 7
  %v5243 = vsub.s32 %v5240, %v5242
  %v5244 = vrot.slane %v5227, %v5243
  %v5246 = vunpack.c.l.s4 1983009808
  %v5247 = vunpack.c.0.s8 %v5246
  %v5248 = vlaneseq
  %v5249 = vshrl.u32 %v5248, 7
  %v5250 = vsub.s32 %v5247, %v5249
  %v5251 = vrot.slane %v5237, %v5250
  %v5252 = vcombine.high %v5244, %v5244
  %v5253 = vcombine.high %v5251, %v5251
  %v5255 = vunpack.c.l.s4 1983009808
  %v5256 = vunpack.c.0.s8 %v5255
  %v5257 = vlaneseq
  %v5258 = vshrl.u32 %v5257, 7
  %v5259 = vsub.s32 %v5256, %v5258
  %v5260 = vrot.slane %v5232, %v5259
  %v5261 = vcombine.high %v5260, %v5260
  %v5270 = vcombine.high %v4522, %v4522
  %v5272 = vunpack.c.l.s4 1983009808
  %v5273 = vunpack.c.0.s8 %v5272
  %v5274 = vlaneseq
  %v5275 = vshrl.u32 %v5274, 7
  %v5276 = vsub.s32 %v5273, %v5275
  %v5277 = vrot.slane %v4522, %v5276
  %v5279 = vunpack.c.l.s4 1983009808
  %v5280 = vunpack.c.0.s8 %v5279
  %v5281 = vlaneseq
  %v5282 = vshrl.u32 %v5281, 7
  %v5283 = vsub.s32 %v5280, %v5282
  %v5284 = vrot.slane %v5270, %v5283
  %v5285 = vcombine.high %v5277, %v5277
  %v5286 = vcombine.high %v4523, %v4523
  %v5288 = vunpack.c.l.s4 1983009808
  %v5289 = vunpack.c.0.s8 %v5288
  %v5290 = vlaneseq
  %v5291 = vshrl.u32 %v5290, 7
  %v5292 = vsub.s32 %v5289, %v5291
  %v5293 = vrot.slane %v4523, %v5292
  %v5295 = vunpack.c.l.s4 1983009808
  %v5296 = vunpack.c.0.s8 %v5295
  %v5297 = vlaneseq
  %v5298 = vshrl.u32 %v5297, 7
  %v5299 = vsub.s32 %v5296, %v5298
  %v5300 = vrot.slane %v5286, %v5299
  %v5301 = vcombine.high %v5293, %v5293
  %v5302 = vcombine.low %v5277, %v5285
  %v5303 = vcombine.low %v5284, %v5293
  %v5305 = vunpack.c.l.s4 1983009808
  %v5306 = vunpack.c.0.s8 %v5305
  %v5307 = vlaneseq
  %v5308 = vshrl.u32 %v5307, 7
  %v5309 = vsub.s32 %v5306, %v5308
  %v5310 = vrot.slane %v5302, %v5309
  %v5312 = vunpack.c.l.s4 1983009808
  %v5313 = vunpack.c.0.s8 %v5312
  %v5314 = vlaneseq
  %v5315 = vshrl.u32 %v5314, 7
  %v5316 = vsub.s32 %v5313, %v5315
  %v5317 = vrot.slane %v5303, %v5316
  %v5318 = vcombine.low %v5310, %v5317
  %v5319 = vcombine.low %v5301, %v5300
  %v5321 = vunpack.c.l.s4 1983009808
  %v5322 = vunpack.c.0.s8 %v5321
  %v5323 = vlaneseq
  %v5324 = vshrl.u32 %v5323, 7
  %v5325 = vsub.s32 %v5322, %v5324
  %v5326 = vrot.slane %v5319, %v5325
  %v5327 = vsel %vm3349, %v5318, 0
  %v5329 = vsel %vm3349, %v5326, 0
  %5331 = vmatprep.subr.mxu0 0.0
  %5332 = vmatpush1.msra.mxu0 %v4864
  %5333 = vmatprep.subr.mxu0 0.0
  %5334 = vmatpush1.msra.mxu0 %v4865
  %5335 = vmatprep.subr.mxu0 0.0
  %5336 = vmatpush1.msra.mxu0 %v4866
  %5337 = vmatprep.subr.mxu0 0.0
  %5338 = vmatpush1.msra.mxu0 %v4867
  %5339 = vmatprep.subr.mxu0 0.0
  %5340 = vmatpush1.msra.mxu0 %v4868
  %5341 = vmatprep.subr.mxu0 0.0
  %5342 = vmatpush1.msra.mxu0 %v4869
  %5343 = vmatprep.subr.mxu0 0.0
  %5344 = vmatpush1.msra.mxu0 %v4870
  %5345 = vmatprep.subr.mxu0 0.0
  %5346 = vmatpush1.msra.mxu0 %v4871
  %5347 = vmatprep.subr.mxu0 0.0
  %5348 = vmatpush1.msra.mxu0 %v4872
  %5349 = vmatprep.subr.mxu0 0.0
  %5350 = vmatpush1.msra.mxu0 %v4873
  %5351 = vmatprep.subr.mxu0 0.0
  %5352 = vmatpush1.msra.mxu0 %v4874
  %5353 = vmatprep.subr.mxu0 0.0
  %5354 = vmatpush1.msra.mxu0 %v4875
  %5355 = vmatprep.subr.mxu0 0.0
  %5356 = vmatpush1.msra.mxu0 %v4876
  %5357 = vmatprep.subr.mxu0 0.0
  %5358 = vmatpush1.msra.mxu0 %v4877
  %5359 = vmatprep.subr.mxu0 0.0
  %5360 = vmatpush1.msra.mxu0 0.0
  %5361 = vmatprep.subr.mxu0 0.0
  %5362 = vmatpush1.msra.mxu0 0.0
  %5363 = vmatprep.subr.mxu0 0.0
  %5364 = vmatpush1.msra.mxu0 0.0
  %5365 = vmatprep.subr.mxu0 0.0
  %5366 = vmatpush1.msra.mxu0 0.0
  %5367 = vmatprep.subr.mxu0 0.0
  %5368 = vmatpush1.msra.mxu0 0.0
  %5369 = vmatprep.subr.mxu0 0.0
  %5370 = vmatpush1.msra.mxu0 0.0
  %5371 = vmatprep.subr.mxu0 0.0
  %5372 = vmatpush1.msra.mxu0 0.0
  %5373 = vmatprep.subr.mxu0 0.0
  %5374 = vmatpush1.msra.mxu0 0.0
  %5375 = vmatprep.subr.mxu0 0.0
  %5376 = vmatpush1.msra.mxu0 0.0
  %5377 = vmatprep.subr.mxu0 0.0
  %5378 = vmatpush1.msra.mxu0 0.0
  %5379 = vmatprep.subr.mxu0 0.0
  %5380 = vmatpush1.msra.mxu0 0.0
  %5381 = vmatprep.subr.mxu0 0.0
  %5382 = vmatpush1.msra.mxu0 0.0
  %5383 = vmatprep.subr.mxu0 0.0
  %5384 = vmatpush1.msra.mxu0 0.0
  %5385 = vmatprep.subr.mxu0 0.0
  %5386 = vmatpush1.msra.mxu0 0.0
  %5387 = vmatprep.subr.mxu0 0.0
  %5388 = vmatpush1.msra.mxu0 0.0
  %5389 = vmatprep.subr.mxu0 0.0
  %5390 = vmatpush1.msra.mxu0 0.0
  %5391 = vmatprep.subr.mxu0 0.0
  %5392 = vmatpush1.msra.mxu0 0.0
  %5393 = vmatprep.subr.mxu0 0.0
  %5394 = vmatpush1.msra.mxu0 0.0
  %5395 = vmatprep.mubr.f32.mxu0 0.0
  %5396 = vmatmul.mubr.f32.gmra.mrb[0].mxu0 %v5327
  %v5397 = vpop.f32.mrb[0].mxu0
  %v5398 = vadd.f32 0.0, %v5397
  %v5399 = vpop.f32.mrb[0].mxu0
  %5400 = vmatprep.mubr.f32.mxu0 0.0
  %5401 = vmatmul.mubr.f32.gmra.mrb[0].mxu0 %v5329
  %v5402 = vpop.f32.mrb[0].mxu0
  %v5403 = vadd.f32 0.0, %v5402
  %v5404 = vpop.f32.mrb[0].mxu0
  %5405 = vdwg.mxu0
  %v5408 = vcombine.high %v5398, %v5398
  %v5410 = vunpack.c.l.s4 1983009808
  %v5411 = vunpack.c.0.s8 %v5410
  %v5412 = vlaneseq
  %v5413 = vshrl.u32 %v5412, 7
  %v5414 = vsub.s32 %v5411, %v5413
  %v5415 = vrot.slane %v5398, %v5414
  %v5417 = vunpack.c.l.s4 1983009808
  %v5418 = vunpack.c.0.s8 %v5417
  %v5419 = vlaneseq
  %v5420 = vshrl.u32 %v5419, 7
  %v5421 = vsub.s32 %v5418, %v5420
  %v5422 = vrot.slane %v5408, %v5421
  %v5423 = vcombine.high %v5415, %v5415
  %v5424 = vcombine.high %v5422, %v5422
  %v5426 = vunpack.c.l.s4 1983009808
  %v5427 = vunpack.c.0.s8 %v5426
  %v5428 = vlaneseq
  %v5429 = vshrl.u32 %v5428, 7
  %v5430 = vsub.s32 %v5427, %v5429
  %v5431 = vrot.slane %v5403, %v5430
  %v5432 = vcombine.high %v5431, %v5431
  %v5439 = vadd.f32 %v5244, %v5415
  %v5440 = vadd.f32 %v5252, %v5423
  %v5441 = vadd.f32 %v5251, %v5422
  %v5442 = vadd.f32 %v5253, %v5424
  %v5443 = vadd.f32 %v5260, %v5431
  %v5444 = vadd.f32 %v5261, %v5432
  %v5445 = vadd.f32 %v5439, %v5067
  %v5446 = vadd.f32 %v5440, %v5075
  %v5447 = vadd.f32 %v5441, %v5074
  %v5448 = vadd.f32 %v5442, %v5067
  %v5449 = vadd.f32 %v5443, %v5075
  %v5450 = vadd.f32 %v5444, %v5074
  %v5451 = vld [vmem:[%s13] sm:$0xff]
  %v5452 = vld [vmem:[%s13 + $0x8] sm:$0xff]
  %v5453 = vld [vmem:[%s13 + $0x10] sm:$0xff]
  %v5454 = vld [vmem:[%s13 + $0x18] sm:$0xff]
  %v5455 = vld [vmem:[%s13 + $0x20] sm:$0xff]
  %v5456 = vld [vmem:[%s13 + $0x28] sm:$0xff]
  %v5457 = vld [vmem:[%s13 + $0x30] sm:$0xff]
  %v5458 = vld [vmem:[%s13 + $0x38] sm:$0xff]
  %v5459 = vld [vmem:[%s13 + $0x40] sm:$0xff]
  %v5460 = vld [vmem:[%s13 + $0x48] sm:$0xff]
  %v5461 = vld [vmem:[%s13 + $0x50] sm:$0xff]
  %v5462 = vld [vmem:[%s13 + $0x58] sm:$0xff]
  %v5463 = vld [vmem:[%s14] sm:$0xff]
  %v5470 = vcombine.low %v5079, %v5080
  %v5472 = vunpack.c.l.s4 1983009808
  %v5473 = vunpack.c.0.s8 %v5472
  %v5474 = vlaneseq
  %v5475 = vshrl.u32 %v5474, 7
  %v5476 = vsub.s32 %v5473, %v5475
  %v5477 = vrot.slane %v5470, %v5476
  %v5479 = vunpack.c.l.s4 1983009808
  %v5480 = vunpack.c.0.s8 %v5479
  %v5481 = vlaneseq
  %v5482 = vshrl.u32 %v5481, 7
  %v5483 = vsub.s32 %v5480, %v5482
  %v5484 = vrot.slane %v5081, %v5483
  %v5485 = vcombine.low %v5477, %v5484
  %v5486 = vcombine.low %v5082, %v5083
  %v5488 = vunpack.c.l.s4 1983009808
  %v5489 = vunpack.c.0.s8 %v5488
  %v5490 = vlaneseq
  %v5491 = vshrl.u32 %v5490, 7
  %v5492 = vsub.s32 %v5489, %v5491
  %v5493 = vrot.slane %v5486, %v5492
  %v5495 = vunpack.c.l.s4 1983009808
  %v5496 = vunpack.c.0.s8 %v5495
  %v5497 = vlaneseq
  %v5498 = vshrl.u32 %v5497, 7
  %v5499 = vsub.s32 %v5496, %v5498
  %v5500 = vrot.slane %v5084, %v5499
  %v5501 = vcombine.low %v5493, %v5500
  %vm5504 = vcmask 783360
  %v5505 = vsel %vm5504, %v5485, 0.0
  %v5506 = vsel %vm5504, %v5501, 0.0
  %v5507 = vadd.f32 %v5505, %v5506
  %v5508 = vrot.slane %v5507, 4
  %v5509 = vadd.f32 %v5507, %v5508
  %v5510 = vrot.slane %v5509, 2
  %v5511 = vadd.f32 %v5509, %v5510
  %v5512 = vrot.slane %v5511, 1
  %v5513 = vadd.f32 %v5511, %v5512
  %v5520 = vcombine.low %v5445, %v5446
  %v5522 = vunpack.c.l.s4 1983009808
  %v5523 = vunpack.c.0.s8 %v5522
  %v5524 = vlaneseq
  %v5525 = vshrl.u32 %v5524, 7
  %v5526 = vsub.s32 %v5523, %v5525
  %v5527 = vrot.slane %v5520, %v5526
  %v5529 = vunpack.c.l.s4 1983009808
  %v5530 = vunpack.c.0.s8 %v5529
  %v5531 = vlaneseq
  %v5532 = vshrl.u32 %v5531, 7
  %v5533 = vsub.s32 %v5530, %v5532
  %v5534 = vrot.slane %v5447, %v5533
  %v5535 = vcombine.low %v5527, %v5534
  %v5536 = vcombine.low %v5448, %v5449
  %v5538 = vunpack.c.l.s4 1983009808
  %v5539 = vunpack.c.0.s8 %v5538
  %v5540 = vlaneseq
  %v5541 = vshrl.u32 %v5540, 7
  %v5542 = vsub.s32 %v5539, %v5541
  %v5543 = vrot.slane %v5536, %v5542
  %v5545 = vunpack.c.l.s4 1983009808
  %v5546 = vunpack.c.0.s8 %v5545
  %v5547 = vlaneseq
  %v5548 = vshrl.u32 %v5547, 7
  %v5549 = vsub.s32 %v5546, %v5548
  %v5550 = vrot.slane %v5450, %v5549
  %v5551 = vcombine.low %v5543, %v5550
  %v5554 = vsel %vm5504, %v5535, 0.0
  %v5555 = vsel %vm5504, %v5551, 0.0
  %v5556 = vadd.f32 %v5554, %v5555
  %v5557 = vrot.slane %v5556, 4
  %v5558 = vadd.f32 %v5556, %v5557
  %v5559 = vrot.slane %v5558, 2
  %v5560 = vadd.f32 %v5558, %v5559
  %v5561 = vrot.slane %v5560, 1
  %v5562 = vadd.f32 %v5560, %v5561
  %v5563 = vadd.f32 %v5513, %v5562
  %vm5564 = vcmask 785408
  %v5566 = vsel %vm5564, %v5563, 0
  %5568 = vmatprep.subr.mxu0 0.0
  %5569 = vmatpush1.msra.mxu0 %v5451
  %5570 = vmatprep.subr.mxu0 0.0
  %5571 = vmatpush1.msra.mxu0 %v5452
  %5572 = vmatprep.subr.mxu0 0.0
  %5573 = vmatpush1.msra.mxu0 %v5453
  %5574 = vmatprep.subr.mxu0 0.0
  %5575 = vmatpush1.msra.mxu0 %v5454
  %5576 = vmatprep.subr.mxu0 0.0
  %5577 = vmatpush1.msra.mxu0 %v5455
  %5578 = vmatprep.subr.mxu0 0.0
  %5579 = vmatpush1.msra.mxu0 %v5456
  %5580 = vmatprep.subr.mxu0 0.0
  %5581 = vmatpush1.msra.mxu0 %v5457
  %5582 = vmatprep.subr.mxu0 0.0
  %5583 = vmatpush1.msra.mxu0 %v5458
  %5584 = vmatprep.subr.mxu0 0.0
  %5585 = vmatpush1.msra.mxu0 %v5459
  %5586 = vmatprep.subr.mxu0 0.0
  %5587 = vmatpush1.msra.mxu0 %v5460
  %5588 = vmatprep.subr.mxu0 0.0
  %5589 = vmatpush1.msra.mxu0 %v5461
  %5590 = vmatprep.subr.mxu0 0.0
  %5591 = vmatpush1.msra.mxu0 %v5462
  %5592 = vmatprep.subr.mxu0 0.0
  %5593 = vmatpush1.msra.mxu0 0.0
  %5594 = vmatprep.subr.mxu0 0.0
  %5595 = vmatpush1.msra.mxu0 0.0
  %5596 = vmatprep.subr.mxu0 0.0
  %5597 = vmatpush1.msra.mxu0 0.0
  %5598 = vmatprep.subr.mxu0 0.0
  %5599 = vmatpush1.msra.mxu0 0.0
  %5600 = vmatprep.subr.mxu0 0.0
  %5601 = vmatpush1.msra.mxu0 0.0
  %5602 = vmatprep.subr.mxu0 0.0
  %5603 = vmatpush1.msra.mxu0 0.0
  %5604 = vmatprep.subr.mxu0 0.0
  %5605 = vmatpush1.msra.mxu0 0.0
  %5606 = vmatprep.subr.mxu0 0.0
  %5607 = vmatpush1.msra.mxu0 0.0
  %5608 = vmatprep.subr.mxu0 0.0
  %5609 = vmatpush1.msra.mxu0 0.0
  %5610 = vmatprep.subr.mxu0 0.0
  %5611 = vmatpush1.msra.mxu0 0.0
  %5612 = vmatprep.subr.mxu0 0.0
  %5613 = vmatpush1.msra.mxu0 0.0
  %5614 = vmatprep.subr.mxu0 0.0
  %5615 = vmatpush1.msra.mxu0 0.0
  %5616 = vmatprep.subr.mxu0 0.0
  %5617 = vmatpush1.msra.mxu0 0.0
  %5618 = vmatprep.subr.mxu0 0.0
  %5619 = vmatpush1.msra.mxu0 0.0
  %5620 = vmatprep.subr.mxu0 0.0
  %5621 = vmatpush1.msra.mxu0 0.0
  %5622 = vmatprep.subr.mxu0 0.0
  %5623 = vmatpush1.msra.mxu0 0.0
  %5624 = vmatprep.subr.mxu0 0.0
  %5625 = vmatpush1.msra.mxu0 0.0
  %5626 = vmatprep.subr.mxu0 0.0
  %5627 = vmatpush1.msra.mxu0 0.0
  %5628 = vmatprep.subr.mxu0 0.0
  %5629 = vmatpush1.msra.mxu0 0.0
  %5630 = vmatprep.subr.mxu0 0.0
  %5631 = vmatpush1.msra.mxu0 0.0
  %5632 = vmatprep.mubr.f32.mxu0 0.0
  %5633 = vmatmul.mubr.f32.gmra.mrb[0].mxu0 %v5566
  %v5634 = vpop.f32.mrb[0].mxu0
  %v5635 = vadd.f32 0.0, %v5634
  %v5636 = vpop.f32.mrb[0].mxu0
  %5637 = vdwg.mxu0
  %v5638 = vmul.f32 %v5635, 0.0034722222
  %v5640 = vsel %vm3424, %v5638, 0
  %5642 = vmatprep.subr.mxu0 0.0
  %5643 = vmatpush1.msra.mxu0 %v5463
  %5644 = vmatprep.subr.mxu0 0.0
  %5645 = vmatpush1.msra.mxu0 0.0
  %5646 = vmatprep.subr.mxu0 0.0
  %5647 = vmatpush1.msra.mxu0 0.0
  %5648 = vmatprep.subr.mxu0 0.0
  %5649 = vmatpush1.msra.mxu0 0.0
  %5650 = vmatprep.subr.mxu0 0.0
  %5651 = vmatpush1.msra.mxu0 0.0
  %5652 = vmatprep.subr.mxu0 0.0
  %5653 = vmatpush1.msra.mxu0 0.0
  %5654 = vmatprep.subr.mxu0 0.0
  %5655 = vmatpush1.msra.mxu0 0.0
  %5656 = vmatprep.subr.mxu0 0.0
  %5657 = vmatpush1.msra.mxu0 0.0
  %5658 = vmatprep.subr.mxu0 0.0
  %5659 = vmatpush1.msra.mxu0 0.0
  %5660 = vmatprep.subr.mxu0 0.0
  %5661 = vmatpush1.msra.mxu0 0.0
  %5662 = vmatprep.subr.mxu0 0.0
  %5663 = vmatpush1.msra.mxu0 0.0
  %5664 = vmatprep.subr.mxu0 0.0
  %5665 = vmatpush1.msra.mxu0 0.0
  %5666 = vmatprep.subr.mxu0 0.0
  %5667 = vmatpush1.msra.mxu0 0.0
  %5668 = vmatprep.subr.mxu0 0.0
  %5669 = vmatpush1.msra.mxu0 0.0
  %5670 = vmatprep.subr.mxu0 0.0
  %5671 = vmatpush1.msra.mxu0 0.0
  %5672 = vmatprep.subr.mxu0 0.0
  %5673 = vmatpush1.msra.mxu0 0.0
  %5674 = vmatprep.subr.mxu0 0.0
  %5675 = vmatpush1.msra.mxu0 0.0
  %5676 = vmatprep.subr.mxu0 0.0
  %5677 = vmatpush1.msra.mxu0 0.0
  %5678 = vmatprep.subr.mxu0 0.0
  %5679 = vmatpush1.msra.mxu0 0.0
  %5680 = vmatprep.subr.mxu0 0.0
  %5681 = vmatpush1.msra.mxu0 0.0
  %5682 = vmatprep.subr.mxu0 0.0
  %5683 = vmatpush1.msra.mxu0 0.0
  %5684 = vmatprep.subr.mxu0 0.0
  %5685 = vmatpush1.msra.mxu0 0.0
  %5686 = vmatprep.subr.mxu0 0.0
  %5687 = vmatpush1.msra.mxu0 0.0
  %5688 = vmatprep.subr.mxu0 0.0
  %5689 = vmatpush1.msra.mxu0 0.0
  %5690 = vmatprep.subr.mxu0 0.0
  %5691 = vmatpush1.msra.mxu0 0.0
  %5692 = vmatprep.subr.mxu0 0.0
  %5693 = vmatpush1.msra.mxu0 0.0
  %5694 = vmatprep.subr.mxu0 0.0
  %5695 = vmatpush1.msra.mxu0 0.0
  %5696 = vmatprep.subr.mxu0 0.0
  %5697 = vmatpush1.msra.mxu0 0.0
  %5698 = vmatprep.subr.mxu0 0.0
  %5699 = vmatpush1.msra.mxu0 0.0
  %5700 = vmatprep.subr.mxu0 0.0
  %5701 = vmatpush1.msra.mxu0 0.0
  %5702 = vmatprep.subr.mxu0 0.0
  %5703 = vmatpush1.msra.mxu0 0.0
  %5704 = vmatprep.subr.mxu0 0.0
  %5705 = vmatpush1.msra.mxu0 0.0
  %5706 = vmatprep.mubr.f32.mxu0 0.0
  %5707 = vmatmul.mubr.f32.gmra.mrb[0].mxu0 %v5640
  %v5708 = vpop.f32.mrb[0].mxu0
  %v5709 = vadd.f32 0.0, %v5708
  %v5710 = vpop.f32.mrb[0].mxu0
  %5711 = vdwg.mxu0
  %v5712 = vlaneseq
  %v5713 = vshrl.u32 %v5712, 7
  %v5714 = vsub.s32 0, %v5713
  %v5715 = vrot.slane %v5709, %v5714
  %v5717 = vcombine.high %v5715, %v5715
  %v5719 = vunpack.c.l.s4 1983009808
  %v5720 = vunpack.c.0.s8 %v5719
  %v5721 = vlaneseq
  %v5722 = vshrl.u32 %v5721, 7
  %v5723 = vsub.s32 %v5720, %v5722
  %v5724 = vrot.slane %v5715, %v5723
  %v5726 = vunpack.c.l.s4 1983009808
  %v5727 = vunpack.c.0.s8 %v5726
  %v5728 = vlaneseq
  %v5729 = vshrl.u32 %v5728, 7
  %v5730 = vsub.s32 %v5727, %v5729
  %v5731 = vrot.slane %v5717, %v5730
  %v5732 = vcombine.high %v5724, %v5724
  %v5736 = vsub.f32 %v5079, %v5724
  %v5737 = vsub.f32 %v5080, %v5732
  %v5738 = vsub.f32 %v5081, %v5731
  %v5739 = vsub.f32 %v5082, %v5724
  %v5740 = vsub.f32 %v5083, %v5732
  %v5741 = vsub.f32 %v5084, %v5731
  %v5742 = vsub.f32 %v5445, %v5724
  %v5743 = vsub.f32 %v5446, %v5732
  %v5744 = vsub.f32 %v5447, %v5731
  %v5745 = vsub.f32 %v5448, %v5724
  %v5746 = vsub.f32 %v5449, %v5732
  %v5747 = vsub.f32 %v5450, %v5731
  %v5748 = vmul.f32 %v5736, %v5736
  %v5749 = vmul.f32 %v5737, %v5737
  %v5750 = vmul.f32 %v5738, %v5738
  %v5751 = vmul.f32 %v5739, %v5739
  %v5752 = vmul.f32 %v5740, %v5740
  %v5753 = vmul.f32 %v5741, %v5741
  %v5760 = vcombine.low %v5748, %v5749
  %v5762 = vunpack.c.l.s4 1983009808
  %v5763 = vunpack.c.0.s8 %v5762
  %v5764 = vlaneseq
  %v5765 = vshrl.u32 %v5764, 7
  %v5766 = vsub.s32 %v5763, %v5765
  %v5767 = vrot.slane %v5760, %v5766
  %v5769 = vunpack.c.l.s4 1983009808
  %v5770 = vunpack.c.0.s8 %v5769
  %v5771 = vlaneseq
  %v5772 = vshrl.u32 %v5771, 7
  %v5773 = vsub.s32 %v5770, %v5772
  %v5774 = vrot.slane %v5750, %v5773
  %v5775 = vcombine.low %v5767, %v5774
  %v5776 = vcombine.low %v5751, %v5752
  %v5778 = vunpack.c.l.s4 1983009808
  %v5779 = vunpack.c.0.s8 %v5778
  %v5780 = vlaneseq
  %v5781 = vshrl.u32 %v5780, 7
  %v5782 = vsub.s32 %v5779, %v5781
  %v5783 = vrot.slane %v5776, %v5782
  %v5785 = vunpack.c.l.s4 1983009808
  %v5786 = vunpack.c.0.s8 %v5785
  %v5787 = vlaneseq
  %v5788 = vshrl.u32 %v5787, 7
  %v5789 = vsub.s32 %v5786, %v5788
  %v5790 = vrot.slane %v5753, %v5789
  %v5791 = vcombine.low %v5783, %v5790
  %v5794 = vsel %vm5504, %v5775, 0.0
  %v5795 = vsel %vm5504, %v5791, 0.0
  %v5796 = vadd.f32 %v5794, %v5795
  %v5797 = vrot.slane %v5796, 4
  %v5798 = vadd.f32 %v5796, %v5797
  %v5799 = vrot.slane %v5798, 2
  %v5800 = vadd.f32 %v5798, %v5799
  %v5801 = vrot.slane %v5800, 1
  %v5802 = vadd.f32 %v5800, %v5801
  %v5803 = vmul.f32 %v5742, %v5742
  %v5804 = vmul.f32 %v5743, %v5743
  %v5805 = vmul.f32 %v5744, %v5744
  %v5806 = vmul.f32 %v5745, %v5745
  %v5807 = vmul.f32 %v5746, %v5746
  %v5808 = vmul.f32 %v5747, %v5747
  %v5815 = vcombine.low %v5803, %v5804
  %v5817 = vunpack.c.l.s4 1983009808
  %v5818 = vunpack.c.0.s8 %v5817
  %v5819 = vlaneseq
  %v5820 = vshrl.u32 %v5819, 7
  %v5821 = vsub.s32 %v5818, %v5820
  %v5822 = vrot.slane %v5815, %v5821
  %v5824 = vunpack.c.l.s4 1983009808
  %v5825 = vunpack.c.0.s8 %v5824
  %v5826 = vlaneseq
  %v5827 = vshrl.u32 %v5826, 7
  %v5828 = vsub.s32 %v5825, %v5827
  %v5829 = vrot.slane %v5805, %v5828
  %v5830 = vcombine.low %v5822, %v5829
  %v5831 = vcombine.low %v5806, %v5807
  %v5833 = vunpack.c.l.s4 1983009808
  %v5834 = vunpack.c.0.s8 %v5833
  %v5835 = vlaneseq
  %v5836 = vshrl.u32 %v5835, 7
  %v5837 = vsub.s32 %v5834, %v5836
  %v5838 = vrot.slane %v5831, %v5837
  %v5840 = vunpack.c.l.s4 1983009808
  %v5841 = vunpack.c.0.s8 %v5840
  %v5842 = vlaneseq
  %v5843 = vshrl.u32 %v5842, 7
  %v5844 = vsub.s32 %v5841, %v5843
  %v5845 = vrot.slane %v5808, %v5844
  %v5846 = vcombine.low %v5838, %v5845
  %v5849 = vsel %vm5504, %v5830, 0.0
  %v5850 = vsel %vm5504, %v5846, 0.0
  %v5851 = vadd.f32 %v5849, %v5850
  %v5852 = vrot.slane %v5851, 4
  %v5853 = vadd.f32 %v5851, %v5852
  %v5854 = vrot.slane %v5853, 2
  %v5855 = vadd.f32 %v5853, %v5854
  %v5856 = vrot.slane %v5855, 1
  %v5857 = vadd.f32 %v5855, %v5856
  %v5858 = vadd.f32 %v5802, %v5857
  %v5860 = vsel %vm5564, %v5858, 0
  %5862 = vmatprep.subr.mxu0 0.0
  %5863 = vmatpush1.msra.mxu0 %v5451
  %5864 = vmatprep.subr.mxu0 0.0
  %5865 = vmatpush1.msra.mxu0 %v5452
  %5866 = vmatprep.subr.mxu0 0.0
  %5867 = vmatpush1.msra.mxu0 %v5453
  %5868 = vmatprep.subr.mxu0 0.0
  %5869 = vmatpush1.msra.mxu0 %v5454
  %5870 = vmatprep.subr.mxu0 0.0
  %5871 = vmatpush1.msra.mxu0 %v5455
  %5872 = vmatprep.subr.mxu0 0.0
  %5873 = vmatpush1.msra.mxu0 %v5456
  %5874 = vmatprep.subr.mxu0 0.0
  %5875 = vmatpush1.msra.mxu0 %v5457
  %5876 = vmatprep.subr.mxu0 0.0
  %5877 = vmatpush1.msra.mxu0 %v5458
  %5878 = vmatprep.subr.mxu0 0.0
  %5879 = vmatpush1.msra.mxu0 %v5459
  %5880 = vmatprep.subr.mxu0 0.0
  %5881 = vmatpush1.msra.mxu0 %v5460
  %5882 = vmatprep.subr.mxu0 0.0
  %5883 = vmatpush1.msra.mxu0 %v5461
  %5884 = vmatprep.subr.mxu0 0.0
  %5885 = vmatpush1.msra.mxu0 %v5462
  %5886 = vmatprep.subr.mxu0 0.0
  %5887 = vmatpush1.msra.mxu0 0.0
  %5888 = vmatprep.subr.mxu0 0.0
  %5889 = vmatpush1.msra.mxu0 0.0
  %5890 = vmatprep.subr.mxu0 0.0
  %5891 = vmatpush1.msra.mxu0 0.0
  %5892 = vmatprep.subr.mxu0 0.0
  %5893 = vmatpush1.msra.mxu0 0.0
  %5894 = vmatprep.subr.mxu0 0.0
  %5895 = vmatpush1.msra.mxu0 0.0
  %5896 = vmatprep.subr.mxu0 0.0
  %5897 = vmatpush1.msra.mxu0 0.0
  %5898 = vmatprep.subr.mxu0 0.0
  %5899 = vmatpush1.msra.mxu0 0.0
  %5900 = vmatprep.subr.mxu0 0.0
  %5901 = vmatpush1.msra.mxu0 0.0
  %5902 = vmatprep.subr.mxu0 0.0
  %5903 = vmatpush1.msra.mxu0 0.0
  %5904 = vmatprep.subr.mxu0 0.0
  %5905 = vmatpush1.msra.mxu0 0.0
  %5906 = vmatprep.subr.mxu0 0.0
  %5907 = vmatpush1.msra.mxu0 0.0
  %5908 = vmatprep.subr.mxu0 0.0
  %5909 = vmatpush1.msra.mxu0 0.0
  %5910 = vmatprep.subr.mxu0 0.0
  %5911 = vmatpush1.msra.mxu0 0.0
  %5912 = vmatprep.subr.mxu0 0.0
  %5913 = vmatpush1.msra.mxu0 0.0
  %5914 = vmatprep.subr.mxu0 0.0
  %5915 = vmatpush1.msra.mxu0 0.0
  %5916 = vmatprep.subr.mxu0 0.0
  %5917 = vmatpush1.msra.mxu0 0.0
  %5918 = vmatprep.subr.mxu0 0.0
  %5919 = vmatpush1.msra.mxu0 0.0
  %5920 = vmatprep.subr.mxu0 0.0
  %5921 = vmatpush1.msra.mxu0 0.0
  %5922 = vmatprep.subr.mxu0 0.0
  %5923 = vmatpush1.msra.mxu0 0.0
  %5924 = vmatprep.subr.mxu0 0.0
  %5925 = vmatpush1.msra.mxu0 0.0
  %5926 = vmatprep.mubr.f32.mxu0 0.0
  %5927 = vmatmul.mubr.f32.gmra.mrb[0].mxu0 %v5860
  %v5928 = vpop.f32.mrb[0].mxu0
  %v5929 = vadd.f32 0.0, %v5928
  %v5930 = vpop.f32.mrb[0].mxu0
  %5931 = vdwg.mxu0
  %v5932 = vmul.f32 %v5929, 0.0034722222
  %v5933 = vld [vmem:[%s11] sm:$0x1]
  %v5934 = vadd.f32 %v5932, 1e-05
  %v5935 = vrsqrt.pop %v5934
  %v5936 = vmul.f32 %v5933, %v5935
  %v5937 = vld [vmem:[%s12] sm:$0x1]
  %v5938 = vmul.f32 %v5638, %v5936
  %v5939 = vsub.f32 %v5937, %v5938
  %v5941 = vsel %vm3424, %v5936, 0
  %5943 = vmatprep.subr.mxu0 0.0
  %5944 = vmatpush1.msra.mxu0 %v5463
  %5945 = vmatprep.subr.mxu0 0.0
  %5946 = vmatpush1.msra.mxu0 0.0
  %5947 = vmatprep.subr.mxu0 0.0
  %5948 = vmatpush1.msra.mxu0 0.0
  %5949 = vmatprep.subr.mxu0 0.0
  %5950 = vmatpush1.msra.mxu0 0.0
  %5951 = vmatprep.subr.mxu0 0.0
  %5952 = vmatpush1.msra.mxu0 0.0
  %5953 = vmatprep.subr.mxu0 0.0
  %5954 = vmatpush1.msra.mxu0 0.0
  %5955 = vmatprep.subr.mxu0 0.0
  %5956 = vmatpush1.msra.mxu0 0.0
  %5957 = vmatprep.subr.mxu0 0.0
  %5958 = vmatpush1.msra.mxu0 0.0
  %5959 = vmatprep.subr.mxu0 0.0
  %5960 = vmatpush1.msra.mxu0 0.0
  %5961 = vmatprep.subr.mxu0 0.0
  %5962 = vmatpush1.msra.mxu0 0.0
  %5963 = vmatprep.subr.mxu0 0.0
  %5964 = vmatpush1.msra.mxu0 0.0
  %5965 = vmatprep.subr.mxu0 0.0
  %5966 = vmatpush1.msra.mxu0 0.0
  %5967 = vmatprep.subr.mxu0 0.0
  %5968 = vmatpush1.msra.mxu0 0.0
  %5969 = vmatprep.subr.mxu0 0.0
  %5970 = vmatpush1.msra.mxu0 0.0
  %5971 = vmatprep.subr.mxu0 0.0
  %5972 = vmatpush1.msra.mxu0 0.0
  %5973 = vmatprep.subr.mxu0 0.0
  %5974 = vmatpush1.msra.mxu0 0.0
  %5975 = vmatprep.subr.mxu0 0.0
  %5976 = vmatpush1.msra.mxu0 0.0
  %5977 = vmatprep.subr.mxu0 0.0
  %5978 = vmatpush1.msra.mxu0 0.0
  %5979 = vmatprep.subr.mxu0 0.0
  %5980 = vmatpush1.msra.mxu0 0.0
  %5981 = vmatprep.subr.mxu0 0.0
  %5982 = vmatpush1.msra.mxu0 0.0
  %5983 = vmatprep.subr.mxu0 0.0
  %5984 = vmatpush1.msra.mxu0 0.0
  %5985 = vmatprep.subr.mxu0 0.0
  %5986 = vmatpush1.msra.mxu0 0.0
  %5987 = vmatprep.subr.mxu0 0.0
  %5988 = vmatpush1.msra.mxu0 0.0
  %5989 = vmatprep.subr.mxu0 0.0
  %5990 = vmatpush1.msra.mxu0 0.0
  %5991 = vmatprep.subr.mxu0 0.0
  %5992 = vmatpush1.msra.mxu0 0.0
  %5993 = vmatprep.subr.mxu0 0.0
  %5994 = vmatpush1.msra.mxu0 0.0
  %5995 = vmatprep.subr.mxu0 0.0
  %5996 = vmatpush1.msra.mxu0 0.0
  %5997 = vmatprep.subr.mxu0 0.0
  %5998 = vmatpush1.msra.mxu0 0.0
  %5999 = vmatprep.subr.mxu0 0.0
  %6000 = vmatpush1.msra.mxu0 0.0
  %6001 = vmatprep.subr.mxu0 0.0
  %6002 = vmatpush1.msra.mxu0 0.0
  %6003 = vmatprep.subr.mxu0 0.0
  %6004 = vmatpush1.msra.mxu0 0.0
  %6005 = vmatprep.subr.mxu0 0.0
  %6006 = vmatpush1.msra.mxu0 0.0
  %6007 = vmatprep.mubr.f32.mxu0 0.0
  %6008 = vmatmul.mubr.f32.gmra.mrb[0].mxu0 %v5941
  %v6009 = vpop.f32.mrb[0].mxu0
  %v6010 = vadd.f32 0.0, %v6009
  %v6011 = vpop.f32.mrb[0].mxu0
  %6012 = vdwg.mxu0
  %v6014 = vsel %vm3424, %v5939, 0
  %6016 = vmatprep.subr.mxu0 0.0
  %6017 = vmatpush1.msra.mxu0 %v5463
  %6018 = vmatprep.subr.mxu0 0.0
  %6019 = vmatpush1.msra.mxu0 0.0
  %6020 = vmatprep.subr.mxu0 0.0
  %6021 = vmatpush1.msra.mxu0 0.0
  %6022 = vmatprep.subr.mxu0 0.0
  %6023 = vmatpush1.msra.mxu0 0.0
  %6024 = vmatprep.subr.mxu0 0.0
  %6025 = vmatpush1.msra.mxu0 0.0
  %6026 = vmatprep.subr.mxu0 0.0
  %6027 = vmatpush1.msra.mxu0 0.0
  %6028 = vmatprep.subr.mxu0 0.0
  %6029 = vmatpush1.msra.mxu0 0.0
  %6030 = vmatprep.subr.mxu0 0.0
  %6031 = vmatpush1.msra.mxu0 0.0
  %6032 = vmatprep.subr.mxu0 0.0
  %6033 = vmatpush1.msra.mxu0 0.0
  %6034 = vmatprep.subr.mxu0 0.0
  %6035 = vmatpush1.msra.mxu0 0.0
  %6036 = vmatprep.subr.mxu0 0.0
  %6037 = vmatpush1.msra.mxu0 0.0
  %6038 = vmatprep.subr.mxu0 0.0
  %6039 = vmatpush1.msra.mxu0 0.0
  %6040 = vmatprep.subr.mxu0 0.0
  %6041 = vmatpush1.msra.mxu0 0.0
  %6042 = vmatprep.subr.mxu0 0.0
  %6043 = vmatpush1.msra.mxu0 0.0
  %6044 = vmatprep.subr.mxu0 0.0
  %6045 = vmatpush1.msra.mxu0 0.0
  %6046 = vmatprep.subr.mxu0 0.0
  %6047 = vmatpush1.msra.mxu0 0.0
  %6048 = vmatprep.subr.mxu0 0.0
  %6049 = vmatpush1.msra.mxu0 0.0
  %6050 = vmatprep.subr.mxu0 0.0
  %6051 = vmatpush1.msra.mxu0 0.0
  %6052 = vmatprep.subr.mxu0 0.0
  %6053 = vmatpush1.msra.mxu0 0.0
  %6054 = vmatprep.subr.mxu0 0.0
  %6055 = vmatpush1.msra.mxu0 0.0
  %6056 = vmatprep.subr.mxu0 0.0
  %6057 = vmatpush1.msra.mxu0 0.0
  %6058 = vmatprep.subr.mxu0 0.0
  %6059 = vmatpush1.msra.mxu0 0.0
  %6060 = vmatprep.subr.mxu0 0.0
  %6061 = vmatpush1.msra.mxu0 0.0
  %6062 = vmatprep.subr.mxu0 0.0
  %6063 = vmatpush1.msra.mxu0 0.0
  %6064 = vmatprep.subr.mxu0 0.0
  %6065 = vmatpush1.msra.mxu0 0.0
  %6066 = vmatprep.subr.mxu0 0.0
  %6067 = vmatpush1.msra.mxu0 0.0
  %6068 = vmatprep.subr.mxu0 0.0
  %6069 = vmatpush1.msra.mxu0 0.0
  %6070 = vmatprep.subr.mxu0 0.0
  %6071 = vmatpush1.msra.mxu0 0.0
  %6072 = vmatprep.subr.mxu0 0.0
  %6073 = vmatpush1.msra.mxu0 0.0
  %6074 = vmatprep.subr.mxu0 0.0
  %6075 = vmatpush1.msra.mxu0 0.0
  %6076 = vmatprep.subr.mxu0 0.0
  %6077 = vmatpush1.msra.mxu0 0.0
  %6078 = vmatprep.subr.mxu0 0.0
  %6079 = vmatpush1.msra.mxu0 0.0
  %6080 = vmatprep.mubr.f32.mxu0 0.0
  %6081 = vmatmul.mubr.f32.gmra.mrb[0].mxu0 %v6014
  %v6082 = vpop.f32.mrb[0].mxu0
  %v6083 = vadd.f32 0.0, %v6082
  %v6084 = vpop.f32.mrb[0].mxu0
  %6085 = vdwg.mxu0
  %v6086 = vlaneseq
  %v6087 = vshrl.u32 %v6086, 7
  %v6088 = vsub.s32 0, %v6087
  %v6089 = vrot.slane %v6010, %v6088
  %v6091 = vcombine.high %v6089, %v6089
  %v6093 = vunpack.c.l.s4 1983009808
  %v6094 = vunpack.c.0.s8 %v6093
  %v6095 = vlaneseq
  %v6096 = vshrl.u32 %v6095, 7
  %v6097 = vsub.s32 %v6094, %v6096
  %v6098 = vrot.slane %v6089, %v6097
  %v6100 = vunpack.c.l.s4 1983009808
  %v6101 = vunpack.c.0.s8 %v6100
  %v6102 = vlaneseq
  %v6103 = vshrl.u32 %v6102, 7
  %v6104 = vsub.s32 %v6101, %v6103
  %v6105 = vrot.slane %v6091, %v6104
  %v6106 = vcombine.high %v6098, %v6098
  %v6110 = vmul.f32 %v5079, %v6098
  %v6111 = vmul.f32 %v5080, %v6106
  %v6112 = vmul.f32 %v5081, %v6105
  %v6113 = vmul.f32 %v5082, %v6098
  %v6114 = vmul.f32 %v5083, %v6106
  %v6115 = vmul.f32 %v5084, %v6105
  %v6116 = vlaneseq
  %v6117 = vshrl.u32 %v6116, 7
  %v6118 = vsub.s32 0, %v6117
  %v6119 = vrot.slane %v6083, %v6118
  %v6121 = vcombine.high %v6119, %v6119
  %v6123 = vunpack.c.l.s4 1983009808
  %v6124 = vunpack.c.0.s8 %v6123
  %v6125 = vlaneseq
  %v6126 = vshrl.u32 %v6125, 7
  %v6127 = vsub.s32 %v6124, %v6126
  %v6128 = vrot.slane %v6119, %v6127
  %v6130 = vunpack.c.l.s4 1983009808
  %v6131 = vunpack.c.0.s8 %v6130
  %v6132 = vlaneseq
  %v6133 = vshrl.u32 %v6132, 7
  %v6134 = vsub.s32 %v6131, %v6133
  %v6135 = vrot.slane %v6121, %v6134
  %v6136 = vcombine.high %v6128, %v6128
  %v6140 = vadd.f32 %v6110, %v6128
  %v6141 = vadd.f32 %v6111, %v6136
  %v6142 = vadd.f32 %v6112, %v6135
  %v6143 = vadd.f32 %v6113, %v6128
  %v6144 = vadd.f32 %v6114, %v6136
  %v6145 = vadd.f32 %v6115, %v6135
  %v6146 = vmax.f32 %v6140, 0.0
  %v6147 = vmax.f32 %v6141, 0.0
  %v6148 = vmax.f32 %v6142, 0.0
  %v6149 = vmax.f32 %v6143, 0.0
  %v6150 = vmax.f32 %v6144, 0.0
  %v6151 = vmax.f32 %v6145, 0.0
  %v6152 = vmul.f32 %v5445, %v6098
  %v6153 = vmul.f32 %v5446, %v6106
  %v6154 = vmul.f32 %v5447, %v6105
  %v6155 = vmul.f32 %v5448, %v6098
  %v6156 = vmul.f32 %v5449, %v6106
  %v6157 = vmul.f32 %v5450, %v6105
  %v6158 = vadd.f32 %v6152, %v6128
  %v6159 = vadd.f32 %v6153, %v6136
  %v6160 = vadd.f32 %v6154, %v6135
  %v6161 = vadd.f32 %v6155, %v6128
  %v6162 = vadd.f32 %v6156, %v6136
  %v6163 = vadd.f32 %v6157, %v6135
  %v6164 = vmax.f32 %v6158, 0.0
  %v6165 = vmax.f32 %v6159, 0.0
  %v6166 = vmax.f32 %v6160, 0.0
  %v6167 = vmax.f32 %v6161, 0.0
  %v6168 = vmax.f32 %v6162, 0.0
  %v6169 = vmax.f32 %v6163, 0.0
  %v6176 = vcombine.low %v6146, %v6147
  %v6178 = vunpack.c.l.s4 1983009808
  %v6179 = vunpack.c.0.s8 %v6178
  %v6180 = vlaneseq
  %v6181 = vshrl.u32 %v6180, 7
  %v6182 = vsub.s32 %v6179, %v6181
  %v6183 = vrot.slane %v6176, %v6182
  %v6185 = vunpack.c.l.s4 1983009808
  %v6186 = vunpack.c.0.s8 %v6185
  %v6187 = vlaneseq
  %v6188 = vshrl.u32 %v6187, 7
  %v6189 = vsub.s32 %v6186, %v6188
  %v6190 = vrot.slane %v6148, %v6189
  %v6191 = vcombine.low %v6183, %v6190
  %v6192 = vcombine.low %v6149, %v6150
  %v6194 = vunpack.c.l.s4 1983009808
  %v6195 = vunpack.c.0.s8 %v6194
  %v6196 = vlaneseq
  %v6197 = vshrl.u32 %v6196, 7
  %v6198 = vsub.s32 %v6195, %v6197
  %v6199 = vrot.slane %v6192, %v6198
  %v6201 = vunpack.c.l.s4 1983009808
  %v6202 = vunpack.c.0.s8 %v6201
  %v6203 = vlaneseq
  %v6204 = vshrl.u32 %v6203, 7
  %v6205 = vsub.s32 %v6202, %v6204
  %v6206 = vrot.slane %v6151, %v6205
  %v6207 = vcombine.low %v6199, %v6206
  %v6216 = vcombine.low %v6164, %v6165
  %v6218 = vunpack.c.l.s4 1983009808
  %v6219 = vunpack.c.0.s8 %v6218
  %v6220 = vlaneseq
  %v6221 = vshrl.u32 %v6220, 7
  %v6222 = vsub.s32 %v6219, %v6221
  %v6223 = vrot.slane %v6216, %v6222
  %v6225 = vunpack.c.l.s4 1983009808
  %v6226 = vunpack.c.0.s8 %v6225
  %v6227 = vlaneseq
  %v6228 = vshrl.u32 %v6227, 7
  %v6229 = vsub.s32 %v6226, %v6228
  %v6230 = vrot.slane %v6166, %v6229
  %v6231 = vcombine.low %v6223, %v6230
  %v6232 = vcombine.low %v6167, %v6168
  %v6234 = vunpack.c.l.s4 1983009808
  %v6235 = vunpack.c.0.s8 %v6234
  %v6236 = vlaneseq
  %v6237 = vshrl.u32 %v6236, 7
  %v6238 = vsub.s32 %v6235, %v6237
  %v6239 = vrot.slane %v6232, %v6238
  %v6241 = vunpack.c.l.s4 1983009808
  %v6242 = vunpack.c.0.s8 %v6241
  %v6243 = vlaneseq
  %v6244 = vshrl.u32 %v6243, 7
  %v6245 = vsub.s32 %v6242, %v6244
  %v6246 = vrot.slane %v6169, %v6245
  %v6247 = vcombine.low %v6239, %v6246
  %6248 = vrot.lane.b32.xlu0 %v6231, 96
  %v6249 = vpop.permute.xlu0 %6248
  %6250 = vrot.lane.b32.xlu0 %v6247, 96
  %v6251 = vpop.permute.xlu0 %6250
  %v6254 = vsel %vm5564, %v6191, %v6249
  %v6255 = vsel %vm5564, %v6207, %v6251
  %6256 = vst [vmem:[%s15] sm:$0x3f] %v6254
  %vm6257 = vcmask 521216
  %6258 = vst.msk [vmem:[%s15 + $0x8] sm:$0x3f] %vm6257, %v6249
  %6259 = vst [vmem:[%s15 + $0x10] sm:$0x3f] %v6255
  %6260 = vst.msk [vmem:[%s15 + $0x18] sm:$0x3f] %vm6257, %v6251
  // Predicated region
  $region62: #{expand_forward.1} parent=0 // pred_check
    _
  $region63: #{expand_forward.1} parent=0 // pred_check_branch
    %6262 = sbr.rel (0) target = $region65
  $region64: #{expand_forward.1} parent=0 // pred_region
    _
  $region65: #{expand_forward.1} parent=0 // pred_fallthru
    _
  // Predicated region
  $region66: #{expand_forward.1} parent=0 // pred_check
    _
  $region67: #{expand_forward.1} parent=0 // pred_check_branch
    %6264 = sbr.rel (0) target = $region69
  $region68: #{expand_forward.1} parent=0 // pred_region
    _
  $region69: #{expand_forward.1} parent=0 // pred_fallthru
    _

</llo_original>
